<compile_context>
chip_gen: v6e
topology: v6e:2x2x1
jax: 0.10.0
libtpu: 0.0.40
codegen_flags: <defaults>
</compile_context>

<pallas_src>
import functools

import numpy as np
import jax
import jax.numpy as jnp
from jax.experimental import pallas as pl
from jax.experimental.pallas import tpu as pltpu


ENCODING_DIM = 32
OUT_PAD = 128          # lane-dense padded output width (first 32 cols real)
_POS2 = 16             # conv2 output positions feeding conv3 (its 4x4 taps)
_OFF = 16              # 4x4 kernel offsets (every conv has k=4)
_PATCH1 = 16           # conv1 patch size = 1 * 4 * 4
_QW = _OFF * _PATCH1   # 256 = lane-dense patch width per (pos2, batch) row


def _round_up(v, m):
    return ((v + m - 1) // m) * m


def _gather_indices():
    """(16, 256) pixel indices so one gather lands in the kernel layout.

    q[pos2, off*16 + k1] = x[4*oh2 + 2*kh2 + kh1, 4*ow2 + 2*kw2 + kw1]
      pos2 = oh2*4 + ow2 (conv2 output position inside the 4x4 block = conv3 tap)
      off  = kh2*4 + kw2 (conv2 kernel offset)
      k1   = kh1*4 + kw1 (conv1 patch element, single input channel)
    """
    oh2, ow2, kh2, kw2, kh1, kw1 = np.meshgrid(
        np.arange(4), np.arange(4), np.arange(4), np.arange(4),
        np.arange(4), np.arange(4), indexing="ij")
    rows = 4 * oh2 + 2 * kh2 + kh1
    cols = 4 * ow2 + 2 * kw2 + kw1
    return (rows.reshape(_POS2, _QW).astype(np.int32),
            cols.reshape(_POS2, _QW).astype(np.int32))


_ROWS_IDX, _COLS_IDX = _gather_indices()


# ----------------------------------------------------------------------------
# Fused encoder kernel: one batch tile per grid step, weights resident in VMEM.
# Rows of the (m2 = 16*tb, 256) patch block are pos2-major: r = pos2*tb + b.
# ----------------------------------------------------------------------------
def _encoder_kernel(q_ref, w1_ref, b1_ref, w2_ref, b2_ref, w3_ref, b3_ref,
                    wl_ref, bl_ref, o_ref, h2w_ref):
    tb = o_ref.shape[0]

    # conv1 (+ReLU): all 16 conv2 offsets in ONE K=256 matmul (block-diag w1).
    h1 = jnp.dot(q_ref[...], w1_ref[...], preferred_element_type=jnp.float32)
    h1 = jnp.maximum(h1 + b1_ref[...], 0.0).astype(jnp.bfloat16)       # (m2, 1024)

    # conv2 (+ReLU): single K-concatenated (m2,1024)x(1024,128) matmul.
    h2 = jnp.dot(h1, w2_ref[...], preferred_element_type=jnp.float32)
    h2 = jnp.maximum(h2 + b2_ref[...], 0.0).astype(jnp.bfloat16)       # (m2, 128)

    # Re-pack the 16 conv2 positions from row blocks into lane blocks of the
    # (tb, 2048) scratch (all slices 8/128 aligned -> plain slab copies).
    for p in range(_POS2):
        h2w_ref[:, p * 128:(p + 1) * 128] = h2[p * tb:(p + 1) * tb, :]

    # conv3 (+ReLU): single well-shaped (tb,2048)x(2048,512) matmul.
    h3 = jnp.dot(h2w_ref[...], w3_ref[...], preferred_element_type=jnp.float32)
    h3 = jnp.maximum(h3 + b3_ref[...], 0.0).astype(jnp.bfloat16)       # (tb, 512)

    # Linear head (wl zero-padded to 128 lanes for unmasked stores).
    out = jnp.dot(h3, wl_ref[...], preferred_element_type=jnp.float32)
    o_ref[...] = (out + bl_ref[...]).astype(o_ref.dtype)


# ----------------------------------------------------------------------------
# Parameter preparation (hoisted out of the forward path, done once).
# ----------------------------------------------------------------------------
def prepare_params(params):
    f32, bf16 = jnp.float32, jnp.bfloat16

    w1t = params["w1"].astype(f32).reshape(64, _PATCH1).T                 # (16, 64)
    w1_bd = jnp.kron(jnp.eye(_OFF, dtype=f32), w1t)                       # (256, 1024)
    w2f = jnp.transpose(params["w2"].astype(f32), (2, 3, 1, 0)).reshape(_OFF * 64, 128)
    w3f = jnp.transpose(params["w3"].astype(f32), (2, 3, 1, 0)).reshape(_POS2 * 128, 512)
    wlp = jnp.pad(params["wl"].astype(f32).T, ((0, 0), (0, OUT_PAD - ENCODING_DIM)))
    blp = jnp.pad(params["bl"].astype(f32), (0, OUT_PAD - ENCODING_DIM))

    return dict(
        w1=w1_bd.astype(bf16),                                            # (256, 1024)
        b1=jnp.tile(params["b1"].astype(f32), _OFF).reshape(1, _OFF * 64),
        w2=w2f.astype(bf16),                                              # (1024, 128)
        b2=params["b2"].astype(f32).reshape(1, 128),
        w3=w3f.astype(bf16),                                              # (2048, 512)
        b3=params["b3"].astype(f32).reshape(1, 512),
        wl=wlp.astype(bf16),                                              # (512, 128)
        bl=blp.reshape(1, OUT_PAD),
    )


# ----------------------------------------------------------------------------
# Forward
# ----------------------------------------------------------------------------
@functools.partial(jax.jit, static_argnames=("batch_tile",))
def encoder_forward(prep, x, batch_tile=128):
    assert x.ndim == 4 and x.shape[1:] == (1, 28, 28), x.shape  # spec is 1x28x28 only
    n = x.shape[0]

    # Batch tile: sweepable, >=8, pad batch to a tile multiple, and prefer
    # >=2 grid steps so the "parallel" axis can shard across v7x's two TCs.
    tb = max(8, min(batch_tile, _round_up((n + 1) // 2, 8)))
    n_pad = _round_up(n, tb)
    nt = n_pad // tb
    m2 = _POS2 * tb

    xs = x[:, 0, :, :].astype(jnp.bfloat16)                      # (n, 28, 28)
    if n_pad != n:
        xs = jnp.pad(xs, ((0, n_pad - n), (0, 0), (0, 0)))

    # Single gather already in the kernel's lane-dense layout (permutation is
    # folded into the index tables); only a cheap (tb,pos2) swap remains.
    # TODO(synk): could be replaced by an in-kernel (tb,784)x(784,4096)
    # selection matmul to cut HBM input bytes a further ~5x.
    q = xs[:, _ROWS_IDX, _COLS_IDX]                              # (n_pad, 16, 256)
    q = q.reshape(nt, tb, _POS2, _QW).transpose(0, 2, 1, 3).reshape(nt * m2, _QW)

    # VMEM budget from the actual padded tile sizes (cap leaves v7x headroom).
    weight_bytes = (2 * (_QW * 1024 + 1024 * 128 + 2048 * 512 + 512 * OUT_PAD)
                    + 4 * (1024 + 128 + 512 + OUT_PAD))
    live_bytes = (2 * m2 * _QW * 2            # double-buffered patch tile (bf16)
                  + 2 * weight_bytes          # double-buffered resident weights
                  + 2 * tb * OUT_PAD * 4      # double-buffered output tile
                  + tb * 2048 * 2             # h2-wide scratch (bf16)
                  + m2 * 1024 * 6             # h1 f32 pre-act + bf16 copy
                  + m2 * 128 * 6 + tb * 512 * 6)
    vmem_limit = int(min(max(live_bytes + (8 << 20), 32 << 20), 56 << 20))

    out = pl.pallas_call(
        _encoder_kernel,
        out_shape=jax.ShapeDtypeStruct((n_pad, OUT_PAD), jnp.float32),
        grid=(nt,),
        in_specs=[
            pl.BlockSpec((m2, _QW), lambda i: (i, 0)),            # patches (bf16)
            pl.BlockSpec((_QW, 1024), lambda i: (0, 0)),          # w1 block-diag
            pl.BlockSpec((1, 1024), lambda i: (0, 0)),            # b1 (tiled x16)
            pl.BlockSpec((1024, 128), lambda i: (0, 0)),          # w2 flat
            pl.BlockSpec((1, 128), lambda i: (0, 0)),             # b2
            pl.BlockSpec((2048, 512), lambda i: (0, 0)),          # w3 flat
            pl.BlockSpec((1, 512), lambda i: (0, 0)),             # b3
            pl.BlockSpec((512, OUT_PAD), lambda i: (0, 0)),       # wl (padded)
            pl.BlockSpec((1, OUT_PAD), lambda i: (0, 0)),         # bl (padded)
        ],
        out_specs=pl.BlockSpec((tb, OUT_PAD), lambda i: (i, 0)),
        scratch_shapes=[pltpu.VMEM((tb, 2048), jnp.bfloat16)],
        compiler_params=pltpu.CompilerParams(
            dimension_semantics=("parallel",),
            vmem_limit_bytes=vmem_limit,
        ),
    )(q, prep["w1"], prep["b1"], prep["w2"], prep["b2"],
      prep["w3"], prep["b3"], prep["wl"], prep["bl"])
    return out[:n, :ENCODING_DIM]


# ----------------------------------------------------------------------------
# PyTorch-style parameter init + pure-JAX reference (correctness check only).
# ----------------------------------------------------------------------------
def init_params(key):
    ks = jax.random.split(key, 8)

    def conv_init(kw_, kb_, oc, ic, k):
        fan_in = ic * k * k
        bound = 1.0 / jnp.sqrt(fan_in)
        w = jax.random.uniform(kw_, (oc, ic, k, k), jnp.float32, -bound, bound)
        b = jax.random.uniform(kb_, (oc,), jnp.float32, -bound, bound)
        return w, b

    w1, b1 = conv_init(ks[0], ks[1], 64, 1, 4)
    w2, b2 = conv_init(ks[2], ks[3], 128, 64, 4)
    w3, b3 = conv_init(ks[4], ks[5], 512, 128, 4)

    lin_in = 512
    bound = 1.0 / jnp.sqrt(lin_in)
    wl = jax.random.uniform(ks[6], (ENCODING_DIM, lin_in), jnp.float32, -bound, bound)
    bl = jax.random.uniform(ks[7], (ENCODING_DIM,), jnp.float32, -bound, bound)
    return dict(w1=w1, b1=b1, w2=w2, b2=b2, w3=w3, b3=b3, wl=wl, bl=bl)


def encoder_forward_ref(params, x):
    dn = ("NCHW", "OIHW", "NCHW")

    def conv(x_, w, b):
        y = jax.lax.conv_general_dilated(x_, w, (2, 2), "VALID",
                                         dimension_numbers=dn)
        return jax.nn.relu(y + b[None, :, None, None])

    h = conv(x, params["w1"], params["b1"])
    h = conv(h, params["w2"], params["b2"])
    h = conv(h, params["w3"], params["b3"])
    flat = h.reshape(h.shape[0], -1)
    return flat @ params["wl"].T + params["bl"]


if __name__ == "__main__":
    key = jax.random.PRNGKey(0)
    pkey, xkey1, xkey2 = jax.random.split(key, 3)
    params = init_params(pkey)
    prep = prepare_params(params)

    # Case 1: ragged batch (tests batch padding + 2-step "parallel" grid).
    x1 = jax.random.normal(xkey1, (12, 1, 28, 28), jnp.float32)
    out1 = jax.block_until_ready(encoder_forward(prep, x1))
    ref1 = encoder_forward_ref(params, x1)
    assert out1.shape == (12, ENCODING_DIM), out1.shape
    assert jnp.allclose(out1, ref1, atol=1.5e-2, rtol=2e-2), \
        float(jnp.max(jnp.abs(out1 - ref1)))

    # Case 2: explicit tile, multi-step grid, no padding.
    x2 = jax.random.normal(xkey2, (48, 1, 28, 28), jnp.float32)
    out2 = jax.block_until_ready(encoder_forward(prep, x2, batch_tile=16))
    ref2 = encoder_forward_ref(params, x2)
    assert out2.shape == (48, ENCODING_DIM), out2.shape
    assert jnp.allclose(out2, ref2, atol=1.5e-2, rtol=2e-2), \
        float(jnp.max(jnp.abs(out2 - ref2)))

    print("KERNEL_OK")
</pallas_src>

<mosaic_0001>
module attributes {stable_mosaic.version = 11 : i64} {
  func.func @_encoder_kernel(%arg0: i32, %arg1: memref<128x256xbf16, #tpu.memory_space<vmem>>, %arg2: memref<256x1024xbf16, #tpu.memory_space<vmem>>, %arg3: memref<1x1024xf32, #tpu.memory_space<vmem>>, %arg4: memref<1024x128xbf16, #tpu.memory_space<vmem>>, %arg5: memref<1x128xf32, #tpu.memory_space<vmem>>, %arg6: memref<2048x512xbf16, #tpu.memory_space<vmem>>, %arg7: memref<1x512xf32, #tpu.memory_space<vmem>>, %arg8: memref<512x128xbf16, #tpu.memory_space<vmem>>, %arg9: memref<1x128xf32, #tpu.memory_space<vmem>>, %arg10: memref<8x128xf32, #tpu.memory_space<vmem>>, %arg11: memref<8x2048xbf16, #tpu.memory_space<vmem>>) attributes {dimension_semantics = [#tpu.dimension_semantics<parallel>], iteration_bounds = array<i64: 2>, scalar_prefetch = 0 : i64, scratch_operands = 1 : i64, tpu.core_type = #tpu.core_type<tc>, window_params = [{transform_indices = @transform_0, window_bounds = array<i64: 128, 256>}, {pipeline_mode = #tpu.pipeline_mode<synchronous>, transform_indices = @transform_1, window_bounds = array<i64: 256, 1024>}, {pipeline_mode = #tpu.pipeline_mode<synchronous>, transform_indices = @transform_2, window_bounds = array<i64: 1, 1024>}, {pipeline_mode = #tpu.pipeline_mode<synchronous>, transform_indices = @transform_3, window_bounds = array<i64: 1024, 128>}, {pipeline_mode = #tpu.pipeline_mode<synchronous>, transform_indices = @transform_4, window_bounds = array<i64: 1, 128>}, {pipeline_mode = #tpu.pipeline_mode<synchronous>, transform_indices = @transform_5, window_bounds = array<i64: 2048, 512>}, {pipeline_mode = #tpu.pipeline_mode<synchronous>, transform_indices = @transform_6, window_bounds = array<i64: 1, 512>}, {pipeline_mode = #tpu.pipeline_mode<synchronous>, transform_indices = @transform_7, window_bounds = array<i64: 512, 128>}, {pipeline_mode = #tpu.pipeline_mode<synchronous>, transform_indices = @transform_8, window_bounds = array<i64: 1, 128>}, {transform_indices = @transform_9, window_bounds = array<i64: 8, 128>}]} {
    %c0 = arith.constant 0 : index
    %c0_0 = arith.constant 0 : index
    %0 = vector.load %arg1[%c0, %c0_0] : memref<128x256xbf16, #tpu.memory_space<vmem>>, vector<128x256xbf16>
    %c0_1 = arith.constant 0 : index
    %c0_2 = arith.constant 0 : index
    %1 = vector.load %arg2[%c0_1, %c0_2] : memref<256x1024xbf16, #tpu.memory_space<vmem>>, vector<256x1024xbf16>
    %cst = arith.constant dense<0.000000e+00> : vector<128x1024xf32>
    %2 = tpu.matmul %0, %1, %cst {dimension_numbers = #tpu.dot_dimension_numbers<[1], [0], [0], [1], [0, 0, 1, 1], [], []>} : vector<128x256xbf16>, vector<256x1024xbf16>, vector<128x1024xf32> -> vector<128x1024xf32>
    %c0_3 = arith.constant 0 : index
    %c0_4 = arith.constant 0 : index
    %3 = vector.load %arg3[%c0_3, %c0_4] : memref<1x1024xf32, #tpu.memory_space<vmem>>, vector<1x1024xf32>
    %4 = vector.broadcast %3 : vector<1x1024xf32> to vector<128x1024xf32>
    %5 = arith.addf %2, %4 : vector<128x1024xf32>
    %cst_5 = arith.constant 0.000000e+00 : f32
    %6 = vector.broadcast %cst_5 : f32 to vector<128x1024xf32>
    %7 = arith.maximumf %5, %6 : vector<128x1024xf32>
    %8 = arith.truncf %7 : vector<128x1024xf32> to vector<128x1024xbf16>
    %c0_6 = arith.constant 0 : index
    %c0_7 = arith.constant 0 : index
    %9 = vector.load %arg4[%c0_6, %c0_7] : memref<1024x128xbf16, #tpu.memory_space<vmem>>, vector<1024x128xbf16>
    %cst_8 = arith.constant dense<0.000000e+00> : vector<128x128xf32>
    %10 = tpu.matmul %8, %9, %cst_8 {dimension_numbers = #tpu.dot_dimension_numbers<[1], [0], [0], [1], [0, 0, 1, 1], [], []>} : vector<128x1024xbf16>, vector<1024x128xbf16>, vector<128x128xf32> -> vector<128x128xf32>
    %c0_9 = arith.constant 0 : index
    %c0_10 = arith.constant 0 : index
    %11 = vector.load %arg5[%c0_9, %c0_10] : memref<1x128xf32, #tpu.memory_space<vmem>>, vector<1x128xf32>
    %12 = vector.broadcast %11 : vector<1x128xf32> to vector<128x128xf32>
    %13 = arith.addf %10, %12 : vector<128x128xf32>
    %cst_11 = arith.constant 0.000000e+00 : f32
    %14 = vector.broadcast %cst_11 : f32 to vector<128x128xf32>
    %15 = arith.maximumf %13, %14 : vector<128x128xf32>
    %16 = arith.truncf %15 : vector<128x128xf32> to vector<128x128xbf16>
    %17 = vector.extract_strided_slice %16 {offsets = [0, 0], sizes = [8, 128], strides = [1, 1]} : vector<128x128xbf16> to vector<8x128xbf16>
    %c0_12 = arith.constant 0 : index
    %c0_13 = arith.constant 0 : index
    %18 = vector.load %arg11[%c0_12, %c0_13] : memref<8x2048xbf16, #tpu.memory_space<vmem>>, vector<8x128xbf16>
    tpu.vector_store %arg11[%c0_12, %c0_13], %17 {strides = array<i32>} : memref<8x2048xbf16, #tpu.memory_space<vmem>>, vector<8x128xbf16>,
    %19 = vector.extract_strided_slice %16 {offsets = [8, 0], sizes = [8, 128], strides = [1, 1]} : vector<128x128xbf16> to vector<8x128xbf16>
    %c0_14 = arith.constant 0 : index
    %c128 = arith.constant 128 : index
    %20 = vector.load %arg11[%c0_14, %c128] : memref<8x2048xbf16, #tpu.memory_space<vmem>>, vector<8x128xbf16>
    tpu.vector_store %arg11[%c0_14, %c128], %19 {strides = array<i32>} : memref<8x2048xbf16, #tpu.memory_space<vmem>>, vector<8x128xbf16>,
    %21 = vector.extract_strided_slice %16 {offsets = [16, 0], sizes = [8, 128], strides = [1, 1]} : vector<128x128xbf16> to vector<8x128xbf16>
    %c0_15 = arith.constant 0 : index
    %c256 = arith.constant 256 : index
    %22 = vector.load %arg11[%c0_15, %c256] : memref<8x2048xbf16, #tpu.memory_space<vmem>>, vector<8x128xbf16>
    tpu.vector_store %arg11[%c0_15, %c256], %21 {strides = array<i32>} : memref<8x2048xbf16, #tpu.memory_space<vmem>>, vector<8x128xbf16>,
    %23 = vector.extract_strided_slice %16 {offsets = [24, 0], sizes = [8, 128], strides = [1, 1]} : vector<128x128xbf16> to vector<8x128xbf16>
    %c0_16 = arith.constant 0 : index
    %c384 = arith.constant 384 : index
    %24 = vector.load %arg11[%c0_16, %c384] : memref<8x2048xbf16, #tpu.memory_space<vmem>>, vector<8x128xbf16>
    tpu.vector_store %arg11[%c0_16, %c384], %23 {strides = array<i32>} : memref<8x2048xbf16, #tpu.memory_space<vmem>>, vector<8x128xbf16>,
    %25 = vector.extract_strided_slice %16 {offsets = [32, 0], sizes = [8, 128], strides = [1, 1]} : vector<128x128xbf16> to vector<8x128xbf16>
    %c0_17 = arith.constant 0 : index
    %c512 = arith.constant 512 : index
    %26 = vector.load %arg11[%c0_17, %c512] : memref<8x2048xbf16, #tpu.memory_space<vmem>>, vector<8x128xbf16>
    tpu.vector_store %arg11[%c0_17, %c512], %25 {strides = array<i32>} : memref<8x2048xbf16, #tpu.memory_space<vmem>>, vector<8x128xbf16>,
    %27 = vector.extract_strided_slice %16 {offsets = [40, 0], sizes = [8, 128], strides = [1, 1]} : vector<128x128xbf16> to vector<8x128xbf16>
    %c0_18 = arith.constant 0 : index
    %c640 = arith.constant 640 : index
    %28 = vector.load %arg11[%c0_18, %c640] : memref<8x2048xbf16, #tpu.memory_space<vmem>>, vector<8x128xbf16>
    tpu.vector_store %arg11[%c0_18, %c640], %27 {strides = array<i32>} : memref<8x2048xbf16, #tpu.memory_space<vmem>>, vector<8x128xbf16>,
    %29 = vector.extract_strided_slice %16 {offsets = [48, 0], sizes = [8, 128], strides = [1, 1]} : vector<128x128xbf16> to vector<8x128xbf16>
    %c0_19 = arith.constant 0 : index
    %c768 = arith.constant 768 : index
    %30 = vector.load %arg11[%c0_19, %c768] : memref<8x2048xbf16, #tpu.memory_space<vmem>>, vector<8x128xbf16>
    tpu.vector_store %arg11[%c0_19, %c768], %29 {strides = array<i32>} : memref<8x2048xbf16, #tpu.memory_space<vmem>>, vector<8x128xbf16>,
    %31 = vector.extract_strided_slice %16 {offsets = [56, 0], sizes = [8, 128], strides = [1, 1]} : vector<128x128xbf16> to vector<8x128xbf16>
    %c0_20 = arith.constant 0 : index
    %c896 = arith.constant 896 : index
    %32 = vector.load %arg11[%c0_20, %c896] : memref<8x2048xbf16, #tpu.memory_space<vmem>>, vector<8x128xbf16>
    tpu.vector_store %arg11[%c0_20, %c896], %31 {strides = array<i32>} : memref<8x2048xbf16, #tpu.memory_space<vmem>>, vector<8x128xbf16>,
    %33 = vector.extract_strided_slice %16 {offsets = [64, 0], sizes = [8, 128], strides = [1, 1]} : vector<128x128xbf16> to vector<8x128xbf16>
    %c0_21 = arith.constant 0 : index
    %c1024 = arith.constant 1024 : index
    %34 = vector.load %arg11[%c0_21, %c1024] : memref<8x2048xbf16, #tpu.memory_space<vmem>>, vector<8x128xbf16>
    tpu.vector_store %arg11[%c0_21, %c1024], %33 {strides = array<i32>} : memref<8x2048xbf16, #tpu.memory_space<vmem>>, vector<8x128xbf16>,
    %35 = vector.extract_strided_slice %16 {offsets = [72, 0], sizes = [8, 128], strides = [1, 1]} : vector<128x128xbf16> to vector<8x128xbf16>
    %c0_22 = arith.constant 0 : index
    %c1152 = arith.constant 1152 : index
    %36 = vector.load %arg11[%c0_22, %c1152] : memref<8x2048xbf16, #tpu.memory_space<vmem>>, vector<8x128xbf16>
    tpu.vector_store %arg11[%c0_22, %c1152], %35 {strides = array<i32>} : memref<8x2048xbf16, #tpu.memory_space<vmem>>, vector<8x128xbf16>,
    %37 = vector.extract_strided_slice %16 {offsets = [80, 0], sizes = [8, 128], strides = [1, 1]} : vector<128x128xbf16> to vector<8x128xbf16>
    %c0_23 = arith.constant 0 : index
    %c1280 = arith.constant 1280 : index
    %38 = vector.load %arg11[%c0_23, %c1280] : memref<8x2048xbf16, #tpu.memory_space<vmem>>, vector<8x128xbf16>
    tpu.vector_store %arg11[%c0_23, %c1280], %37 {strides = array<i32>} : memref<8x2048xbf16, #tpu.memory_space<vmem>>, vector<8x128xbf16>,
    %39 = vector.extract_strided_slice %16 {offsets = [88, 0], sizes = [8, 128], strides = [1, 1]} : vector<128x128xbf16> to vector<8x128xbf16>
    %c0_24 = arith.constant 0 : index
    %c1408 = arith.constant 1408 : index
    %40 = vector.load %arg11[%c0_24, %c1408] : memref<8x2048xbf16, #tpu.memory_space<vmem>>, vector<8x128xbf16>
    tpu.vector_store %arg11[%c0_24, %c1408], %39 {strides = array<i32>} : memref<8x2048xbf16, #tpu.memory_space<vmem>>, vector<8x128xbf16>,
    %41 = vector.extract_strided_slice %16 {offsets = [96, 0], sizes = [8, 128], strides = [1, 1]} : vector<128x128xbf16> to vector<8x128xbf16>
    %c0_25 = arith.constant 0 : index
    %c1536 = arith.constant 1536 : index
    %42 = vector.load %arg11[%c0_25, %c1536] : memref<8x2048xbf16, #tpu.memory_space<vmem>>, vector<8x128xbf16>
    tpu.vector_store %arg11[%c0_25, %c1536], %41 {strides = array<i32>} : memref<8x2048xbf16, #tpu.memory_space<vmem>>, vector<8x128xbf16>,
    %43 = vector.extract_strided_slice %16 {offsets = [104, 0], sizes = [8, 128], strides = [1, 1]} : vector<128x128xbf16> to vector<8x128xbf16>
    %c0_26 = arith.constant 0 : index
    %c1664 = arith.constant 1664 : index
    %44 = vector.load %arg11[%c0_26, %c1664] : memref<8x2048xbf16, #tpu.memory_space<vmem>>, vector<8x128xbf16>
    tpu.vector_store %arg11[%c0_26, %c1664], %43 {strides = array<i32>} : memref<8x2048xbf16, #tpu.memory_space<vmem>>, vector<8x128xbf16>,
    %45 = vector.extract_strided_slice %16 {offsets = [112, 0], sizes = [8, 128], strides = [1, 1]} : vector<128x128xbf16> to vector<8x128xbf16>
    %c0_27 = arith.constant 0 : index
    %c1792 = arith.constant 1792 : index
    %46 = vector.load %arg11[%c0_27, %c1792] : memref<8x2048xbf16, #tpu.memory_space<vmem>>, vector<8x128xbf16>
    tpu.vector_store %arg11[%c0_27, %c1792], %45 {strides = array<i32>} : memref<8x2048xbf16, #tpu.memory_space<vmem>>, vector<8x128xbf16>,
    %47 = vector.extract_strided_slice %16 {offsets = [120, 0], sizes = [8, 128], strides = [1, 1]} : vector<128x128xbf16> to vector<8x128xbf16>
    %c0_28 = arith.constant 0 : index
    %c1920 = arith.constant 1920 : index
    %48 = vector.load %arg11[%c0_28, %c1920] : memref<8x2048xbf16, #tpu.memory_space<vmem>>, vector<8x128xbf16>
    tpu.vector_store %arg11[%c0_28, %c1920], %47 {strides = array<i32>} : memref<8x2048xbf16, #tpu.memory_space<vmem>>, vector<8x128xbf16>,
    %c0_29 = arith.constant 0 : index
    %c0_30 = arith.constant 0 : index
    %49 = vector.load %arg11[%c0_29, %c0_30] : memref<8x2048xbf16, #tpu.memory_space<vmem>>, vector<8x2048xbf16>
    %c0_31 = arith.constant 0 : index
    %c0_32 = arith.constant 0 : index
    %50 = vector.load %arg6[%c0_31, %c0_32] : memref<2048x512xbf16, #tpu.memory_space<vmem>>, vector<2048x512xbf16>
    %cst_33 = arith.constant dense<0.000000e+00> : vector<8x512xf32>
    %51 = tpu.matmul %49, %50, %cst_33 {dimension_numbers = #tpu.dot_dimension_numbers<[1], [0], [0], [1], [0, 0, 1, 1], [], []>} : vector<8x2048xbf16>, vector<2048x512xbf16>, vector<8x512xf32> -> vector<8x512xf32>
    %c0_34 = arith.constant 0 : index
    %c0_35 = arith.constant 0 : index
    %52 = vector.load %arg7[%c0_34, %c0_35] : memref<1x512xf32, #tpu.memory_space<vmem>>, vector<1x512xf32>
    %53 = vector.broadcast %52 : vector<1x512xf32> to vector<8x512xf32>
    %54 = arith.addf %51, %53 : vector<8x512xf32>
    %cst_36 = arith.constant 0.000000e+00 : f32
    %55 = vector.broadcast %cst_36 : f32 to vector<8x512xf32>
    %56 = arith.maximumf %54, %55 : vector<8x512xf32>
    %57 = arith.truncf %56 : vector<8x512xf32> to vector<8x512xbf16>
    %c0_37 = arith.constant 0 : index
    %c0_38 = arith.constant 0 : index
    %58 = vector.load %arg8[%c0_37, %c0_38] : memref<512x128xbf16, #tpu.memory_space<vmem>>, vector<512x128xbf16>
    %cst_39 = arith.constant dense<0.000000e+00> : vector<8x128xf32>
    %59 = tpu.matmul %57, %58, %cst_39 {dimension_numbers = #tpu.dot_dimension_numbers<[1], [0], [0], [1], [0, 0, 1, 1], [], []>} : vector<8x512xbf16>, vector<512x128xbf16>, vector<8x128xf32> -> vector<8x128xf32>
    %c0_40 = arith.constant 0 : index
    %c0_41 = arith.constant 0 : index
    %60 = vector.load %arg9[%c0_40, %c0_41] : memref<1x128xf32, #tpu.memory_space<vmem>>, vector<1x128xf32>
    %61 = vector.broadcast %60 : vector<1x128xf32> to vector<8x128xf32>
    %62 = arith.addf %59, %61 : vector<8x128xf32>
    %c0_42 = arith.constant 0 : index
    %c0_43 = arith.constant 0 : index
    %63 = vector.load %arg10[%c0_42, %c0_43] : memref<8x128xf32, #tpu.memory_space<vmem>>, vector<8x128xf32>
    tpu.vector_store %arg10[%c0_42, %c0_43], %62 {strides = array<i32>} : memref<8x128xf32, #tpu.memory_space<vmem>>, vector<8x128xf32>,
    return
  }
  func.func @transform_0(%arg0: i32) -> (i32, i32) {
    %c0_i32 = arith.constant 0 : i32
    %c0_i32_0 = arith.constant 0 : i32
    return %arg0, %c0_i32 : i32, i32
  }
  func.func @transform_1(%arg0: i32) -> (i32, i32) {
    %c0_i32 = arith.constant 0 : i32
    %c0_i32_0 = arith.constant 0 : i32
    %c0_i32_1 = arith.constant 0 : i32
    return %c0_i32, %c0_i32_0 : i32, i32
  }
  func.func @transform_2(%arg0: i32) -> (i32, i32) {
    %c0_i32 = arith.constant 0 : i32
    %c0_i32_0 = arith.constant 0 : i32
    %c0_i32_1 = arith.constant 0 : i32
    return %c0_i32, %c0_i32_0 : i32, i32
  }
  func.func @transform_3(%arg0: i32) -> (i32, i32) {
    %c0_i32 = arith.constant 0 : i32
    %c0_i32_0 = arith.constant 0 : i32
    %c0_i32_1 = arith.constant 0 : i32
    return %c0_i32, %c0_i32_0 : i32, i32
  }
  func.func @transform_4(%arg0: i32) -> (i32, i32) {
    %c0_i32 = arith.constant 0 : i32
    %c0_i32_0 = arith.constant 0 : i32
    %c0_i32_1 = arith.constant 0 : i32
    return %c0_i32, %c0_i32_0 : i32, i32
  }
  func.func @transform_5(%arg0: i32) -> (i32, i32) {
    %c0_i32 = arith.constant 0 : i32
    %c0_i32_0 = arith.constant 0 : i32
    %c0_i32_1 = arith.constant 0 : i32
    return %c0_i32, %c0_i32_0 : i32, i32
  }
  func.func @transform_6(%arg0: i32) -> (i32, i32) {
    %c0_i32 = arith.constant 0 : i32
    %c0_i32_0 = arith.constant 0 : i32
    %c0_i32_1 = arith.constant 0 : i32
    return %c0_i32, %c0_i32_0 : i32, i32
  }
  func.func @transform_7(%arg0: i32) -> (i32, i32) {
    %c0_i32 = arith.constant 0 : i32
    %c0_i32_0 = arith.constant 0 : i32
    %c0_i32_1 = arith.constant 0 : i32
    return %c0_i32, %c0_i32_0 : i32, i32
  }
  func.func @transform_8(%arg0: i32) -> (i32, i32) {
    %c0_i32 = arith.constant 0 : i32
    %c0_i32_0 = arith.constant 0 : i32
    %c0_i32_1 = arith.constant 0 : i32
    return %c0_i32, %c0_i32_0 : i32, i32
  }
  func.func @transform_9(%arg0: i32) -> (i32, i32) {
    %c0_i32 = arith.constant 0 : i32
    %c0_i32_0 = arith.constant 0 : i32
    return %arg0, %c0_i32 : i32, i32
  }
}

</mosaic_0001>

<llo_original>
// kernel: encoder_forward.1
$region0: #{encoder_forward.1}
  #allocation0 [shape = 'u32[]', space=smem, size = 0x4, offset = 0x4, fixed_abs, tag = 'smem constant byte address 0x4 - core index']
  #allocation1 [shape = 'u32[144,128]{1,0:T(1,128)}', space=vmem, size = 0x12000, scoped, tag = 'internal scratch']
  #allocation2 [shape = 'bf16[8,2048]{1,0:T(8,128)(2,1)}', space=vmem, size = 0x8000, scoped, tag = 'scratch operand']
  %s0 = inlined_call_operand.vmem [shape: bf16[256,256], index: 0, kind: input, shape index: {}]
  %s1 = inlined_call_operand.vmem [shape: bf16[256,1024], index: 1, kind: input, shape index: {}]
  %s2 = inlined_call_operand.vmem [shape: f32[1,1024], index: 2, kind: input, shape index: {}]
  %s3 = inlined_call_operand.vmem [shape: bf16[1024,128], index: 3, kind: input, shape index: {}]
  %s4 = inlined_call_operand.vmem [shape: f32[1,128], index: 4, kind: input, shape index: {}]
  %s5 = inlined_call_operand.vmem [shape: bf16[2048,512], index: 5, kind: input, shape index: {}]
  %s6 = inlined_call_operand.vmem [shape: f32[1,512], index: 6, kind: input, shape index: {}]
  %s7 = inlined_call_operand.vmem [shape: bf16[512,128], index: 7, kind: input, shape index: {}]
  %s8 = inlined_call_operand.vmem [shape: f32[1,128], index: 8, kind: input, shape index: {}]
  %s9 = inlined_call_operand.hbm [shape: f32[16,128], index: 9, kind: output, shape index: {}]
  %s10 = sld [smem:[#allocation0]]
  $region69: #{encoder_forward.1} parent=0
    _
  %s12 = ssub.s32 1, %s10
  %s13 = scalar_select 0, %s12, %s10
  $region1: #{encoder_forward.1} parent=0
    #allocation3 [shape = 'u8[8192]{0}', space=vmem, size = 0x2000, scoped, tag = 'output window, operand 0']
    #allocation4 [shape = 's32[2]{0}', space=sflag, size = 0x8, scoped, tag = 'scoped memory for encoder_forward.1']
    %14 = vsyncpa [#allocation4], 0
    %s15 = scalar_lea.sflag [#allocation4], 1
    %16 = vsyncpa %s15, 0
    loop: start=0, step=1, limit=4
    $region2: #{encoder_forward.1} parent=1 // loop_pre_header
      _
    $region3: #{encoder_forward.1} parent=1 // loop_header
      %s18 = sphi 0, %s22
      %p19 = scmp.ge.s32.totalorder %s18, 4
      %s28 = sphi 0, %s30
      %s31 = sphi 0, %s28
      %s32 = sphi 0, %s31
      %s48 = sphi 0, %s32
      %s52 = sphi 0, %s52
      %s54 = sphi 0, %s52
      %s55 = sphi 0, %s54
      %s69 = sphi 0, %s55
      %s73 = sphi 0, %s73
      %s75 = sphi 0, %s73
      %s76 = sphi 0, %s75
      %s90 = sphi 0, %s76
      %s94 = sphi 0, %s94
      %s96 = sphi 0, %s94
      %s97 = sphi 0, %s96
      %s111 = sphi 0, %s97
      %s115 = sphi 0, %s115
      %s117 = sphi 0, %s115
      %s118 = sphi 0, %s117
      %s132 = sphi 0, %s118
      %s136 = sphi 0, %s136
      %s138 = sphi 0, %s136
      %s139 = sphi 0, %s138
      %s153 = sphi 0, %s139
      %s157 = sphi 0, %s157
      %s159 = sphi 0, %s157
      %s160 = sphi 0, %s159
      %s174 = sphi 0, %s160
      %s178 = sphi 0, %s178
      %s180 = sphi 0, %s178
      %s181 = sphi 0, %s180
      %s195 = sphi 0, %s181
      %s199 = sphi 0, %s199
      %s201 = sphi 0, %s199
      %s202 = sphi 0, %s201
      %s216 = sphi 0, %s202
      %s222 = sphi 0, %s224
      %s225 = sphi 0, %s222
      %s226 = sphi 0, %s225
      %s242 = sphi 0, %s226
    $region4: #{encoder_forward.1} parent=1 // loop_header_branch
      %21 = sbr.rel (%p19) target = $region8
    $region5: #{encoder_forward.1} parent=1 // loop_body
      %s23 = ssub.s32 %s18, 1
      %s24 = ssub.s32 %s18, 2
      %s25 = sadd.s32 %s18, 1
      %s26 = ssub.s32 %s18, %s25
      %p27 = scmp.eq.s32.totalorder %s26, 0
      %s29 = sadd.s32 %s28, 1
      %s30 = scalar_select %p27, %s28, %s29
      %p33 = pneg %p27
      %p34 = scmp.eq.s32.totalorder %s18, 1
      %p35 = por %p33, %p34
      %p36 = scmp.ne.s32.totalorder %s28, %s31
      %p37 = scmp.eq.s32.totalorder %s18, 0
      %p38 = por %p36, %p37
      %p39 = scmp.ne.s32.totalorder %s28, %s31
      %p40 = scmp.eq.s32.totalorder %s23, 1
      %p41 = por %p39, %p40
      %p42 = scmp.ne.s32.totalorder %s31, %s32
      %p43 = scmp.eq.s32.totalorder %s23, 0
      %p44 = por %p42, %p43
      %p45 = scmp.ne.s32.totalorder %s31, %s32
      %p46 = scmp.eq.s32.totalorder %s24, 1
      %p47 = por %p45, %p46
      %p49 = scmp.ne.s32.totalorder %s32, %s48
      %p50 = scmp.eq.s32.totalorder %s24, 0
      %p51 = por %p49, %p50
      %s53 = sadd.s32 %s52, 1
      %p56 = scmp.eq.s32.totalorder %s18, 1
      %p57 = scmp.ne.s32.totalorder %s52, %s54
      %p58 = scmp.eq.s32.totalorder %s18, 0
      %p59 = por %p57, %p58
      %p60 = scmp.ne.s32.totalorder %s52, %s54
      %p61 = scmp.eq.s32.totalorder %s23, 1
      %p62 = por %p60, %p61
      %p63 = scmp.ne.s32.totalorder %s54, %s55
      %p64 = scmp.eq.s32.totalorder %s23, 0
      %p65 = por %p63, %p64
      %p66 = scmp.ne.s32.totalorder %s54, %s55
      %p67 = scmp.eq.s32.totalorder %s24, 1
      %p68 = por %p66, %p67
      %p70 = scmp.ne.s32.totalorder %s55, %s69
      %p71 = scmp.eq.s32.totalorder %s24, 0
      %p72 = por %p70, %p71
      %s74 = sadd.s32 %s73, 1
      %p77 = scmp.eq.s32.totalorder %s18, 1
      %p78 = scmp.ne.s32.totalorder %s73, %s75
      %p79 = scmp.eq.s32.totalorder %s18, 0
      %p80 = por %p78, %p79
      %p81 = scmp.ne.s32.totalorder %s73, %s75
      %p82 = scmp.eq.s32.totalorder %s23, 1
      %p83 = por %p81, %p82
      %p84 = scmp.ne.s32.totalorder %s75, %s76
      %p85 = scmp.eq.s32.totalorder %s23, 0
      %p86 = por %p84, %p85
      %p87 = scmp.ne.s32.totalorder %s75, %s76
      %p88 = scmp.eq.s32.totalorder %s24, 1
      %p89 = por %p87, %p88
      %p91 = scmp.ne.s32.totalorder %s76, %s90
      %p92 = scmp.eq.s32.totalorder %s24, 0
      %p93 = por %p91, %p92
      %s95 = sadd.s32 %s94, 1
      %p98 = scmp.eq.s32.totalorder %s18, 1
      %p99 = scmp.ne.s32.totalorder %s94, %s96
      %p100 = scmp.eq.s32.totalorder %s18, 0
      %p101 = por %p99, %p100
      %p102 = scmp.ne.s32.totalorder %s94, %s96
      %p103 = scmp.eq.s32.totalorder %s23, 1
      %p104 = por %p102, %p103
      %p105 = scmp.ne.s32.totalorder %s96, %s97
      %p106 = scmp.eq.s32.totalorder %s23, 0
      %p107 = por %p105, %p106
      %p108 = scmp.ne.s32.totalorder %s96, %s97
      %p109 = scmp.eq.s32.totalorder %s24, 1
      %p110 = por %p108, %p109
      %p112 = scmp.ne.s32.totalorder %s97, %s111
      %p113 = scmp.eq.s32.totalorder %s24, 0
      %p114 = por %p112, %p113
      %s116 = sadd.s32 %s115, 1
      %p119 = scmp.eq.s32.totalorder %s18, 1
      %p120 = scmp.ne.s32.totalorder %s115, %s117
      %p121 = scmp.eq.s32.totalorder %s18, 0
      %p122 = por %p120, %p121
      %p123 = scmp.ne.s32.totalorder %s115, %s117
      %p124 = scmp.eq.s32.totalorder %s23, 1
      %p125 = por %p123, %p124
      %p126 = scmp.ne.s32.totalorder %s117, %s118
      %p127 = scmp.eq.s32.totalorder %s23, 0
      %p128 = por %p126, %p127
      %p129 = scmp.ne.s32.totalorder %s117, %s118
      %p130 = scmp.eq.s32.totalorder %s24, 1
      %p131 = por %p129, %p130
      %p133 = scmp.ne.s32.totalorder %s118, %s132
      %p134 = scmp.eq.s32.totalorder %s24, 0
      %p135 = por %p133, %p134
      %s137 = sadd.s32 %s136, 1
      %p140 = scmp.eq.s32.totalorder %s18, 1
      %p141 = scmp.ne.s32.totalorder %s136, %s138
      %p142 = scmp.eq.s32.totalorder %s18, 0
      %p143 = por %p141, %p142
      %p144 = scmp.ne.s32.totalorder %s136, %s138
      %p145 = scmp.eq.s32.totalorder %s23, 1
      %p146 = por %p144, %p145
      %p147 = scmp.ne.s32.totalorder %s138, %s139
      %p148 = scmp.eq.s32.totalorder %s23, 0
      %p149 = por %p147, %p148
      %p150 = scmp.ne.s32.totalorder %s138, %s139
      %p151 = scmp.eq.s32.totalorder %s24, 1
      %p152 = por %p150, %p151
      %p154 = scmp.ne.s32.totalorder %s139, %s153
      %p155 = scmp.eq.s32.totalorder %s24, 0
      %p156 = por %p154, %p155
      %s158 = sadd.s32 %s157, 1
      %p161 = scmp.eq.s32.totalorder %s18, 1
      %p162 = scmp.ne.s32.totalorder %s157, %s159
      %p163 = scmp.eq.s32.totalorder %s18, 0
      %p164 = por %p162, %p163
      %p165 = scmp.ne.s32.totalorder %s157, %s159
      %p166 = scmp.eq.s32.totalorder %s23, 1
      %p167 = por %p165, %p166
      %p168 = scmp.ne.s32.totalorder %s159, %s160
      %p169 = scmp.eq.s32.totalorder %s23, 0
      %p170 = por %p168, %p169
      %p171 = scmp.ne.s32.totalorder %s159, %s160
      %p172 = scmp.eq.s32.totalorder %s24, 1
      %p173 = por %p171, %p172
      %p175 = scmp.ne.s32.totalorder %s160, %s174
      %p176 = scmp.eq.s32.totalorder %s24, 0
      %p177 = por %p175, %p176
      %s179 = sadd.s32 %s178, 1
      %p182 = scmp.eq.s32.totalorder %s18, 1
      %p183 = scmp.ne.s32.totalorder %s178, %s180
      %p184 = scmp.eq.s32.totalorder %s18, 0
      %p185 = por %p183, %p184
      %p186 = scmp.ne.s32.totalorder %s178, %s180
      %p187 = scmp.eq.s32.totalorder %s23, 1
      %p188 = por %p186, %p187
      %p189 = scmp.ne.s32.totalorder %s180, %s181
      %p190 = scmp.eq.s32.totalorder %s23, 0
      %p191 = por %p189, %p190
      %p192 = scmp.ne.s32.totalorder %s180, %s181
      %p193 = scmp.eq.s32.totalorder %s24, 1
      %p194 = por %p192, %p193
      %p196 = scmp.ne.s32.totalorder %s181, %s195
      %p197 = scmp.eq.s32.totalorder %s24, 0
      %p198 = por %p196, %p197
      %s200 = sadd.s32 %s199, 1
      %p203 = scmp.eq.s32.totalorder %s18, 1
      %p204 = scmp.ne.s32.totalorder %s199, %s201
      %p205 = scmp.eq.s32.totalorder %s18, 0
      %p206 = por %p204, %p205
      %p207 = scmp.ne.s32.totalorder %s199, %s201
      %p208 = scmp.eq.s32.totalorder %s23, 1
      %p209 = por %p207, %p208
      %p210 = scmp.ne.s32.totalorder %s201, %s202
      %p211 = scmp.eq.s32.totalorder %s23, 0
      %p212 = por %p210, %p211
      %p213 = scmp.ne.s32.totalorder %s201, %s202
      %p214 = scmp.eq.s32.totalorder %s24, 1
      %p215 = por %p213, %p214
      %p217 = scmp.ne.s32.totalorder %s202, %s216
      %p218 = scmp.eq.s32.totalorder %s24, 0
      %p219 = por %p217, %p218
      %s220 = ssub.s32 %s18, %s25
      %p221 = scmp.eq.s32.totalorder %s220, 0
      %s223 = sadd.s32 %s222, 1
      %s224 = scalar_select %p221, %s222, %s223
      %p227 = pneg %p221
      %p228 = scmp.eq.s32.totalorder %s18, 1
      %p229 = por %p227, %p228
      %p230 = scmp.ne.s32.totalorder %s222, %s225
      %p231 = scmp.eq.s32.totalorder %s18, 0
      %p232 = por %p230, %p231
      %p233 = scmp.ne.s32.totalorder %s222, %s225
      %p234 = scmp.eq.s32.totalorder %s23, 1
      %p235 = por %p233, %p234
      %p236 = scmp.ne.s32.totalorder %s225, %s226
      %p237 = scmp.eq.s32.totalorder %s23, 0
      %p238 = por %p236, %p237
      %p239 = scmp.ne.s32.totalorder %s225, %s226
      %p240 = scmp.eq.s32.totalorder %s24, 1
      %p241 = por %p239, %p240
      %p243 = scmp.ne.s32.totalorder %s226, %s242
      %p244 = scmp.eq.s32.totalorder %s24, 0
      %p245 = por %p243, %p244
      %p246 = scmp.le.s32.totalorder 1, %s18
      %p247 = scmp.lt.s32.totalorder %s18, 3
      %p248 = pnand %p246, %p247
      %p249 = pneg %p248
      // Predicated region
      $region9: #{encoder_forward.1} parent=5 // pred_check
        _
      $region10: #{encoder_forward.1} parent=5 // pred_check_branch
        %251 = sbr.rel (%p248) target = $region12
      $region11: #{encoder_forward.1} parent=5 // pred_region
        %s252 = ssub.s32 %s18, 1
        // Predicated region
        $region13: #{encoder_forward.1} parent=11 // pred_check
          %p253 = pneg %p65
        $region14: #{encoder_forward.1} parent=11 // pred_check_branch
          %255 = sbr.rel (%p253) target = $region16
        $region15: #{encoder_forward.1} parent=11 // pred_region
          _
        $region16: #{encoder_forward.1} parent=11 // pred_fallthru
          _
        // Predicated region
        $region17: #{encoder_forward.1} parent=11 // pred_check
          %p256 = pneg %p86
        $region18: #{encoder_forward.1} parent=11 // pred_check_branch
          %258 = sbr.rel (%p256) target = $region20
        $region19: #{encoder_forward.1} parent=11 // pred_region
          _
        $region20: #{encoder_forward.1} parent=11 // pred_fallthru
          _
        // Predicated region
        $region21: #{encoder_forward.1} parent=11 // pred_check
          %p259 = pneg %p107
        $region22: #{encoder_forward.1} parent=11 // pred_check_branch
          %261 = sbr.rel (%p259) target = $region24
        $region23: #{encoder_forward.1} parent=11 // pred_region
          _
        $region24: #{encoder_forward.1} parent=11 // pred_fallthru
          _
        // Predicated region
        $region25: #{encoder_forward.1} parent=11 // pred_check
          %p262 = pneg %p128
        $region26: #{encoder_forward.1} parent=11 // pred_check_branch
          %264 = sbr.rel (%p262) target = $region28
        $region27: #{encoder_forward.1} parent=11 // pred_region
          _
        $region28: #{encoder_forward.1} parent=11 // pred_fallthru
          _
        // Predicated region
        $region29: #{encoder_forward.1} parent=11 // pred_check
          %p265 = pneg %p149
        $region30: #{encoder_forward.1} parent=11 // pred_check_branch
          %267 = sbr.rel (%p265) target = $region32
        $region31: #{encoder_forward.1} parent=11 // pred_region
          _
        $region32: #{encoder_forward.1} parent=11 // pred_fallthru
          _
        // Predicated region
        $region33: #{encoder_forward.1} parent=11 // pred_check
          %p268 = pneg %p170
        $region34: #{encoder_forward.1} parent=11 // pred_check_branch
          %270 = sbr.rel (%p268) target = $region36
        $region35: #{encoder_forward.1} parent=11 // pred_region
          _
        $region36: #{encoder_forward.1} parent=11 // pred_fallthru
          _
        // Predicated region
        $region37: #{encoder_forward.1} parent=11 // pred_check
          %p271 = pneg %p191
        $region38: #{encoder_forward.1} parent=11 // pred_check_branch
          %273 = sbr.rel (%p271) target = $region40
        $region39: #{encoder_forward.1} parent=11 // pred_region
          _
        $region40: #{encoder_forward.1} parent=11 // pred_fallthru
          _
        // Predicated region
        $region41: #{encoder_forward.1} parent=11 // pred_check
          %p274 = pneg %p212
        $region42: #{encoder_forward.1} parent=11 // pred_check_branch
          %276 = sbr.rel (%p274) target = $region44
        $region43: #{encoder_forward.1} parent=11 // pred_region
          _
        $region44: #{encoder_forward.1} parent=11 // pred_fallthru
          _
      $region12: #{encoder_forward.1} parent=5 // pred_fallthru
        _
      %p277 = scmp.lt.s32.totalorder %s18, 2
      // Predicated region
      $region45: #{encoder_forward.1} parent=5 // pred_check
        %p278 = pneg %p277
      $region46: #{encoder_forward.1} parent=5 // pred_check_branch
        %280 = sbr.rel (%p278) target = $region48
      $region47: #{encoder_forward.1} parent=5 // pred_region
        // Predicated region
        $region49: #{encoder_forward.1} parent=47 // pred_check
          %p281 = pneg %p38
        $region50: #{encoder_forward.1} parent=47 // pred_check_branch
          %283 = sbr.rel (%p281) target = $region52
        $region51: #{encoder_forward.1} parent=47 // pred_region
          %s284 = smul.u32 16, %s18
          %p285 = scmp.lt.s32.totalorder %s284, 31
          %s286 = scalar_select %p285, %s284, 31
          %s287 = smul.addr %s286, 2
          %s288 = smul.addr %s287, 4
          %s289 = scalar_lea.vmem %s0, %s288
          %s290 = smul.u32 16, %s18
        $region52: #{encoder_forward.1} parent=47 // pred_fallthru
          _
      $region48: #{encoder_forward.1} parent=5 // pred_fallthru
        _
      %p291 = scmp.le.s32.totalorder 1, %s18
      %p292 = scmp.lt.s32.totalorder %s18, 3
      %p293 = pnand %p291, %p292
      %p294 = pneg %p293
      // Predicated region
      $region53: #{encoder_forward.1} parent=5 // pred_check
        _
      $region54: #{encoder_forward.1} parent=5 // pred_check_branch
        %296 = sbr.rel (%p293) target = $region56
      $region55: #{encoder_forward.1} parent=5 // pred_region
        %s297 = ssub.s32 %s18, 1
        %s298 = smul.u32 16, %s23
        %p299 = scmp.lt.s32.totalorder %s298, 31
        %s300 = scalar_select %p299, %s298, 31
        %s301 = smul.addr %s300, 2
        %s302 = smul.addr %s301, 4
        %s303 = scalar_lea.vmem %s0, %s302
        %p304 = pneg %p44
        %p305 = pneg %p41
        %p306 = pneg %p65
        %p307 = pneg %p62
        %p308 = pneg %p86
        %p309 = pneg %p83
        %p310 = pneg %p107
        %p311 = pneg %p104
        %p312 = pneg %p128
        %p313 = pneg %p125
        %p314 = pneg %p149
        %p315 = pneg %p146
        %p316 = pneg %p170
        %p317 = pneg %p167
        %p318 = pneg %p191
        %p319 = pneg %p188
        %p320 = pneg %p212
        %p321 = pneg %p209
        %p322 = pneg %p238
        %p323 = pneg %p235
        %s324 = sand.u32 %s225, 1
        %s325 = scalar_lea.sflag [#allocation4], %s324
        %s326 = sand.u32 %s225, 1
        %s327 = smul.addr %s326, 8
        %s328 = scalar_lea.vmem [#allocation3], %s327
        %s329 = smul.u32 16, %s23
        %p330 = scmp.lt.s32.totalorder %s329, 31
        %s331 = scalar_select %p330, %s329, 31
        %s332 = smul.addr %s331, 2
        %s333 = smul.addr %s332, 4
        %s334 = scalar_lea.vmem %s0, %s333
        %s335 = smul.u32 16, %s23
        %v337 = vld [vmem:[%s334] sm:$0xff]
        %v338 = vld [vmem:[%s334 + $0x8] sm:$0xff]
        %v339 = vld [vmem:[%s334 + $0x10] sm:$0xff]
        %v340 = vld [vmem:[%s334 + $0x18] sm:$0xff]
        %v341 = vld [vmem:[%s334 + $0x20] sm:$0xff]
        %v342 = vld [vmem:[%s334 + $0x28] sm:$0xff]
        %v343 = vld [vmem:[%s334 + $0x30] sm:$0xff]
        %v344 = vld [vmem:[%s334 + $0x38] sm:$0xff]
        %v345 = vld [vmem:[%s334 + $0x40] sm:$0xff]
        %v346 = vld [vmem:[%s334 + $0x48] sm:$0xff]
        %v347 = vld [vmem:[%s334 + $0x50] sm:$0xff]
        %v348 = vld [vmem:[%s334 + $0x58] sm:$0xff]
        %v349 = vld [vmem:[%s334 + $0x60] sm:$0xff]
        %v350 = vld [vmem:[%s334 + $0x68] sm:$0xff]
        %v351 = vld [vmem:[%s334 + $0x70] sm:$0xff]
        %v352 = vld [vmem:[%s334 + $0x78] sm:$0xff]
        %v353 = vld [vmem:[%s1] sm:$0xff]
        %v354 = vld [vmem:[%s1 + $0x8] sm:$0xff]
        %v355 = vld [vmem:[%s1 + $0x10] sm:$0xff]
        %v356 = vld [vmem:[%s1 + $0x18] sm:$0xff]
        %v357 = vld [vmem:[%s1 + $0x20] sm:$0xff]
        %v358 = vld [vmem:[%s1 + $0x28] sm:$0xff]
        %v359 = vld [vmem:[%s1 + $0x30] sm:$0xff]
        %v360 = vld [vmem:[%s1 + $0x38] sm:$0xff]
        %v361 = vld [vmem:[%s1 + $0x40] sm:$0xff]
        %v362 = vld [vmem:[%s1 + $0x48] sm:$0xff]
        %v363 = vld [vmem:[%s1 + $0x50] sm:$0xff]
        %v364 = vld [vmem:[%s1 + $0x58] sm:$0xff]
        %v365 = vld [vmem:[%s1 + $0x60] sm:$0xff]
        %v366 = vld [vmem:[%s1 + $0x68] sm:$0xff]
        %v367 = vld [vmem:[%s1 + $0x70] sm:$0xff]
        %v368 = vld [vmem:[%s1 + $0x78] sm:$0xff]
        %v369 = vld [vmem:[%s1 + $0x80] sm:$0xff]
        %v370 = vld [vmem:[%s1 + $0x88] sm:$0xff]
        %v371 = vld [vmem:[%s1 + $0x90] sm:$0xff]
        %v372 = vld [vmem:[%s1 + $0x98] sm:$0xff]
        %v373 = vld [vmem:[%s1 + $0xa0] sm:$0xff]
        %v374 = vld [vmem:[%s1 + $0xa8] sm:$0xff]
        %v375 = vld [vmem:[%s1 + $0xb0] sm:$0xff]
        %v376 = vld [vmem:[%s1 + $0xb8] sm:$0xff]
        %v377 = vld [vmem:[%s1 + $0xc0] sm:$0xff]
        %v378 = vld [vmem:[%s1 + $0xc8] sm:$0xff]
        %v379 = vld [vmem:[%s1 + $0xd0] sm:$0xff]
        %v380 = vld [vmem:[%s1 + $0xd8] sm:$0xff]
        %v381 = vld [vmem:[%s1 + $0xe0] sm:$0xff]
        %v382 = vld [vmem:[%s1 + $0xe8] sm:$0xff]
        %v383 = vld [vmem:[%s1 + $0xf0] sm:$0xff]
        %v384 = vld [vmem:[%s1 + $0xf8] sm:$0xff]
        %v385 = vld [vmem:[%s1 + $0x100] sm:$0xff]
        %v386 = vld [vmem:[%s1 + $0x108] sm:$0xff]
        %v387 = vld [vmem:[%s1 + $0x110] sm:$0xff]
        %v388 = vld [vmem:[%s1 + $0x118] sm:$0xff]
        %v389 = vld [vmem:[%s1 + $0x120] sm:$0xff]
        %v390 = vld [vmem:[%s1 + $0x128] sm:$0xff]
        %v391 = vld [vmem:[%s1 + $0x130] sm:$0xff]
        %v392 = vld [vmem:[%s1 + $0x138] sm:$0xff]
        %v393 = vld [vmem:[%s1 + $0x140] sm:$0xff]
        %v394 = vld [vmem:[%s1 + $0x148] sm:$0xff]
        %v395 = vld [vmem:[%s1 + $0x150] sm:$0xff]
        %v396 = vld [vmem:[%s1 + $0x158] sm:$0xff]
        %v397 = vld [vmem:[%s1 + $0x160] sm:$0xff]
        %v398 = vld [vmem:[%s1 + $0x168] sm:$0xff]
        %v399 = vld [vmem:[%s1 + $0x170] sm:$0xff]
        %v400 = vld [vmem:[%s1 + $0x178] sm:$0xff]
        %v401 = vld [vmem:[%s1 + $0x180] sm:$0xff]
        %v402 = vld [vmem:[%s1 + $0x188] sm:$0xff]
        %v403 = vld [vmem:[%s1 + $0x190] sm:$0xff]
        %v404 = vld [vmem:[%s1 + $0x198] sm:$0xff]
        %v405 = vld [vmem:[%s1 + $0x1a0] sm:$0xff]
        %v406 = vld [vmem:[%s1 + $0x1a8] sm:$0xff]
        %v407 = vld [vmem:[%s1 + $0x1b0] sm:$0xff]
        %v408 = vld [vmem:[%s1 + $0x1b8] sm:$0xff]
        %v409 = vld [vmem:[%s1 + $0x1c0] sm:$0xff]
        %v410 = vld [vmem:[%s1 + $0x1c8] sm:$0xff]
        %v411 = vld [vmem:[%s1 + $0x1d0] sm:$0xff]
        %v412 = vld [vmem:[%s1 + $0x1d8] sm:$0xff]
        %v413 = vld [vmem:[%s1 + $0x1e0] sm:$0xff]
        %v414 = vld [vmem:[%s1 + $0x1e8] sm:$0xff]
        %v415 = vld [vmem:[%s1 + $0x1f0] sm:$0xff]
        %v416 = vld [vmem:[%s1 + $0x1f8] sm:$0xff]
        %v417 = vld [vmem:[%s1 + $0x200] sm:$0xff]
        %v418 = vld [vmem:[%s1 + $0x208] sm:$0xff]
        %v419 = vld [vmem:[%s1 + $0x210] sm:$0xff]
        %v420 = vld [vmem:[%s1 + $0x218] sm:$0xff]
        %v421 = vld [vmem:[%s1 + $0x220] sm:$0xff]
        %v422 = vld [vmem:[%s1 + $0x228] sm:$0xff]
        %v423 = vld [vmem:[%s1 + $0x230] sm:$0xff]
        %v424 = vld [vmem:[%s1 + $0x238] sm:$0xff]
        %v425 = vld [vmem:[%s1 + $0x240] sm:$0xff]
        %v426 = vld [vmem:[%s1 + $0x248] sm:$0xff]
        %v427 = vld [vmem:[%s1 + $0x250] sm:$0xff]
        %v428 = vld [vmem:[%s1 + $0x258] sm:$0xff]
        %v429 = vld [vmem:[%s1 + $0x260] sm:$0xff]
        %v430 = vld [vmem:[%s1 + $0x268] sm:$0xff]
        %v431 = vld [vmem:[%s1 + $0x270] sm:$0xff]
        %v432 = vld [vmem:[%s1 + $0x278] sm:$0xff]
        %v433 = vld [vmem:[%s1 + $0x280] sm:$0xff]
        %v434 = vld [vmem:[%s1 + $0x288] sm:$0xff]
        %v435 = vld [vmem:[%s1 + $0x290] sm:$0xff]
        %v436 = vld [vmem:[%s1 + $0x298] sm:$0xff]
        %v437 = vld [vmem:[%s1 + $0x2a0] sm:$0xff]
        %v438 = vld [vmem:[%s1 + $0x2a8] sm:$0xff]
        %v439 = vld [vmem:[%s1 + $0x2b0] sm:$0xff]
        %v440 = vld [vmem:[%s1 + $0x2b8] sm:$0xff]
        %v441 = vld [vmem:[%s1 + $0x2c0] sm:$0xff]
        %v442 = vld [vmem:[%s1 + $0x2c8] sm:$0xff]
        %v443 = vld [vmem:[%s1 + $0x2d0] sm:$0xff]
        %v444 = vld [vmem:[%s1 + $0x2d8] sm:$0xff]
        %v445 = vld [vmem:[%s1 + $0x2e0] sm:$0xff]
        %v446 = vld [vmem:[%s1 + $0x2e8] sm:$0xff]
        %v447 = vld [vmem:[%s1 + $0x2f0] sm:$0xff]
        %v448 = vld [vmem:[%s1 + $0x2f8] sm:$0xff]
        %v449 = vld [vmem:[%s1 + $0x300] sm:$0xff]
        %v450 = vld [vmem:[%s1 + $0x308] sm:$0xff]
        %v451 = vld [vmem:[%s1 + $0x310] sm:$0xff]
        %v452 = vld [vmem:[%s1 + $0x318] sm:$0xff]
        %v453 = vld [vmem:[%s1 + $0x320] sm:$0xff]
        %v454 = vld [vmem:[%s1 + $0x328] sm:$0xff]
        %v455 = vld [vmem:[%s1 + $0x330] sm:$0xff]
        %v456 = vld [vmem:[%s1 + $0x338] sm:$0xff]
        %v457 = vld [vmem:[%s1 + $0x340] sm:$0xff]
        %v458 = vld [vmem:[%s1 + $0x348] sm:$0xff]
        %v459 = vld [vmem:[%s1 + $0x350] sm:$0xff]
        %v460 = vld [vmem:[%s1 + $0x358] sm:$0xff]
        %v461 = vld [vmem:[%s1 + $0x360] sm:$0xff]
        %v462 = vld [vmem:[%s1 + $0x368] sm:$0xff]
        %v463 = vld [vmem:[%s1 + $0x370] sm:$0xff]
        %v464 = vld [vmem:[%s1 + $0x378] sm:$0xff]
        %v465 = vld [vmem:[%s1 + $0x380] sm:$0xff]
        %v466 = vld [vmem:[%s1 + $0x388] sm:$0xff]
        %v467 = vld [vmem:[%s1 + $0x390] sm:$0xff]
        %v468 = vld [vmem:[%s1 + $0x398] sm:$0xff]
        %v469 = vld [vmem:[%s1 + $0x3a0] sm:$0xff]
        %v470 = vld [vmem:[%s1 + $0x3a8] sm:$0xff]
        %v471 = vld [vmem:[%s1 + $0x3b0] sm:$0xff]
        %v472 = vld [vmem:[%s1 + $0x3b8] sm:$0xff]
        %v473 = vld [vmem:[%s1 + $0x3c0] sm:$0xff]
        %v474 = vld [vmem:[%s1 + $0x3c8] sm:$0xff]
        %v475 = vld [vmem:[%s1 + $0x3d0] sm:$0xff]
        %v476 = vld [vmem:[%s1 + $0x3d8] sm:$0xff]
        %v477 = vld [vmem:[%s1 + $0x3e0] sm:$0xff]
        %v478 = vld [vmem:[%s1 + $0x3e8] sm:$0xff]
        %v479 = vld [vmem:[%s1 + $0x3f0] sm:$0xff]
        %v480 = vld [vmem:[%s1 + $0x3f8] sm:$0xff]
        %v481 = vld [vmem:[%s2] sm:$0xff]
        %v483 = vlaneseq
        %v484 = vshrl.u32 %v483, 7
        %v485 = vsub.s32 0, %v484
        %v486 = vrot.slane %v481, %v485
        %v487 = vlaneseq
        %v488 = vshrl.u32 %v487, 7
        %v489 = vsub.s32 1, %v488
        %v490 = vrot.slane %v481, %v489
        %v491 = vlaneseq
        %v492 = vshrl.u32 %v491, 7
        %v493 = vsub.s32 2, %v492
        %v494 = vrot.slane %v481, %v493
        %v495 = vlaneseq
        %v496 = vshrl.u32 %v495, 7
        %v497 = vsub.s32 3, %v496
        %v498 = vrot.slane %v481, %v497
        %v499 = vlaneseq
        %v500 = vshrl.u32 %v499, 7
        %v501 = vsub.s32 4, %v500
        %v502 = vrot.slane %v481, %v501
        %v503 = vlaneseq
        %v504 = vshrl.u32 %v503, 7
        %v505 = vsub.s32 5, %v504
        %v506 = vrot.slane %v481, %v505
        %v507 = vlaneseq
        %v508 = vshrl.u32 %v507, 7
        %v509 = vsub.s32 6, %v508
        %v510 = vrot.slane %v481, %v509
        %v511 = vlaneseq
        %v512 = vshrl.u32 %v511, 7
        %v513 = vsub.s32 7, %v512
        %v514 = vrot.slane %v481, %v513
        %v539 = vunpack.c.l.b16 %v337
        %v540 = vunpack.c.h.b16 %v337
        %v541 = vunpack.c.l.b16 %v338
        %v542 = vunpack.c.h.b16 %v338
        %v543 = vunpack.c.l.b16 %v339
        %v544 = vunpack.c.h.b16 %v339
        %v545 = vunpack.c.l.b16 %v340
        %v546 = vunpack.c.h.b16 %v340
        %v547 = vunpack.c.l.b16 %v341
        %v548 = vunpack.c.h.b16 %v341
        %v549 = vunpack.c.l.b16 %v342
        %v550 = vunpack.c.h.b16 %v342
        %v551 = vunpack.c.l.b16 %v343
        %v552 = vunpack.c.h.b16 %v343
        %v553 = vunpack.c.l.b16 %v344
        %v554 = vunpack.c.h.b16 %v344
        %v555 = vunpack.c.l.b16 %v345
        %v556 = vunpack.c.h.b16 %v345
        %v557 = vunpack.c.l.b16 %v346
        %v558 = vunpack.c.h.b16 %v346
        %v559 = vunpack.c.l.b16 %v347
        %v560 = vunpack.c.h.b16 %v347
        %v561 = vunpack.c.l.b16 %v348
        %v562 = vunpack.c.h.b16 %v348
        %v563 = vunpack.c.l.b16 %v349
        %v564 = vunpack.c.h.b16 %v349
        %v565 = vunpack.c.l.b16 %v350
        %v566 = vunpack.c.h.b16 %v350
        %v567 = vunpack.c.l.b16 %v351
        %v568 = vunpack.c.h.b16 %v351
        %v569 = vunpack.c.l.b16 %v352
        %v570 = vunpack.c.h.b16 %v352
        %v571 = vpack.c.b16 %v541, %v539
        %v572 = vpack.c.b16 %v542, %v540
        %v573 = vpack.c.b16 %v545, %v543
        %v574 = vpack.c.b16 %v546, %v544
        %v575 = vpack.c.b16 %v549, %v547
        %v576 = vpack.c.b16 %v550, %v548
        %v577 = vpack.c.b16 %v553, %v551
        %v578 = vpack.c.b16 %v554, %v552
        %v579 = vpack.c.b16 %v557, %v555
        %v580 = vpack.c.b16 %v558, %v556
        %v581 = vpack.c.b16 %v561, %v559
        %v582 = vpack.c.b16 %v562, %v560
        %v583 = vpack.c.b16 %v565, %v563
        %v584 = vpack.c.b16 %v566, %v564
        %v585 = vpack.c.b16 %v569, %v567
        %v586 = vpack.c.b16 %v570, %v568
        %v731 = vunpack.c.l.b16 %v353
        %v732 = vunpack.c.h.b16 %v353
        %v733 = vunpack.c.l.b16 %v354
        %v734 = vunpack.c.h.b16 %v354
        %v735 = vunpack.c.l.b16 %v355
        %v736 = vunpack.c.h.b16 %v355
        %v737 = vunpack.c.l.b16 %v356
        %v738 = vunpack.c.h.b16 %v356
        %v739 = vunpack.c.l.b16 %v357
        %v740 = vunpack.c.h.b16 %v357
        %v741 = vunpack.c.l.b16 %v358
        %v742 = vunpack.c.h.b16 %v358
        %v743 = vunpack.c.l.b16 %v359
        %v744 = vunpack.c.h.b16 %v359
        %v745 = vunpack.c.l.b16 %v360
        %v746 = vunpack.c.h.b16 %v360
        %v747 = vunpack.c.l.b16 %v361
        %v748 = vunpack.c.h.b16 %v361
        %v749 = vunpack.c.l.b16 %v362
        %v750 = vunpack.c.h.b16 %v362
        %v751 = vunpack.c.l.b16 %v363
        %v752 = vunpack.c.h.b16 %v363
        %v753 = vunpack.c.l.b16 %v364
        %v754 = vunpack.c.h.b16 %v364
        %v755 = vunpack.c.l.b16 %v365
        %v756 = vunpack.c.h.b16 %v365
        %v757 = vunpack.c.l.b16 %v366
        %v758 = vunpack.c.h.b16 %v366
        %v759 = vunpack.c.l.b16 %v367
        %v760 = vunpack.c.h.b16 %v367
        %v761 = vunpack.c.l.b16 %v368
        %v762 = vunpack.c.h.b16 %v368
        %v763 = vunpack.c.l.b16 %v369
        %v764 = vunpack.c.h.b16 %v369
        %v765 = vunpack.c.l.b16 %v370
        %v766 = vunpack.c.h.b16 %v370
        %v767 = vunpack.c.l.b16 %v371
        %v768 = vunpack.c.h.b16 %v371
        %v769 = vunpack.c.l.b16 %v372
        %v770 = vunpack.c.h.b16 %v372
        %v771 = vunpack.c.l.b16 %v373
        %v772 = vunpack.c.h.b16 %v373
        %v773 = vunpack.c.l.b16 %v374
        %v774 = vunpack.c.h.b16 %v374
        %v775 = vunpack.c.l.b16 %v375
        %v776 = vunpack.c.h.b16 %v375
        %v777 = vunpack.c.l.b16 %v376
        %v778 = vunpack.c.h.b16 %v376
        %v779 = vunpack.c.l.b16 %v377
        %v780 = vunpack.c.h.b16 %v377
        %v781 = vunpack.c.l.b16 %v378
        %v782 = vunpack.c.h.b16 %v378
        %v783 = vunpack.c.l.b16 %v379
        %v784 = vunpack.c.h.b16 %v379
        %v785 = vunpack.c.l.b16 %v380
        %v786 = vunpack.c.h.b16 %v380
        %v787 = vunpack.c.l.b16 %v381
        %v788 = vunpack.c.h.b16 %v381
        %v789 = vunpack.c.l.b16 %v382
        %v790 = vunpack.c.h.b16 %v382
        %v791 = vunpack.c.l.b16 %v383
        %v792 = vunpack.c.h.b16 %v383
        %v793 = vunpack.c.l.b16 %v384
        %v794 = vunpack.c.h.b16 %v384
        %v795 = vunpack.c.l.b16 %v385
        %v796 = vunpack.c.h.b16 %v385
        %v797 = vunpack.c.l.b16 %v386
        %v798 = vunpack.c.h.b16 %v386
        %v799 = vunpack.c.l.b16 %v387
        %v800 = vunpack.c.h.b16 %v387
        %v801 = vunpack.c.l.b16 %v388
        %v802 = vunpack.c.h.b16 %v388
        %v803 = vunpack.c.l.b16 %v389
        %v804 = vunpack.c.h.b16 %v389
        %v805 = vunpack.c.l.b16 %v390
        %v806 = vunpack.c.h.b16 %v390
        %v807 = vunpack.c.l.b16 %v391
        %v808 = vunpack.c.h.b16 %v391
        %v809 = vunpack.c.l.b16 %v392
        %v810 = vunpack.c.h.b16 %v392
        %v811 = vunpack.c.l.b16 %v393
        %v812 = vunpack.c.h.b16 %v393
        %v813 = vunpack.c.l.b16 %v394
        %v814 = vunpack.c.h.b16 %v394
        %v815 = vunpack.c.l.b16 %v395
        %v816 = vunpack.c.h.b16 %v395
        %v817 = vunpack.c.l.b16 %v396
        %v818 = vunpack.c.h.b16 %v396
        %v819 = vunpack.c.l.b16 %v397
        %v820 = vunpack.c.h.b16 %v397
        %v821 = vunpack.c.l.b16 %v398
        %v822 = vunpack.c.h.b16 %v398
        %v823 = vunpack.c.l.b16 %v399
        %v824 = vunpack.c.h.b16 %v399
        %v825 = vunpack.c.l.b16 %v400
        %v826 = vunpack.c.h.b16 %v400
        %v827 = vunpack.c.l.b16 %v401
        %v828 = vunpack.c.h.b16 %v401
        %v829 = vunpack.c.l.b16 %v402
        %v830 = vunpack.c.h.b16 %v402
        %v831 = vunpack.c.l.b16 %v403
        %v832 = vunpack.c.h.b16 %v403
        %v833 = vunpack.c.l.b16 %v404
        %v834 = vunpack.c.h.b16 %v404
        %v835 = vunpack.c.l.b16 %v405
        %v836 = vunpack.c.h.b16 %v405
        %v837 = vunpack.c.l.b16 %v406
        %v838 = vunpack.c.h.b16 %v406
        %v839 = vunpack.c.l.b16 %v407
        %v840 = vunpack.c.h.b16 %v407
        %v841 = vunpack.c.l.b16 %v408
        %v842 = vunpack.c.h.b16 %v408
        %v843 = vunpack.c.l.b16 %v409
        %v844 = vunpack.c.h.b16 %v409
        %v845 = vunpack.c.l.b16 %v410
        %v846 = vunpack.c.h.b16 %v410
        %v847 = vunpack.c.l.b16 %v411
        %v848 = vunpack.c.h.b16 %v411
        %v849 = vunpack.c.l.b16 %v412
        %v850 = vunpack.c.h.b16 %v412
        %v851 = vunpack.c.l.b16 %v413
        %v852 = vunpack.c.h.b16 %v413
        %v853 = vunpack.c.l.b16 %v414
        %v854 = vunpack.c.h.b16 %v414
        %v855 = vunpack.c.l.b16 %v415
        %v856 = vunpack.c.h.b16 %v415
        %v857 = vunpack.c.l.b16 %v416
        %v858 = vunpack.c.h.b16 %v416
        %v859 = vunpack.c.l.b16 %v417
        %v860 = vunpack.c.h.b16 %v417
        %v861 = vunpack.c.l.b16 %v418
        %v862 = vunpack.c.h.b16 %v418
        %v863 = vunpack.c.l.b16 %v419
        %v864 = vunpack.c.h.b16 %v419
        %v865 = vunpack.c.l.b16 %v420
        %v866 = vunpack.c.h.b16 %v420
        %v867 = vunpack.c.l.b16 %v421
        %v868 = vunpack.c.h.b16 %v421
        %v869 = vunpack.c.l.b16 %v422
        %v870 = vunpack.c.h.b16 %v422
        %v871 = vunpack.c.l.b16 %v423
        %v872 = vunpack.c.h.b16 %v423
        %v873 = vunpack.c.l.b16 %v424
        %v874 = vunpack.c.h.b16 %v424
        %v875 = vunpack.c.l.b16 %v425
        %v876 = vunpack.c.h.b16 %v425
        %v877 = vunpack.c.l.b16 %v426
        %v878 = vunpack.c.h.b16 %v426
        %v879 = vunpack.c.l.b16 %v427
        %v880 = vunpack.c.h.b16 %v427
        %v881 = vunpack.c.l.b16 %v428
        %v882 = vunpack.c.h.b16 %v428
        %v883 = vunpack.c.l.b16 %v429
        %v884 = vunpack.c.h.b16 %v429
        %v885 = vunpack.c.l.b16 %v430
        %v886 = vunpack.c.h.b16 %v430
        %v887 = vunpack.c.l.b16 %v431
        %v888 = vunpack.c.h.b16 %v431
        %v889 = vunpack.c.l.b16 %v432
        %v890 = vunpack.c.h.b16 %v432
        %v891 = vunpack.c.l.b16 %v433
        %v892 = vunpack.c.h.b16 %v433
        %v893 = vunpack.c.l.b16 %v434
        %v894 = vunpack.c.h.b16 %v434
        %v895 = vunpack.c.l.b16 %v435
        %v896 = vunpack.c.h.b16 %v435
        %v897 = vunpack.c.l.b16 %v436
        %v898 = vunpack.c.h.b16 %v436
        %v899 = vunpack.c.l.b16 %v437
        %v900 = vunpack.c.h.b16 %v437
        %v901 = vunpack.c.l.b16 %v438
        %v902 = vunpack.c.h.b16 %v438
        %v903 = vunpack.c.l.b16 %v439
        %v904 = vunpack.c.h.b16 %v439
        %v905 = vunpack.c.l.b16 %v440
        %v906 = vunpack.c.h.b16 %v440
        %v907 = vunpack.c.l.b16 %v441
        %v908 = vunpack.c.h.b16 %v441
        %v909 = vunpack.c.l.b16 %v442
        %v910 = vunpack.c.h.b16 %v442
        %v911 = vunpack.c.l.b16 %v443
        %v912 = vunpack.c.h.b16 %v443
        %v913 = vunpack.c.l.b16 %v444
        %v914 = vunpack.c.h.b16 %v444
        %v915 = vunpack.c.l.b16 %v445
        %v916 = vunpack.c.h.b16 %v445
        %v917 = vunpack.c.l.b16 %v446
        %v918 = vunpack.c.h.b16 %v446
        %v919 = vunpack.c.l.b16 %v447
        %v920 = vunpack.c.h.b16 %v447
        %v921 = vunpack.c.l.b16 %v448
        %v922 = vunpack.c.h.b16 %v448
        %v923 = vunpack.c.l.b16 %v449
        %v924 = vunpack.c.h.b16 %v449
        %v925 = vunpack.c.l.b16 %v450
        %v926 = vunpack.c.h.b16 %v450
        %v927 = vunpack.c.l.b16 %v451
        %v928 = vunpack.c.h.b16 %v451
        %v929 = vunpack.c.l.b16 %v452
        %v930 = vunpack.c.h.b16 %v452
        %v931 = vunpack.c.l.b16 %v453
        %v932 = vunpack.c.h.b16 %v453
        %v933 = vunpack.c.l.b16 %v454
        %v934 = vunpack.c.h.b16 %v454
        %v935 = vunpack.c.l.b16 %v455
        %v936 = vunpack.c.h.b16 %v455
        %v937 = vunpack.c.l.b16 %v456
        %v938 = vunpack.c.h.b16 %v456
        %v939 = vunpack.c.l.b16 %v457
        %v940 = vunpack.c.h.b16 %v457
        %v941 = vunpack.c.l.b16 %v458
        %v942 = vunpack.c.h.b16 %v458
        %v943 = vunpack.c.l.b16 %v459
        %v944 = vunpack.c.h.b16 %v459
        %v945 = vunpack.c.l.b16 %v460
        %v946 = vunpack.c.h.b16 %v460
        %v947 = vunpack.c.l.b16 %v461
        %v948 = vunpack.c.h.b16 %v461
        %v949 = vunpack.c.l.b16 %v462
        %v950 = vunpack.c.h.b16 %v462
        %v951 = vunpack.c.l.b16 %v463
        %v952 = vunpack.c.h.b16 %v463
        %v953 = vunpack.c.l.b16 %v464
        %v954 = vunpack.c.h.b16 %v464
        %v955 = vunpack.c.l.b16 %v465
        %v956 = vunpack.c.h.b16 %v465
        %v957 = vunpack.c.l.b16 %v466
        %v958 = vunpack.c.h.b16 %v466
        %v959 = vunpack.c.l.b16 %v467
        %v960 = vunpack.c.h.b16 %v467
        %v961 = vunpack.c.l.b16 %v468
        %v962 = vunpack.c.h.b16 %v468
        %v963 = vunpack.c.l.b16 %v469
        %v964 = vunpack.c.h.b16 %v469
        %v965 = vunpack.c.l.b16 %v470
        %v966 = vunpack.c.h.b16 %v470
        %v967 = vunpack.c.l.b16 %v471
        %v968 = vunpack.c.h.b16 %v471
        %v969 = vunpack.c.l.b16 %v472
        %v970 = vunpack.c.h.b16 %v472
        %v971 = vunpack.c.l.b16 %v473
        %v972 = vunpack.c.h.b16 %v473
        %v973 = vunpack.c.l.b16 %v474
        %v974 = vunpack.c.h.b16 %v474
        %v975 = vunpack.c.l.b16 %v475
        %v976 = vunpack.c.h.b16 %v475
        %v977 = vunpack.c.l.b16 %v476
        %v978 = vunpack.c.h.b16 %v476
        %v979 = vunpack.c.l.b16 %v477
        %v980 = vunpack.c.h.b16 %v477
        %v981 = vunpack.c.l.b16 %v478
        %v982 = vunpack.c.h.b16 %v478
        %v983 = vunpack.c.l.b16 %v479
        %v984 = vunpack.c.h.b16 %v479
        %v985 = vunpack.c.l.b16 %v480
        %v986 = vunpack.c.h.b16 %v480
        %v987 = vpack.c.b16 %v739, %v731
        %v988 = vpack.c.b16 %v740, %v732
        %v989 = vpack.c.b16 %v741, %v733
        %v990 = vpack.c.b16 %v742, %v734
        %v991 = vpack.c.b16 %v743, %v735
        %v992 = vpack.c.b16 %v744, %v736
        %v993 = vpack.c.b16 %v745, %v737
        %v994 = vpack.c.b16 %v746, %v738
        %v995 = vpack.c.b16 %v755, %v747
        %v996 = vpack.c.b16 %v756, %v748
        %v997 = vpack.c.b16 %v757, %v749
        %v998 = vpack.c.b16 %v758, %v750
        %v999 = vpack.c.b16 %v759, %v751
        %v1000 = vpack.c.b16 %v760, %v752
        %v1001 = vpack.c.b16 %v761, %v753
        %v1002 = vpack.c.b16 %v762, %v754
        %v1003 = vpack.c.b16 %v771, %v763
        %v1004 = vpack.c.b16 %v772, %v764
        %v1005 = vpack.c.b16 %v773, %v765
        %v1006 = vpack.c.b16 %v774, %v766
        %v1007 = vpack.c.b16 %v775, %v767
        %v1008 = vpack.c.b16 %v776, %v768
        %v1009 = vpack.c.b16 %v777, %v769
        %v1010 = vpack.c.b16 %v778, %v770
        %v1011 = vpack.c.b16 %v787, %v779
        %v1012 = vpack.c.b16 %v788, %v780
        %v1013 = vpack.c.b16 %v789, %v781
        %v1014 = vpack.c.b16 %v790, %v782
        %v1015 = vpack.c.b16 %v791, %v783
        %v1016 = vpack.c.b16 %v792, %v784
        %v1017 = vpack.c.b16 %v793, %v785
        %v1018 = vpack.c.b16 %v794, %v786
        %v1019 = vpack.c.b16 %v803, %v795
        %v1020 = vpack.c.b16 %v804, %v796
        %v1021 = vpack.c.b16 %v805, %v797
        %v1022 = vpack.c.b16 %v806, %v798
        %v1023 = vpack.c.b16 %v807, %v799
        %v1024 = vpack.c.b16 %v808, %v800
        %v1025 = vpack.c.b16 %v809, %v801
        %v1026 = vpack.c.b16 %v810, %v802
        %v1027 = vpack.c.b16 %v819, %v811
        %v1028 = vpack.c.b16 %v820, %v812
        %v1029 = vpack.c.b16 %v821, %v813
        %v1030 = vpack.c.b16 %v822, %v814
        %v1031 = vpack.c.b16 %v823, %v815
        %v1032 = vpack.c.b16 %v824, %v816
        %v1033 = vpack.c.b16 %v825, %v817
        %v1034 = vpack.c.b16 %v826, %v818
        %v1035 = vpack.c.b16 %v835, %v827
        %v1036 = vpack.c.b16 %v836, %v828
        %v1037 = vpack.c.b16 %v837, %v829
        %v1038 = vpack.c.b16 %v838, %v830
        %v1039 = vpack.c.b16 %v839, %v831
        %v1040 = vpack.c.b16 %v840, %v832
        %v1041 = vpack.c.b16 %v841, %v833
        %v1042 = vpack.c.b16 %v842, %v834
        %v1043 = vpack.c.b16 %v851, %v843
        %v1044 = vpack.c.b16 %v852, %v844
        %v1045 = vpack.c.b16 %v853, %v845
        %v1046 = vpack.c.b16 %v854, %v846
        %v1047 = vpack.c.b16 %v855, %v847
        %v1048 = vpack.c.b16 %v856, %v848
        %v1049 = vpack.c.b16 %v857, %v849
        %v1050 = vpack.c.b16 %v858, %v850
        %v1051 = vpack.c.b16 %v867, %v859
        %v1052 = vpack.c.b16 %v868, %v860
        %v1053 = vpack.c.b16 %v869, %v861
        %v1054 = vpack.c.b16 %v870, %v862
        %v1055 = vpack.c.b16 %v871, %v863
        %v1056 = vpack.c.b16 %v872, %v864
        %v1057 = vpack.c.b16 %v873, %v865
        %v1058 = vpack.c.b16 %v874, %v866
        %v1059 = vpack.c.b16 %v883, %v875
        %v1060 = vpack.c.b16 %v884, %v876
        %v1061 = vpack.c.b16 %v885, %v877
        %v1062 = vpack.c.b16 %v886, %v878
        %v1063 = vpack.c.b16 %v887, %v879
        %v1064 = vpack.c.b16 %v888, %v880
        %v1065 = vpack.c.b16 %v889, %v881
        %v1066 = vpack.c.b16 %v890, %v882
        %v1067 = vpack.c.b16 %v899, %v891
        %v1068 = vpack.c.b16 %v900, %v892
        %v1069 = vpack.c.b16 %v901, %v893
        %v1070 = vpack.c.b16 %v902, %v894
        %v1071 = vpack.c.b16 %v903, %v895
        %v1072 = vpack.c.b16 %v904, %v896
        %v1073 = vpack.c.b16 %v905, %v897
        %v1074 = vpack.c.b16 %v906, %v898
        %v1075 = vpack.c.b16 %v915, %v907
        %v1076 = vpack.c.b16 %v916, %v908
        %v1077 = vpack.c.b16 %v917, %v909
        %v1078 = vpack.c.b16 %v918, %v910
        %v1079 = vpack.c.b16 %v919, %v911
        %v1080 = vpack.c.b16 %v920, %v912
        %v1081 = vpack.c.b16 %v921, %v913
        %v1082 = vpack.c.b16 %v922, %v914
        %v1083 = vpack.c.b16 %v931, %v923
        %v1084 = vpack.c.b16 %v932, %v924
        %v1085 = vpack.c.b16 %v933, %v925
        %v1086 = vpack.c.b16 %v934, %v926
        %v1087 = vpack.c.b16 %v935, %v927
        %v1088 = vpack.c.b16 %v936, %v928
        %v1089 = vpack.c.b16 %v937, %v929
        %v1090 = vpack.c.b16 %v938, %v930
        %v1091 = vpack.c.b16 %v947, %v939
        %v1092 = vpack.c.b16 %v948, %v940
        %v1093 = vpack.c.b16 %v949, %v941
        %v1094 = vpack.c.b16 %v950, %v942
        %v1095 = vpack.c.b16 %v951, %v943
        %v1096 = vpack.c.b16 %v952, %v944
        %v1097 = vpack.c.b16 %v953, %v945
        %v1098 = vpack.c.b16 %v954, %v946
        %v1099 = vpack.c.b16 %v963, %v955
        %v1100 = vpack.c.b16 %v964, %v956
        %v1101 = vpack.c.b16 %v965, %v957
        %v1102 = vpack.c.b16 %v966, %v958
        %v1103 = vpack.c.b16 %v967, %v959
        %v1104 = vpack.c.b16 %v968, %v960
        %v1105 = vpack.c.b16 %v969, %v961
        %v1106 = vpack.c.b16 %v970, %v962
        %v1107 = vpack.c.b16 %v979, %v971
        %v1108 = vpack.c.b16 %v980, %v972
        %v1109 = vpack.c.b16 %v981, %v973
        %v1110 = vpack.c.b16 %v982, %v974
        %v1111 = vpack.c.b16 %v983, %v975
        %v1112 = vpack.c.b16 %v984, %v976
        %v1113 = vpack.c.b16 %v985, %v977
        %v1114 = vpack.c.b16 %v986, %v978
        %1243 = vmatprep.subr.bf16.mxu0 %v1044
        %1244 = vmatpush1.bf16.msra.mxu0 %v1043
        %1245 = vmatprep.subr.bf16.mxu0 %v1036
        %1246 = vmatpush1.bf16.msra.mxu0 %v1035
        %1247 = vmatprep.subr.bf16.mxu0 %v1028
        %1248 = vmatpush1.bf16.msra.mxu0 %v1027
        %1249 = vmatprep.subr.bf16.mxu0 %v1020
        %1250 = vmatpush1.bf16.msra.mxu0 %v1019
        %1251 = vmatprep.subr.bf16.mxu0 %v1012
        %1252 = vmatpush1.bf16.msra.mxu0 %v1011
        %1253 = vmatprep.subr.bf16.mxu0 %v1004
        %1254 = vmatpush1.bf16.msra.mxu0 %v1003
        %1255 = vmatprep.subr.bf16.mxu0 %v996
        %1256 = vmatpush1.bf16.msra.mxu0 %v995
        %1257 = vmatprep.subr.bf16.mxu0 %v988
        %1258 = vmatpush1.bf16.msra.mxu0 %v987
        %1259 = vmatprep.subr.bf16.mxu0 %v1108
        %1260 = vmatpush2.bf16.msra.mxu0 %v1107
        %1261 = vmatprep.subr.bf16.mxu0 %v1100
        %1262 = vmatpush2.bf16.msra.mxu0 %v1099
        %1263 = vmatprep.subr.bf16.mxu0 %v1092
        %1264 = vmatpush2.bf16.msra.mxu0 %v1091
        %1265 = vmatprep.subr.bf16.mxu0 %v1084
        %1266 = vmatpush2.bf16.msra.mxu0 %v1083
        %1267 = vmatprep.subr.bf16.mxu0 %v1076
        %1268 = vmatpush2.bf16.msra.mxu0 %v1075
        %1269 = vmatprep.subr.bf16.mxu0 %v1068
        %1270 = vmatpush2.bf16.msra.mxu0 %v1067
        %1271 = vmatprep.subr.bf16.mxu0 %v1060
        %1272 = vmatpush2.bf16.msra.mxu0 %v1059
        %1273 = vmatprep.subr.bf16.mxu0 %v1052
        %1274 = vmatpush2.bf16.msra.mxu0 %v1051
        %1275 = vmatprep.mubr.bf16.mxu0 %v572
        %1276 = vmatmul.mubr.bf16.gmra.mxu0 %v571
        %v1277 = vpop.f32.mrf.mxu0
        %v1278 = vadd.f32 %v486, %v1277
        %v1279 = vpop.f32.mrf.mxu0
        %v1280 = vadd.f32 %v490, %v1279
        %v1281 = vpop.f32.mrf.mxu0
        %v1282 = vadd.f32 %v486, %v1281
        %v1283 = vpop.f32.mrf.mxu0
        %v1284 = vadd.f32 %v490, %v1283
        %1285 = vmatprep.mubr.bf16.mxu0 %v574
        %1286 = vmatmul.mubr.bf16.gmra.mxu0 %v573
        %v1287 = vpop.f32.mrf.mxu0
        %v1288 = vadd.f32 %v486, %v1287
        %v1289 = vpop.f32.mrf.mxu0
        %v1290 = vadd.f32 %v490, %v1289
        %v1291 = vpop.f32.mrf.mxu0
        %v1292 = vadd.f32 %v486, %v1291
        %v1293 = vpop.f32.mrf.mxu0
        %v1294 = vadd.f32 %v490, %v1293
        %1295 = vmatprep.mubr.bf16.mxu0 %v576
        %1296 = vmatmul.mubr.bf16.gmra.mxu0 %v575
        %v1297 = vpop.f32.mrf.mxu0
        %v1298 = vadd.f32 %v486, %v1297
        %v1299 = vpop.f32.mrf.mxu0
        %v1300 = vadd.f32 %v490, %v1299
        %v1301 = vpop.f32.mrf.mxu0
        %v1302 = vadd.f32 %v486, %v1301
        %v1303 = vpop.f32.mrf.mxu0
        %v1304 = vadd.f32 %v490, %v1303
        %1305 = vmatprep.mubr.bf16.mxu0 %v578
        %1306 = vmatmul.mubr.bf16.gmra.mxu0 %v577
        %v1307 = vpop.f32.mrf.mxu0
        %v1308 = vadd.f32 %v486, %v1307
        %v1309 = vpop.f32.mrf.mxu0
        %v1310 = vadd.f32 %v490, %v1309
        %v1311 = vpop.f32.mrf.mxu0
        %v1312 = vadd.f32 %v486, %v1311
        %v1313 = vpop.f32.mrf.mxu0
        %v1314 = vadd.f32 %v490, %v1313
        %1315 = vmatprep.mubr.bf16.mxu0 %v580
        %1316 = vmatmul.mubr.bf16.gmra.mxu0 %v579
        %v1317 = vpop.f32.mrf.mxu0
        %v1318 = vadd.f32 %v486, %v1317
        %v1319 = vpop.f32.mrf.mxu0
        %v1320 = vadd.f32 %v490, %v1319
        %v1321 = vpop.f32.mrf.mxu0
        %v1322 = vadd.f32 %v486, %v1321
        %v1323 = vpop.f32.mrf.mxu0
        %v1324 = vadd.f32 %v490, %v1323
        %1325 = vmatprep.mubr.bf16.mxu0 %v582
        %1326 = vmatmul.mubr.bf16.gmra.mxu0 %v581
        %v1327 = vpop.f32.mrf.mxu0
        %v1328 = vadd.f32 %v486, %v1327
        %v1329 = vpop.f32.mrf.mxu0
        %v1330 = vadd.f32 %v490, %v1329
        %v1331 = vpop.f32.mrf.mxu0
        %v1332 = vadd.f32 %v486, %v1331
        %v1333 = vpop.f32.mrf.mxu0
        %v1334 = vadd.f32 %v490, %v1333
        %1335 = vmatprep.mubr.bf16.mxu0 %v584
        %1336 = vmatmul.mubr.bf16.gmra.mxu0 %v583
        %v1337 = vpop.f32.mrf.mxu0
        %v1338 = vadd.f32 %v486, %v1337
        %v1339 = vpop.f32.mrf.mxu0
        %v1340 = vadd.f32 %v490, %v1339
        %v1341 = vpop.f32.mrf.mxu0
        %v1342 = vadd.f32 %v486, %v1341
        %v1343 = vpop.f32.mrf.mxu0
        %v1344 = vadd.f32 %v490, %v1343
        %1345 = vmatprep.mubr.bf16.mxu0 %v586
        %1346 = vmatmul.mubr.bf16.gmra.mxu0 %v585
        %v1347 = vpop.f32.mrf.mxu0
        %v1348 = vadd.f32 %v486, %v1347
        %v1349 = vpop.f32.mrf.mxu0
        %v1350 = vadd.f32 %v490, %v1349
        %v1351 = vpop.f32.mrf.mxu0
        %v1352 = vadd.f32 %v486, %v1351
        %v1353 = vpop.f32.mrf.mxu0
        %v1354 = vadd.f32 %v490, %v1353
        %1355 = vdwg.mxu0
        %1356 = vmatprep.subr.bf16.mxu0 %v1046
        %1357 = vmatpush1.bf16.msra.mxu0 %v1045
        %1358 = vmatprep.subr.bf16.mxu0 %v1038
        %1359 = vmatpush1.bf16.msra.mxu0 %v1037
        %1360 = vmatprep.subr.bf16.mxu0 %v1030
        %1361 = vmatpush1.bf16.msra.mxu0 %v1029
        %1362 = vmatprep.subr.bf16.mxu0 %v1022
        %1363 = vmatpush1.bf16.msra.mxu0 %v1021
        %1364 = vmatprep.subr.bf16.mxu0 %v1014
        %1365 = vmatpush1.bf16.msra.mxu0 %v1013
        %1366 = vmatprep.subr.bf16.mxu0 %v1006
        %1367 = vmatpush1.bf16.msra.mxu0 %v1005
        %1368 = vmatprep.subr.bf16.mxu0 %v998
        %1369 = vmatpush1.bf16.msra.mxu0 %v997
        %1370 = vmatprep.subr.bf16.mxu0 %v990
        %1371 = vmatpush1.bf16.msra.mxu0 %v989
        %1372 = vmatprep.subr.bf16.mxu0 %v1110
        %1373 = vmatpush2.bf16.msra.mxu0 %v1109
        %1374 = vmatprep.subr.bf16.mxu0 %v1102
        %1375 = vmatpush2.bf16.msra.mxu0 %v1101
        %1376 = vmatprep.subr.bf16.mxu0 %v1094
        %1377 = vmatpush2.bf16.msra.mxu0 %v1093
        %1378 = vmatprep.subr.bf16.mxu0 %v1086
        %1379 = vmatpush2.bf16.msra.mxu0 %v1085
        %1380 = vmatprep.subr.bf16.mxu0 %v1078
        %1381 = vmatpush2.bf16.msra.mxu0 %v1077
        %1382 = vmatprep.subr.bf16.mxu0 %v1070
        %1383 = vmatpush2.bf16.msra.mxu0 %v1069
        %1384 = vmatprep.subr.bf16.mxu0 %v1062
        %1385 = vmatpush2.bf16.msra.mxu0 %v1061
        %1386 = vmatprep.subr.bf16.mxu0 %v1054
        %1387 = vmatpush2.bf16.msra.mxu0 %v1053
        %1388 = vmatprep.mubr.bf16.mxu0 %v572
        %1389 = vmatmul.mubr.bf16.gmra.mxu0 %v571
        %v1390 = vpop.f32.mrf.mxu0
        %v1391 = vadd.f32 %v494, %v1390
        %v1392 = vpop.f32.mrf.mxu0
        %v1393 = vadd.f32 %v498, %v1392
        %v1394 = vpop.f32.mrf.mxu0
        %v1395 = vadd.f32 %v494, %v1394
        %v1396 = vpop.f32.mrf.mxu0
        %v1397 = vadd.f32 %v498, %v1396
        %1398 = vmatprep.mubr.bf16.mxu0 %v574
        %1399 = vmatmul.mubr.bf16.gmra.mxu0 %v573
        %v1400 = vpop.f32.mrf.mxu0
        %v1401 = vadd.f32 %v494, %v1400
        %v1402 = vpop.f32.mrf.mxu0
        %v1403 = vadd.f32 %v498, %v1402
        %v1404 = vpop.f32.mrf.mxu0
        %v1405 = vadd.f32 %v494, %v1404
        %v1406 = vpop.f32.mrf.mxu0
        %v1407 = vadd.f32 %v498, %v1406
        %1408 = vmatprep.mubr.bf16.mxu0 %v576
        %1409 = vmatmul.mubr.bf16.gmra.mxu0 %v575
        %v1410 = vpop.f32.mrf.mxu0
        %v1411 = vadd.f32 %v494, %v1410
        %v1412 = vpop.f32.mrf.mxu0
        %v1413 = vadd.f32 %v498, %v1412
        %v1414 = vpop.f32.mrf.mxu0
        %v1415 = vadd.f32 %v494, %v1414
        %v1416 = vpop.f32.mrf.mxu0
        %v1417 = vadd.f32 %v498, %v1416
        %1418 = vmatprep.mubr.bf16.mxu0 %v578
        %1419 = vmatmul.mubr.bf16.gmra.mxu0 %v577
        %v1420 = vpop.f32.mrf.mxu0
        %v1421 = vadd.f32 %v494, %v1420
        %v1422 = vpop.f32.mrf.mxu0
        %v1423 = vadd.f32 %v498, %v1422
        %v1424 = vpop.f32.mrf.mxu0
        %v1425 = vadd.f32 %v494, %v1424
        %v1426 = vpop.f32.mrf.mxu0
        %v1427 = vadd.f32 %v498, %v1426
        %1428 = vmatprep.mubr.bf16.mxu0 %v580
        %1429 = vmatmul.mubr.bf16.gmra.mxu0 %v579
        %v1430 = vpop.f32.mrf.mxu0
        %v1431 = vadd.f32 %v494, %v1430
        %v1432 = vpop.f32.mrf.mxu0
        %v1433 = vadd.f32 %v498, %v1432
        %v1434 = vpop.f32.mrf.mxu0
        %v1435 = vadd.f32 %v494, %v1434
        %v1436 = vpop.f32.mrf.mxu0
        %v1437 = vadd.f32 %v498, %v1436
        %1438 = vmatprep.mubr.bf16.mxu0 %v582
        %1439 = vmatmul.mubr.bf16.gmra.mxu0 %v581
        %v1440 = vpop.f32.mrf.mxu0
        %v1441 = vadd.f32 %v494, %v1440
        %v1442 = vpop.f32.mrf.mxu0
        %v1443 = vadd.f32 %v498, %v1442
        %v1444 = vpop.f32.mrf.mxu0
        %v1445 = vadd.f32 %v494, %v1444
        %v1446 = vpop.f32.mrf.mxu0
        %v1447 = vadd.f32 %v498, %v1446
        %1448 = vmatprep.mubr.bf16.mxu0 %v584
        %1449 = vmatmul.mubr.bf16.gmra.mxu0 %v583
        %v1450 = vpop.f32.mrf.mxu0
        %v1451 = vadd.f32 %v494, %v1450
        %v1452 = vpop.f32.mrf.mxu0
        %v1453 = vadd.f32 %v498, %v1452
        %v1454 = vpop.f32.mrf.mxu0
        %v1455 = vadd.f32 %v494, %v1454
        %v1456 = vpop.f32.mrf.mxu0
        %v1457 = vadd.f32 %v498, %v1456
        %1458 = vmatprep.mubr.bf16.mxu0 %v586
        %1459 = vmatmul.mubr.bf16.gmra.mxu0 %v585
        %v1460 = vpop.f32.mrf.mxu0
        %v1461 = vadd.f32 %v494, %v1460
        %v1462 = vpop.f32.mrf.mxu0
        %v1463 = vadd.f32 %v498, %v1462
        %v1464 = vpop.f32.mrf.mxu0
        %v1465 = vadd.f32 %v494, %v1464
        %v1466 = vpop.f32.mrf.mxu0
        %v1467 = vadd.f32 %v498, %v1466
        %1468 = vdwg.mxu0
        %1469 = vmatprep.subr.bf16.mxu0 %v1048
        %1470 = vmatpush1.bf16.msra.mxu0 %v1047
        %1471 = vmatprep.subr.bf16.mxu0 %v1040
        %1472 = vmatpush1.bf16.msra.mxu0 %v1039
        %1473 = vmatprep.subr.bf16.mxu0 %v1032
        %1474 = vmatpush1.bf16.msra.mxu0 %v1031
        %1475 = vmatprep.subr.bf16.mxu0 %v1024
        %1476 = vmatpush1.bf16.msra.mxu0 %v1023
        %1477 = vmatprep.subr.bf16.mxu0 %v1016
        %1478 = vmatpush1.bf16.msra.mxu0 %v1015
        %1479 = vmatprep.subr.bf16.mxu0 %v1008
        %1480 = vmatpush1.bf16.msra.mxu0 %v1007
        %1481 = vmatprep.subr.bf16.mxu0 %v1000
        %1482 = vmatpush1.bf16.msra.mxu0 %v999
        %1483 = vmatprep.subr.bf16.mxu0 %v992
        %1484 = vmatpush1.bf16.msra.mxu0 %v991
        %1485 = vmatprep.subr.bf16.mxu0 %v1112
        %1486 = vmatpush2.bf16.msra.mxu0 %v1111
        %1487 = vmatprep.subr.bf16.mxu0 %v1104
        %1488 = vmatpush2.bf16.msra.mxu0 %v1103
        %1489 = vmatprep.subr.bf16.mxu0 %v1096
        %1490 = vmatpush2.bf16.msra.mxu0 %v1095
        %1491 = vmatprep.subr.bf16.mxu0 %v1088
        %1492 = vmatpush2.bf16.msra.mxu0 %v1087
        %1493 = vmatprep.subr.bf16.mxu0 %v1080
        %1494 = vmatpush2.bf16.msra.mxu0 %v1079
        %1495 = vmatprep.subr.bf16.mxu0 %v1072
        %1496 = vmatpush2.bf16.msra.mxu0 %v1071
        %1497 = vmatprep.subr.bf16.mxu0 %v1064
        %1498 = vmatpush2.bf16.msra.mxu0 %v1063
        %1499 = vmatprep.subr.bf16.mxu0 %v1056
        %1500 = vmatpush2.bf16.msra.mxu0 %v1055
        %1501 = vmatprep.mubr.bf16.mxu0 %v572
        %1502 = vmatmul.mubr.bf16.gmra.mxu0 %v571
        %v1503 = vpop.f32.mrf.mxu0
        %v1504 = vadd.f32 %v502, %v1503
        %v1505 = vpop.f32.mrf.mxu0
        %v1506 = vadd.f32 %v506, %v1505
        %v1507 = vpop.f32.mrf.mxu0
        %v1508 = vadd.f32 %v502, %v1507
        %v1509 = vpop.f32.mrf.mxu0
        %v1510 = vadd.f32 %v506, %v1509
        %1511 = vmatprep.mubr.bf16.mxu0 %v574
        %1512 = vmatmul.mubr.bf16.gmra.mxu0 %v573
        %v1513 = vpop.f32.mrf.mxu0
        %v1514 = vadd.f32 %v502, %v1513
        %v1515 = vpop.f32.mrf.mxu0
        %v1516 = vadd.f32 %v506, %v1515
        %v1517 = vpop.f32.mrf.mxu0
        %v1518 = vadd.f32 %v502, %v1517
        %v1519 = vpop.f32.mrf.mxu0
        %v1520 = vadd.f32 %v506, %v1519
        %1521 = vmatprep.mubr.bf16.mxu0 %v576
        %1522 = vmatmul.mubr.bf16.gmra.mxu0 %v575
        %v1523 = vpop.f32.mrf.mxu0
        %v1524 = vadd.f32 %v502, %v1523
        %v1525 = vpop.f32.mrf.mxu0
        %v1526 = vadd.f32 %v506, %v1525
        %v1527 = vpop.f32.mrf.mxu0
        %v1528 = vadd.f32 %v502, %v1527
        %v1529 = vpop.f32.mrf.mxu0
        %v1530 = vadd.f32 %v506, %v1529
        %1531 = vmatprep.mubr.bf16.mxu0 %v578
        %1532 = vmatmul.mubr.bf16.gmra.mxu0 %v577
        %v1533 = vpop.f32.mrf.mxu0
        %v1534 = vadd.f32 %v502, %v1533
        %v1535 = vpop.f32.mrf.mxu0
        %v1536 = vadd.f32 %v506, %v1535
        %v1537 = vpop.f32.mrf.mxu0
        %v1538 = vadd.f32 %v502, %v1537
        %v1539 = vpop.f32.mrf.mxu0
        %v1540 = vadd.f32 %v506, %v1539
        %1541 = vmatprep.mubr.bf16.mxu0 %v580
        %1542 = vmatmul.mubr.bf16.gmra.mxu0 %v579
        %v1543 = vpop.f32.mrf.mxu0
        %v1544 = vadd.f32 %v502, %v1543
        %v1545 = vpop.f32.mrf.mxu0
        %v1546 = vadd.f32 %v506, %v1545
        %v1547 = vpop.f32.mrf.mxu0
        %v1548 = vadd.f32 %v502, %v1547
        %v1549 = vpop.f32.mrf.mxu0
        %v1550 = vadd.f32 %v506, %v1549
        %1551 = vmatprep.mubr.bf16.mxu0 %v582
        %1552 = vmatmul.mubr.bf16.gmra.mxu0 %v581
        %v1553 = vpop.f32.mrf.mxu0
        %v1554 = vadd.f32 %v502, %v1553
        %v1555 = vpop.f32.mrf.mxu0
        %v1556 = vadd.f32 %v506, %v1555
        %v1557 = vpop.f32.mrf.mxu0
        %v1558 = vadd.f32 %v502, %v1557
        %v1559 = vpop.f32.mrf.mxu0
        %v1560 = vadd.f32 %v506, %v1559
        %1561 = vmatprep.mubr.bf16.mxu0 %v584
        %1562 = vmatmul.mubr.bf16.gmra.mxu0 %v583
        %v1563 = vpop.f32.mrf.mxu0
        %v1564 = vadd.f32 %v502, %v1563
        %v1565 = vpop.f32.mrf.mxu0
        %v1566 = vadd.f32 %v506, %v1565
        %v1567 = vpop.f32.mrf.mxu0
        %v1568 = vadd.f32 %v502, %v1567
        %v1569 = vpop.f32.mrf.mxu0
        %v1570 = vadd.f32 %v506, %v1569
        %1571 = vmatprep.mubr.bf16.mxu0 %v586
        %1572 = vmatmul.mubr.bf16.gmra.mxu0 %v585
        %v1573 = vpop.f32.mrf.mxu0
        %v1574 = vadd.f32 %v502, %v1573
        %v1575 = vpop.f32.mrf.mxu0
        %v1576 = vadd.f32 %v506, %v1575
        %v1577 = vpop.f32.mrf.mxu0
        %v1578 = vadd.f32 %v502, %v1577
        %v1579 = vpop.f32.mrf.mxu0
        %v1580 = vadd.f32 %v506, %v1579
        %1581 = vdwg.mxu0
        %1582 = vmatprep.subr.bf16.mxu0 %v1050
        %1583 = vmatpush1.bf16.msra.mxu0 %v1049
        %1584 = vmatprep.subr.bf16.mxu0 %v1042
        %1585 = vmatpush1.bf16.msra.mxu0 %v1041
        %1586 = vmatprep.subr.bf16.mxu0 %v1034
        %1587 = vmatpush1.bf16.msra.mxu0 %v1033
        %1588 = vmatprep.subr.bf16.mxu0 %v1026
        %1589 = vmatpush1.bf16.msra.mxu0 %v1025
        %1590 = vmatprep.subr.bf16.mxu0 %v1018
        %1591 = vmatpush1.bf16.msra.mxu0 %v1017
        %1592 = vmatprep.subr.bf16.mxu0 %v1010
        %1593 = vmatpush1.bf16.msra.mxu0 %v1009
        %1594 = vmatprep.subr.bf16.mxu0 %v1002
        %1595 = vmatpush1.bf16.msra.mxu0 %v1001
        %1596 = vmatprep.subr.bf16.mxu0 %v994
        %1597 = vmatpush1.bf16.msra.mxu0 %v993
        %1598 = vmatprep.subr.bf16.mxu0 %v1114
        %1599 = vmatpush2.bf16.msra.mxu0 %v1113
        %1600 = vmatprep.subr.bf16.mxu0 %v1106
        %1601 = vmatpush2.bf16.msra.mxu0 %v1105
        %1602 = vmatprep.subr.bf16.mxu0 %v1098
        %1603 = vmatpush2.bf16.msra.mxu0 %v1097
        %1604 = vmatprep.subr.bf16.mxu0 %v1090
        %1605 = vmatpush2.bf16.msra.mxu0 %v1089
        %1606 = vmatprep.subr.bf16.mxu0 %v1082
        %1607 = vmatpush2.bf16.msra.mxu0 %v1081
        %1608 = vmatprep.subr.bf16.mxu0 %v1074
        %1609 = vmatpush2.bf16.msra.mxu0 %v1073
        %1610 = vmatprep.subr.bf16.mxu0 %v1066
        %1611 = vmatpush2.bf16.msra.mxu0 %v1065
        %1612 = vmatprep.subr.bf16.mxu0 %v1058
        %1613 = vmatpush2.bf16.msra.mxu0 %v1057
        %1614 = vmatprep.mubr.bf16.mxu0 %v572
        %1615 = vmatmul.mubr.bf16.gmra.mxu0 %v571
        %v1616 = vpop.f32.mrf.mxu0
        %v1617 = vadd.f32 %v510, %v1616
        %v1618 = vpop.f32.mrf.mxu0
        %v1619 = vadd.f32 %v514, %v1618
        %v1620 = vpop.f32.mrf.mxu0
        %v1621 = vadd.f32 %v510, %v1620
        %v1622 = vpop.f32.mrf.mxu0
        %v1623 = vadd.f32 %v514, %v1622
        %1624 = vmatprep.mubr.bf16.mxu0 %v574
        %1625 = vmatmul.mubr.bf16.gmra.mxu0 %v573
        %v1626 = vpop.f32.mrf.mxu0
        %v1627 = vadd.f32 %v510, %v1626
        %v1628 = vpop.f32.mrf.mxu0
        %v1629 = vadd.f32 %v514, %v1628
        %v1630 = vpop.f32.mrf.mxu0
        %v1631 = vadd.f32 %v510, %v1630
        %v1632 = vpop.f32.mrf.mxu0
        %v1633 = vadd.f32 %v514, %v1632
        %1634 = vmatprep.mubr.bf16.mxu0 %v576
        %1635 = vmatmul.mubr.bf16.gmra.mxu0 %v575
        %v1636 = vpop.f32.mrf.mxu0
        %v1637 = vadd.f32 %v510, %v1636
        %v1638 = vpop.f32.mrf.mxu0
        %v1639 = vadd.f32 %v514, %v1638
        %v1640 = vpop.f32.mrf.mxu0
        %v1641 = vadd.f32 %v510, %v1640
        %v1642 = vpop.f32.mrf.mxu0
        %v1643 = vadd.f32 %v514, %v1642
        %1644 = vmatprep.mubr.bf16.mxu0 %v578
        %1645 = vmatmul.mubr.bf16.gmra.mxu0 %v577
        %v1646 = vpop.f32.mrf.mxu0
        %v1647 = vadd.f32 %v510, %v1646
        %v1648 = vpop.f32.mrf.mxu0
        %v1649 = vadd.f32 %v514, %v1648
        %v1650 = vpop.f32.mrf.mxu0
        %v1651 = vadd.f32 %v510, %v1650
        %v1652 = vpop.f32.mrf.mxu0
        %v1653 = vadd.f32 %v514, %v1652
        %1654 = vmatprep.mubr.bf16.mxu0 %v580
        %1655 = vmatmul.mubr.bf16.gmra.mxu0 %v579
        %v1656 = vpop.f32.mrf.mxu0
        %v1657 = vadd.f32 %v510, %v1656
        %v1658 = vpop.f32.mrf.mxu0
        %v1659 = vadd.f32 %v514, %v1658
        %v1660 = vpop.f32.mrf.mxu0
        %v1661 = vadd.f32 %v510, %v1660
        %v1662 = vpop.f32.mrf.mxu0
        %v1663 = vadd.f32 %v514, %v1662
        %1664 = vmatprep.mubr.bf16.mxu0 %v582
        %1665 = vmatmul.mubr.bf16.gmra.mxu0 %v581
        %v1666 = vpop.f32.mrf.mxu0
        %v1667 = vadd.f32 %v510, %v1666
        %v1668 = vpop.f32.mrf.mxu0
        %v1669 = vadd.f32 %v514, %v1668
        %v1670 = vpop.f32.mrf.mxu0
        %v1671 = vadd.f32 %v510, %v1670
        %v1672 = vpop.f32.mrf.mxu0
        %v1673 = vadd.f32 %v514, %v1672
        %1674 = vmatprep.mubr.bf16.mxu0 %v584
        %1675 = vmatmul.mubr.bf16.gmra.mxu0 %v583
        %v1676 = vpop.f32.mrf.mxu0
        %v1677 = vadd.f32 %v510, %v1676
        %v1678 = vpop.f32.mrf.mxu0
        %v1679 = vadd.f32 %v514, %v1678
        %v1680 = vpop.f32.mrf.mxu0
        %v1681 = vadd.f32 %v510, %v1680
        %v1682 = vpop.f32.mrf.mxu0
        %v1683 = vadd.f32 %v514, %v1682
        %1684 = vmatprep.mubr.bf16.mxu0 %v586
        %1685 = vmatmul.mubr.bf16.gmra.mxu0 %v585
        %v1686 = vpop.f32.mrf.mxu0
        %v1687 = vadd.f32 %v510, %v1686
        %v1688 = vpop.f32.mrf.mxu0
        %v1689 = vadd.f32 %v514, %v1688
        %v1690 = vpop.f32.mrf.mxu0
        %v1691 = vadd.f32 %v510, %v1690
        %v1692 = vpop.f32.mrf.mxu0
        %v1693 = vadd.f32 %v514, %v1692
        %1694 = vdwg.mxu0
        %v1695 = vmax.f32 %v1278, 0.0
        %v1696 = vmax.f32 %v1280, 0.0
        %v1697 = vmax.f32 %v1391, 0.0
        %v1698 = vmax.f32 %v1393, 0.0
        %v1699 = vmax.f32 %v1504, 0.0
        %v1700 = vmax.f32 %v1506, 0.0
        %v1701 = vmax.f32 %v1617, 0.0
        %v1702 = vmax.f32 %v1619, 0.0
        %v1703 = vmax.f32 %v1282, 0.0
        %v1704 = vmax.f32 %v1284, 0.0
        %v1705 = vmax.f32 %v1395, 0.0
        %v1706 = vmax.f32 %v1397, 0.0
        %v1707 = vmax.f32 %v1508, 0.0
        %v1708 = vmax.f32 %v1510, 0.0
        %v1709 = vmax.f32 %v1621, 0.0
        %v1710 = vmax.f32 %v1623, 0.0
        %v1711 = vmax.f32 %v1288, 0.0
        %v1712 = vmax.f32 %v1290, 0.0
        %v1713 = vmax.f32 %v1401, 0.0
        %v1714 = vmax.f32 %v1403, 0.0
        %v1715 = vmax.f32 %v1514, 0.0
        %v1716 = vmax.f32 %v1516, 0.0
        %v1717 = vmax.f32 %v1627, 0.0
        %v1718 = vmax.f32 %v1629, 0.0
        %v1719 = vmax.f32 %v1292, 0.0
        %v1720 = vmax.f32 %v1294, 0.0
        %v1721 = vmax.f32 %v1405, 0.0
        %v1722 = vmax.f32 %v1407, 0.0
        %v1723 = vmax.f32 %v1518, 0.0
        %v1724 = vmax.f32 %v1520, 0.0
        %v1725 = vmax.f32 %v1631, 0.0
        %v1726 = vmax.f32 %v1633, 0.0
        %v1727 = vmax.f32 %v1298, 0.0
        %v1728 = vmax.f32 %v1300, 0.0
        %v1729 = vmax.f32 %v1411, 0.0
        %v1730 = vmax.f32 %v1413, 0.0
        %v1731 = vmax.f32 %v1524, 0.0
        %v1732 = vmax.f32 %v1526, 0.0
        %v1733 = vmax.f32 %v1637, 0.0
        %v1734 = vmax.f32 %v1639, 0.0
        %v1735 = vmax.f32 %v1302, 0.0
        %v1736 = vmax.f32 %v1304, 0.0
        %v1737 = vmax.f32 %v1415, 0.0
        %v1738 = vmax.f32 %v1417, 0.0
        %v1739 = vmax.f32 %v1528, 0.0
        %v1740 = vmax.f32 %v1530, 0.0
        %v1741 = vmax.f32 %v1641, 0.0
        %v1742 = vmax.f32 %v1643, 0.0
        %v1743 = vmax.f32 %v1308, 0.0
        %v1744 = vmax.f32 %v1310, 0.0
        %v1745 = vmax.f32 %v1421, 0.0
        %v1746 = vmax.f32 %v1423, 0.0
        %v1747 = vmax.f32 %v1534, 0.0
        %v1748 = vmax.f32 %v1536, 0.0
        %v1749 = vmax.f32 %v1647, 0.0
        %v1750 = vmax.f32 %v1649, 0.0
        %v1751 = vmax.f32 %v1312, 0.0
        %v1752 = vmax.f32 %v1314, 0.0
        %v1753 = vmax.f32 %v1425, 0.0
        %v1754 = vmax.f32 %v1427, 0.0
        %v1755 = vmax.f32 %v1538, 0.0
        %v1756 = vmax.f32 %v1540, 0.0
        %v1757 = vmax.f32 %v1651, 0.0
        %v1758 = vmax.f32 %v1653, 0.0
        %v1759 = vmax.f32 %v1318, 0.0
        %v1760 = vmax.f32 %v1320, 0.0
        %v1761 = vmax.f32 %v1431, 0.0
        %v1762 = vmax.f32 %v1433, 0.0
        %v1763 = vmax.f32 %v1544, 0.0
        %v1764 = vmax.f32 %v1546, 0.0
        %v1765 = vmax.f32 %v1657, 0.0
        %v1766 = vmax.f32 %v1659, 0.0
        %v1767 = vmax.f32 %v1322, 0.0
        %v1768 = vmax.f32 %v1324, 0.0
        %v1769 = vmax.f32 %v1435, 0.0
        %v1770 = vmax.f32 %v1437, 0.0
        %v1771 = vmax.f32 %v1548, 0.0
        %v1772 = vmax.f32 %v1550, 0.0
        %v1773 = vmax.f32 %v1661, 0.0
        %v1774 = vmax.f32 %v1663, 0.0
        %v1775 = vmax.f32 %v1328, 0.0
        %v1776 = vmax.f32 %v1330, 0.0
        %v1777 = vmax.f32 %v1441, 0.0
        %v1778 = vmax.f32 %v1443, 0.0
        %v1779 = vmax.f32 %v1554, 0.0
        %v1780 = vmax.f32 %v1556, 0.0
        %v1781 = vmax.f32 %v1667, 0.0
        %v1782 = vmax.f32 %v1669, 0.0
        %v1783 = vmax.f32 %v1332, 0.0
        %v1784 = vmax.f32 %v1334, 0.0
        %v1785 = vmax.f32 %v1445, 0.0
        %v1786 = vmax.f32 %v1447, 0.0
        %v1787 = vmax.f32 %v1558, 0.0
        %v1788 = vmax.f32 %v1560, 0.0
        %v1789 = vmax.f32 %v1671, 0.0
        %v1790 = vmax.f32 %v1673, 0.0
        %v1791 = vmax.f32 %v1338, 0.0
        %v1792 = vmax.f32 %v1340, 0.0
        %v1793 = vmax.f32 %v1451, 0.0
        %v1794 = vmax.f32 %v1453, 0.0
        %v1795 = vmax.f32 %v1564, 0.0
        %v1796 = vmax.f32 %v1566, 0.0
        %v1797 = vmax.f32 %v1677, 0.0
        %v1798 = vmax.f32 %v1679, 0.0
        %v1799 = vmax.f32 %v1342, 0.0
        %v1800 = vmax.f32 %v1344, 0.0
        %v1801 = vmax.f32 %v1455, 0.0
        %v1802 = vmax.f32 %v1457, 0.0
        %v1803 = vmax.f32 %v1568, 0.0
        %v1804 = vmax.f32 %v1570, 0.0
        %v1805 = vmax.f32 %v1681, 0.0
        %v1806 = vmax.f32 %v1683, 0.0
        %v1807 = vmax.f32 %v1348, 0.0
        %v1808 = vmax.f32 %v1350, 0.0
        %v1809 = vmax.f32 %v1461, 0.0
        %v1810 = vmax.f32 %v1463, 0.0
        %v1811 = vmax.f32 %v1574, 0.0
        %v1812 = vmax.f32 %v1576, 0.0
        %v1813 = vmax.f32 %v1687, 0.0
        %v1814 = vmax.f32 %v1689, 0.0
        %v1815 = vmax.f32 %v1352, 0.0
        %v1816 = vmax.f32 %v1354, 0.0
        %v1817 = vmax.f32 %v1465, 0.0
        %v1818 = vmax.f32 %v1467, 0.0
        %v1819 = vmax.f32 %v1578, 0.0
        %v1820 = vmax.f32 %v1580, 0.0
        %v1821 = vmax.f32 %v1691, 0.0
        %v1822 = vmax.f32 %v1693, 0.0
        %v1823 = vpack.c.bf16 %v1703, %v1695
        %v1824 = vpack.c.bf16 %v1704, %v1696
        %v1825 = vpack.c.bf16 %v1705, %v1697
        %v1826 = vpack.c.bf16 %v1706, %v1698
        %v1827 = vpack.c.bf16 %v1707, %v1699
        %v1828 = vpack.c.bf16 %v1708, %v1700
        %v1829 = vpack.c.bf16 %v1709, %v1701
        %v1830 = vpack.c.bf16 %v1710, %v1702
        %v1831 = vpack.c.bf16 %v1719, %v1711
        %v1832 = vpack.c.bf16 %v1720, %v1712
        %v1833 = vpack.c.bf16 %v1721, %v1713
        %v1834 = vpack.c.bf16 %v1722, %v1714
        %v1835 = vpack.c.bf16 %v1723, %v1715
        %v1836 = vpack.c.bf16 %v1724, %v1716
        %v1837 = vpack.c.bf16 %v1725, %v1717
        %v1838 = vpack.c.bf16 %v1726, %v1718
        %v1839 = vpack.c.bf16 %v1735, %v1727
        %v1840 = vpack.c.bf16 %v1736, %v1728
        %v1841 = vpack.c.bf16 %v1737, %v1729
        %v1842 = vpack.c.bf16 %v1738, %v1730
        %v1843 = vpack.c.bf16 %v1739, %v1731
        %v1844 = vpack.c.bf16 %v1740, %v1732
        %v1845 = vpack.c.bf16 %v1741, %v1733
        %v1846 = vpack.c.bf16 %v1742, %v1734
        %v1847 = vpack.c.bf16 %v1751, %v1743
        %v1848 = vpack.c.bf16 %v1752, %v1744
        %v1849 = vpack.c.bf16 %v1753, %v1745
        %v1850 = vpack.c.bf16 %v1754, %v1746
        %v1851 = vpack.c.bf16 %v1755, %v1747
        %v1852 = vpack.c.bf16 %v1756, %v1748
        %v1853 = vpack.c.bf16 %v1757, %v1749
        %v1854 = vpack.c.bf16 %v1758, %v1750
        %v1855 = vpack.c.bf16 %v1767, %v1759
        %v1856 = vpack.c.bf16 %v1768, %v1760
        %v1857 = vpack.c.bf16 %v1769, %v1761
        %v1858 = vpack.c.bf16 %v1770, %v1762
        %v1859 = vpack.c.bf16 %v1771, %v1763
        %v1860 = vpack.c.bf16 %v1772, %v1764
        %v1861 = vpack.c.bf16 %v1773, %v1765
        %v1862 = vpack.c.bf16 %v1774, %v1766
        %v1863 = vpack.c.bf16 %v1783, %v1775
        %v1864 = vpack.c.bf16 %v1784, %v1776
        %v1865 = vpack.c.bf16 %v1785, %v1777
        %v1866 = vpack.c.bf16 %v1786, %v1778
        %v1867 = vpack.c.bf16 %v1787, %v1779
        %v1868 = vpack.c.bf16 %v1788, %v1780
        %v1869 = vpack.c.bf16 %v1789, %v1781
        %v1870 = vpack.c.bf16 %v1790, %v1782
        %v1871 = vpack.c.bf16 %v1799, %v1791
        %v1872 = vpack.c.bf16 %v1800, %v1792
        %v1873 = vpack.c.bf16 %v1801, %v1793
        %v1874 = vpack.c.bf16 %v1802, %v1794
        %v1875 = vpack.c.bf16 %v1803, %v1795
        %v1876 = vpack.c.bf16 %v1804, %v1796
        %v1877 = vpack.c.bf16 %v1805, %v1797
        %v1878 = vpack.c.bf16 %v1806, %v1798
        %v1879 = vpack.c.bf16 %v1815, %v1807
        %v1880 = vpack.c.bf16 %v1816, %v1808
        %v1881 = vpack.c.bf16 %v1817, %v1809
        %v1882 = vpack.c.bf16 %v1818, %v1810
        %v1883 = vpack.c.bf16 %v1819, %v1811
        %v1884 = vpack.c.bf16 %v1820, %v1812
        %v1885 = vpack.c.bf16 %v1821, %v1813
        %v1886 = vpack.c.bf16 %v1822, %v1814
        %v1887 = vld [vmem:[%s3] sm:$0xf]
        %v1888 = vld [vmem:[%s3 + $0x4] sm:$0xf]
        %v1889 = vld [vmem:[%s3 + $0x8] sm:$0xf]
        %v1890 = vld [vmem:[%s3 + $0xc] sm:$0xf]
        %v1891 = vld [vmem:[%s3 + $0x10] sm:$0xf]
        %v1892 = vld [vmem:[%s3 + $0x14] sm:$0xf]
        %v1893 = vld [vmem:[%s3 + $0x18] sm:$0xf]
        %v1894 = vld [vmem:[%s3 + $0x1c] sm:$0xf]
        %v1895 = vld [vmem:[%s3 + $0x20] sm:$0xf]
        %v1896 = vld [vmem:[%s3 + $0x24] sm:$0xf]
        %v1897 = vld [vmem:[%s3 + $0x28] sm:$0xf]
        %v1898 = vld [vmem:[%s3 + $0x2c] sm:$0xf]
        %v1899 = vld [vmem:[%s3 + $0x30] sm:$0xf]
        %v1900 = vld [vmem:[%s3 + $0x34] sm:$0xf]
        %v1901 = vld [vmem:[%s3 + $0x38] sm:$0xf]
        %v1902 = vld [vmem:[%s3 + $0x3c] sm:$0xf]
        %v1903 = vld [vmem:[%s3 + $0x40] sm:$0xf]
        %v1904 = vld [vmem:[%s3 + $0x44] sm:$0xf]
        %v1905 = vld [vmem:[%s3 + $0x48] sm:$0xf]
        %v1906 = vld [vmem:[%s3 + $0x4c] sm:$0xf]
        %v1907 = vld [vmem:[%s3 + $0x50] sm:$0xf]
        %v1908 = vld [vmem:[%s3 + $0x54] sm:$0xf]
        %v1909 = vld [vmem:[%s3 + $0x58] sm:$0xf]
        %v1910 = vld [vmem:[%s3 + $0x5c] sm:$0xf]
        %v1911 = vld [vmem:[%s3 + $0x60] sm:$0xf]
        %v1912 = vld [vmem:[%s3 + $0x64] sm:$0xf]
        %v1913 = vld [vmem:[%s3 + $0x68] sm:$0xf]
        %v1914 = vld [vmem:[%s3 + $0x6c] sm:$0xf]
        %v1915 = vld [vmem:[%s3 + $0x70] sm:$0xf]
        %v1916 = vld [vmem:[%s3 + $0x74] sm:$0xf]
        %v1917 = vld [vmem:[%s3 + $0x78] sm:$0xf]
        %v1918 = vld [vmem:[%s3 + $0x7c] sm:$0xf]
        %v1919 = vld [vmem:[%s3 + $0x80] sm:$0xf]
        %v1920 = vld [vmem:[%s3 + $0x84] sm:$0xf]
        %v1921 = vld [vmem:[%s3 + $0x88] sm:$0xf]
        %v1922 = vld [vmem:[%s3 + $0x8c] sm:$0xf]
        %v1923 = vld [vmem:[%s3 + $0x90] sm:$0xf]
        %v1924 = vld [vmem:[%s3 + $0x94] sm:$0xf]
        %v1925 = vld [vmem:[%s3 + $0x98] sm:$0xf]
        %v1926 = vld [vmem:[%s3 + $0x9c] sm:$0xf]
        %v1927 = vld [vmem:[%s3 + $0xa0] sm:$0xf]
        %v1928 = vld [vmem:[%s3 + $0xa4] sm:$0xf]
        %v1929 = vld [vmem:[%s3 + $0xa8] sm:$0xf]
        %v1930 = vld [vmem:[%s3 + $0xac] sm:$0xf]
        %v1931 = vld [vmem:[%s3 + $0xb0] sm:$0xf]
        %v1932 = vld [vmem:[%s3 + $0xb4] sm:$0xf]
        %v1933 = vld [vmem:[%s3 + $0xb8] sm:$0xf]
        %v1934 = vld [vmem:[%s3 + $0xbc] sm:$0xf]
        %v1935 = vld [vmem:[%s3 + $0xc0] sm:$0xf]
        %v1936 = vld [vmem:[%s3 + $0xc4] sm:$0xf]
        %v1937 = vld [vmem:[%s3 + $0xc8] sm:$0xf]
        %v1938 = vld [vmem:[%s3 + $0xcc] sm:$0xf]
        %v1939 = vld [vmem:[%s3 + $0xd0] sm:$0xf]
        %v1940 = vld [vmem:[%s3 + $0xd4] sm:$0xf]
        %v1941 = vld [vmem:[%s3 + $0xd8] sm:$0xf]
        %v1942 = vld [vmem:[%s3 + $0xdc] sm:$0xf]
        %v1943 = vld [vmem:[%s3 + $0xe0] sm:$0xf]
        %v1944 = vld [vmem:[%s3 + $0xe4] sm:$0xf]
        %v1945 = vld [vmem:[%s3 + $0xe8] sm:$0xf]
        %v1946 = vld [vmem:[%s3 + $0xec] sm:$0xf]
        %v1947 = vld [vmem:[%s3 + $0xf0] sm:$0xf]
        %v1948 = vld [vmem:[%s3 + $0xf4] sm:$0xf]
        %v1949 = vld [vmem:[%s3 + $0xf8] sm:$0xf]
        %v1950 = vld [vmem:[%s3 + $0xfc] sm:$0xf]
        %v1951 = vld [vmem:[%s3 + $0x100] sm:$0xf]
        %v1952 = vld [vmem:[%s3 + $0x104] sm:$0xf]
        %v1953 = vld [vmem:[%s3 + $0x108] sm:$0xf]
        %v1954 = vld [vmem:[%s3 + $0x10c] sm:$0xf]
        %v1955 = vld [vmem:[%s3 + $0x110] sm:$0xf]
        %v1956 = vld [vmem:[%s3 + $0x114] sm:$0xf]
        %v1957 = vld [vmem:[%s3 + $0x118] sm:$0xf]
        %v1958 = vld [vmem:[%s3 + $0x11c] sm:$0xf]
        %v1959 = vld [vmem:[%s3 + $0x120] sm:$0xf]
        %v1960 = vld [vmem:[%s3 + $0x124] sm:$0xf]
        %v1961 = vld [vmem:[%s3 + $0x128] sm:$0xf]
        %v1962 = vld [vmem:[%s3 + $0x12c] sm:$0xf]
        %v1963 = vld [vmem:[%s3 + $0x130] sm:$0xf]
        %v1964 = vld [vmem:[%s3 + $0x134] sm:$0xf]
        %v1965 = vld [vmem:[%s3 + $0x138] sm:$0xf]
        %v1966 = vld [vmem:[%s3 + $0x13c] sm:$0xf]
        %v1967 = vld [vmem:[%s3 + $0x140] sm:$0xf]
        %v1968 = vld [vmem:[%s3 + $0x144] sm:$0xf]
        %v1969 = vld [vmem:[%s3 + $0x148] sm:$0xf]
        %v1970 = vld [vmem:[%s3 + $0x14c] sm:$0xf]
        %v1971 = vld [vmem:[%s3 + $0x150] sm:$0xf]
        %v1972 = vld [vmem:[%s3 + $0x154] sm:$0xf]
        %v1973 = vld [vmem:[%s3 + $0x158] sm:$0xf]
        %v1974 = vld [vmem:[%s3 + $0x15c] sm:$0xf]
        %v1975 = vld [vmem:[%s3 + $0x160] sm:$0xf]
        %v1976 = vld [vmem:[%s3 + $0x164] sm:$0xf]
        %v1977 = vld [vmem:[%s3 + $0x168] sm:$0xf]
        %v1978 = vld [vmem:[%s3 + $0x16c] sm:$0xf]
        %v1979 = vld [vmem:[%s3 + $0x170] sm:$0xf]
        %v1980 = vld [vmem:[%s3 + $0x174] sm:$0xf]
        %v1981 = vld [vmem:[%s3 + $0x178] sm:$0xf]
        %v1982 = vld [vmem:[%s3 + $0x17c] sm:$0xf]
        %v1983 = vld [vmem:[%s3 + $0x180] sm:$0xf]
        %v1984 = vld [vmem:[%s3 + $0x184] sm:$0xf]
        %v1985 = vld [vmem:[%s3 + $0x188] sm:$0xf]
        %v1986 = vld [vmem:[%s3 + $0x18c] sm:$0xf]
        %v1987 = vld [vmem:[%s3 + $0x190] sm:$0xf]
        %v1988 = vld [vmem:[%s3 + $0x194] sm:$0xf]
        %v1989 = vld [vmem:[%s3 + $0x198] sm:$0xf]
        %v1990 = vld [vmem:[%s3 + $0x19c] sm:$0xf]
        %v1991 = vld [vmem:[%s3 + $0x1a0] sm:$0xf]
        %v1992 = vld [vmem:[%s3 + $0x1a4] sm:$0xf]
        %v1993 = vld [vmem:[%s3 + $0x1a8] sm:$0xf]
        %v1994 = vld [vmem:[%s3 + $0x1ac] sm:$0xf]
        %v1995 = vld [vmem:[%s3 + $0x1b0] sm:$0xf]
        %v1996 = vld [vmem:[%s3 + $0x1b4] sm:$0xf]
        %v1997 = vld [vmem:[%s3 + $0x1b8] sm:$0xf]
        %v1998 = vld [vmem:[%s3 + $0x1bc] sm:$0xf]
        %v1999 = vld [vmem:[%s3 + $0x1c0] sm:$0xf]
        %v2000 = vld [vmem:[%s3 + $0x1c4] sm:$0xf]
        %v2001 = vld [vmem:[%s3 + $0x1c8] sm:$0xf]
        %v2002 = vld [vmem:[%s3 + $0x1cc] sm:$0xf]
        %v2003 = vld [vmem:[%s3 + $0x1d0] sm:$0xf]
        %v2004 = vld [vmem:[%s3 + $0x1d4] sm:$0xf]
        %v2005 = vld [vmem:[%s3 + $0x1d8] sm:$0xf]
        %v2006 = vld [vmem:[%s3 + $0x1dc] sm:$0xf]
        %v2007 = vld [vmem:[%s3 + $0x1e0] sm:$0xf]
        %v2008 = vld [vmem:[%s3 + $0x1e4] sm:$0xf]
        %v2009 = vld [vmem:[%s3 + $0x1e8] sm:$0xf]
        %v2010 = vld [vmem:[%s3 + $0x1ec] sm:$0xf]
        %v2011 = vld [vmem:[%s3 + $0x1f0] sm:$0xf]
        %v2012 = vld [vmem:[%s3 + $0x1f4] sm:$0xf]
        %v2013 = vld [vmem:[%s3 + $0x1f8] sm:$0xf]
        %v2014 = vld [vmem:[%s3 + $0x1fc] sm:$0xf]
        %v2015 = vld [vmem:[%s4] sm:$0x1]
        %v2017 = vlaneseq
        %v2018 = vshrl.u32 %v2017, 7
        %v2019 = vsub.s32 0, %v2018
        %v2020 = vrot.slane %v2015, %v2019
        %v2150 = vunpack.c.l.b16 %v1887
        %v2151 = vunpack.c.l.b16 %v1888
        %v2152 = vunpack.c.l.b16 %v1889
        %v2153 = vunpack.c.l.b16 %v1890
        %v2154 = vunpack.c.l.b16 %v1891
        %v2155 = vunpack.c.l.b16 %v1892
        %v2156 = vunpack.c.l.b16 %v1893
        %v2157 = vunpack.c.l.b16 %v1894
        %v2158 = vunpack.c.l.b16 %v1895
        %v2159 = vunpack.c.l.b16 %v1896
        %v2160 = vunpack.c.l.b16 %v1897
        %v2161 = vunpack.c.l.b16 %v1898
        %v2162 = vunpack.c.l.b16 %v1899
        %v2163 = vunpack.c.l.b16 %v1900
        %v2164 = vunpack.c.l.b16 %v1901
        %v2165 = vunpack.c.l.b16 %v1902
        %v2166 = vunpack.c.l.b16 %v1903
        %v2167 = vunpack.c.l.b16 %v1904
        %v2168 = vunpack.c.l.b16 %v1905
        %v2169 = vunpack.c.l.b16 %v1906
        %v2170 = vunpack.c.l.b16 %v1907
        %v2171 = vunpack.c.l.b16 %v1908
        %v2172 = vunpack.c.l.b16 %v1909
        %v2173 = vunpack.c.l.b16 %v1910
        %v2174 = vunpack.c.l.b16 %v1911
        %v2175 = vunpack.c.l.b16 %v1912
        %v2176 = vunpack.c.l.b16 %v1913
        %v2177 = vunpack.c.l.b16 %v1914
        %v2178 = vunpack.c.l.b16 %v1915
        %v2179 = vunpack.c.l.b16 %v1916
        %v2180 = vunpack.c.l.b16 %v1917
        %v2181 = vunpack.c.l.b16 %v1918
        %v2182 = vunpack.c.l.b16 %v1919
        %v2183 = vunpack.c.l.b16 %v1920
        %v2184 = vunpack.c.l.b16 %v1921
        %v2185 = vunpack.c.l.b16 %v1922
        %v2186 = vunpack.c.l.b16 %v1923
        %v2187 = vunpack.c.l.b16 %v1924
        %v2188 = vunpack.c.l.b16 %v1925
        %v2189 = vunpack.c.l.b16 %v1926
        %v2190 = vunpack.c.l.b16 %v1927
        %v2191 = vunpack.c.l.b16 %v1928
        %v2192 = vunpack.c.l.b16 %v1929
        %v2193 = vunpack.c.l.b16 %v1930
        %v2194 = vunpack.c.l.b16 %v1931
        %v2195 = vunpack.c.l.b16 %v1932
        %v2196 = vunpack.c.l.b16 %v1933
        %v2197 = vunpack.c.l.b16 %v1934
        %v2198 = vunpack.c.l.b16 %v1935
        %v2199 = vunpack.c.l.b16 %v1936
        %v2200 = vunpack.c.l.b16 %v1937
        %v2201 = vunpack.c.l.b16 %v1938
        %v2202 = vunpack.c.l.b16 %v1939
        %v2203 = vunpack.c.l.b16 %v1940
        %v2204 = vunpack.c.l.b16 %v1941
        %v2205 = vunpack.c.l.b16 %v1942
        %v2206 = vunpack.c.l.b16 %v1943
        %v2207 = vunpack.c.l.b16 %v1944
        %v2208 = vunpack.c.l.b16 %v1945
        %v2209 = vunpack.c.l.b16 %v1946
        %v2210 = vunpack.c.l.b16 %v1947
        %v2211 = vunpack.c.l.b16 %v1948
        %v2212 = vunpack.c.l.b16 %v1949
        %v2213 = vunpack.c.l.b16 %v1950
        %v2214 = vunpack.c.l.b16 %v1951
        %v2215 = vunpack.c.l.b16 %v1952
        %v2216 = vunpack.c.l.b16 %v1953
        %v2217 = vunpack.c.l.b16 %v1954
        %v2218 = vunpack.c.l.b16 %v1955
        %v2219 = vunpack.c.l.b16 %v1956
        %v2220 = vunpack.c.l.b16 %v1957
        %v2221 = vunpack.c.l.b16 %v1958
        %v2222 = vunpack.c.l.b16 %v1959
        %v2223 = vunpack.c.l.b16 %v1960
        %v2224 = vunpack.c.l.b16 %v1961
        %v2225 = vunpack.c.l.b16 %v1962
        %v2226 = vunpack.c.l.b16 %v1963
        %v2227 = vunpack.c.l.b16 %v1964
        %v2228 = vunpack.c.l.b16 %v1965
        %v2229 = vunpack.c.l.b16 %v1966
        %v2230 = vunpack.c.l.b16 %v1967
        %v2231 = vunpack.c.l.b16 %v1968
        %v2232 = vunpack.c.l.b16 %v1969
        %v2233 = vunpack.c.l.b16 %v1970
        %v2234 = vunpack.c.l.b16 %v1971
        %v2235 = vunpack.c.l.b16 %v1972
        %v2236 = vunpack.c.l.b16 %v1973
        %v2237 = vunpack.c.l.b16 %v1974
        %v2238 = vunpack.c.l.b16 %v1975
        %v2239 = vunpack.c.l.b16 %v1976
        %v2240 = vunpack.c.l.b16 %v1977
        %v2241 = vunpack.c.l.b16 %v1978
        %v2242 = vunpack.c.l.b16 %v1979
        %v2243 = vunpack.c.l.b16 %v1980
        %v2244 = vunpack.c.l.b16 %v1981
        %v2245 = vunpack.c.l.b16 %v1982
        %v2246 = vunpack.c.l.b16 %v1983
        %v2247 = vunpack.c.l.b16 %v1984
        %v2248 = vunpack.c.l.b16 %v1985
        %v2249 = vunpack.c.l.b16 %v1986
        %v2250 = vunpack.c.l.b16 %v1987
        %v2251 = vunpack.c.l.b16 %v1988
        %v2252 = vunpack.c.l.b16 %v1989
        %v2253 = vunpack.c.l.b16 %v1990
        %v2254 = vunpack.c.l.b16 %v1991
        %v2255 = vunpack.c.l.b16 %v1992
        %v2256 = vunpack.c.l.b16 %v1993
        %v2257 = vunpack.c.l.b16 %v1994
        %v2258 = vunpack.c.l.b16 %v1995
        %v2259 = vunpack.c.l.b16 %v1996
        %v2260 = vunpack.c.l.b16 %v1997
        %v2261 = vunpack.c.l.b16 %v1998
        %v2262 = vunpack.c.l.b16 %v1999
        %v2263 = vunpack.c.l.b16 %v2000
        %v2264 = vunpack.c.l.b16 %v2001
        %v2265 = vunpack.c.l.b16 %v2002
        %v2266 = vunpack.c.l.b16 %v2003
        %v2267 = vunpack.c.l.b16 %v2004
        %v2268 = vunpack.c.l.b16 %v2005
        %v2269 = vunpack.c.l.b16 %v2006
        %v2270 = vunpack.c.l.b16 %v2007
        %v2271 = vunpack.c.l.b16 %v2008
        %v2272 = vunpack.c.l.b16 %v2009
        %v2273 = vunpack.c.l.b16 %v2010
        %v2274 = vunpack.c.l.b16 %v2011
        %v2275 = vunpack.c.l.b16 %v2012
        %v2276 = vunpack.c.l.b16 %v2013
        %v2277 = vunpack.c.l.b16 %v2014
        %v2278 = vpack.c.b16 %v2151, %v2150
        %v2279 = vpack.c.b16 %v2153, %v2152
        %v2280 = vpack.c.b16 %v2155, %v2154
        %v2281 = vpack.c.b16 %v2157, %v2156
        %v2282 = vpack.c.b16 %v2159, %v2158
        %v2283 = vpack.c.b16 %v2161, %v2160
        %v2284 = vpack.c.b16 %v2163, %v2162
        %v2285 = vpack.c.b16 %v2165, %v2164
        %v2286 = vpack.c.b16 %v2167, %v2166
        %v2287 = vpack.c.b16 %v2169, %v2168
        %v2288 = vpack.c.b16 %v2171, %v2170
        %v2289 = vpack.c.b16 %v2173, %v2172
        %v2290 = vpack.c.b16 %v2175, %v2174
        %v2291 = vpack.c.b16 %v2177, %v2176
        %v2292 = vpack.c.b16 %v2179, %v2178
        %v2293 = vpack.c.b16 %v2181, %v2180
        %v2294 = vpack.c.b16 %v2183, %v2182
        %v2295 = vpack.c.b16 %v2185, %v2184
        %v2296 = vpack.c.b16 %v2187, %v2186
        %v2297 = vpack.c.b16 %v2189, %v2188
        %v2298 = vpack.c.b16 %v2191, %v2190
        %v2299 = vpack.c.b16 %v2193, %v2192
        %v2300 = vpack.c.b16 %v2195, %v2194
        %v2301 = vpack.c.b16 %v2197, %v2196
        %v2302 = vpack.c.b16 %v2199, %v2198
        %v2303 = vpack.c.b16 %v2201, %v2200
        %v2304 = vpack.c.b16 %v2203, %v2202
        %v2305 = vpack.c.b16 %v2205, %v2204
        %v2306 = vpack.c.b16 %v2207, %v2206
        %v2307 = vpack.c.b16 %v2209, %v2208
        %v2308 = vpack.c.b16 %v2211, %v2210
        %v2309 = vpack.c.b16 %v2213, %v2212
        %v2310 = vpack.c.b16 %v2215, %v2214
        %v2311 = vpack.c.b16 %v2217, %v2216
        %v2312 = vpack.c.b16 %v2219, %v2218
        %v2313 = vpack.c.b16 %v2221, %v2220
        %v2314 = vpack.c.b16 %v2223, %v2222
        %v2315 = vpack.c.b16 %v2225, %v2224
        %v2316 = vpack.c.b16 %v2227, %v2226
        %v2317 = vpack.c.b16 %v2229, %v2228
        %v2318 = vpack.c.b16 %v2231, %v2230
        %v2319 = vpack.c.b16 %v2233, %v2232
        %v2320 = vpack.c.b16 %v2235, %v2234
        %v2321 = vpack.c.b16 %v2237, %v2236
        %v2322 = vpack.c.b16 %v2239, %v2238
        %v2323 = vpack.c.b16 %v2241, %v2240
        %v2324 = vpack.c.b16 %v2243, %v2242
        %v2325 = vpack.c.b16 %v2245, %v2244
        %v2326 = vpack.c.b16 %v2247, %v2246
        %v2327 = vpack.c.b16 %v2249, %v2248
        %v2328 = vpack.c.b16 %v2251, %v2250
        %v2329 = vpack.c.b16 %v2253, %v2252
        %v2330 = vpack.c.b16 %v2255, %v2254
        %v2331 = vpack.c.b16 %v2257, %v2256
        %v2332 = vpack.c.b16 %v2259, %v2258
        %v2333 = vpack.c.b16 %v2261, %v2260
        %v2334 = vpack.c.b16 %v2263, %v2262
        %v2335 = vpack.c.b16 %v2265, %v2264
        %v2336 = vpack.c.b16 %v2267, %v2266
        %v2337 = vpack.c.b16 %v2269, %v2268
        %v2338 = vpack.c.b16 %v2271, %v2270
        %v2339 = vpack.c.b16 %v2273, %v2272
        %v2340 = vpack.c.b16 %v2275, %v2274
        %v2341 = vpack.c.b16 %v2277, %v2276
        %2406 = vmatprep.subr.bf16.mxu0 0
        %2407 = vmatpush1.bf16.msra.mxu0 %v2285
        %2408 = vmatprep.subr.bf16.mxu0 0
        %2409 = vmatpush1.bf16.msra.mxu0 %v2284
        %2410 = vmatprep.subr.bf16.mxu0 0
        %2411 = vmatpush1.bf16.msra.mxu0 %v2283
        %2412 = vmatprep.subr.bf16.mxu0 0
        %2413 = vmatpush1.bf16.msra.mxu0 %v2282
        %2414 = vmatprep.subr.bf16.mxu0 0
        %2415 = vmatpush1.bf16.msra.mxu0 %v2281
        %2416 = vmatprep.subr.bf16.mxu0 0
        %2417 = vmatpush1.bf16.msra.mxu0 %v2280
        %2418 = vmatprep.subr.bf16.mxu0 0
        %2419 = vmatpush1.bf16.msra.mxu0 %v2279
        %2420 = vmatprep.subr.bf16.mxu0 0
        %2421 = vmatpush1.bf16.msra.mxu0 %v2278
        %2422 = vmatprep.subr.bf16.mxu0 0
        %2423 = vmatpush2.bf16.msra.mxu0 %v2293
        %2424 = vmatprep.subr.bf16.mxu0 0
        %2425 = vmatpush2.bf16.msra.mxu0 %v2292
        %2426 = vmatprep.subr.bf16.mxu0 0
        %2427 = vmatpush2.bf16.msra.mxu0 %v2291
        %2428 = vmatprep.subr.bf16.mxu0 0
        %2429 = vmatpush2.bf16.msra.mxu0 %v2290
        %2430 = vmatprep.subr.bf16.mxu0 0
        %2431 = vmatpush2.bf16.msra.mxu0 %v2289
        %2432 = vmatprep.subr.bf16.mxu0 0
        %2433 = vmatpush2.bf16.msra.mxu0 %v2288
        %2434 = vmatprep.subr.bf16.mxu0 0
        %2435 = vmatpush2.bf16.msra.mxu0 %v2287
        %2436 = vmatprep.subr.bf16.mxu0 0
        %2437 = vmatpush2.bf16.msra.mxu0 %v2286
        %2438 = vmatprep.mubr.bf16.mxu0 %v1824
        %2439 = vmatmul.mubr.bf16.gmra.mxu0 %v1823
        %v2440 = vpop.f32.mrf.mxu0
        %v2441 = vadd.f32 %v2020, %v2440
        %v2442 = vpop.f32.mrf.mxu0
        %v2443 = vpop.f32.mrf.mxu0
        %v2444 = vadd.f32 %v2020, %v2443
        %v2445 = vpop.f32.mrf.mxu0
        %2446 = vmatprep.mubr.bf16.mxu0 %v1832
        %2447 = vmatmul.mubr.bf16.gmra.mxu0 %v1831
        %v2448 = vpop.f32.mrf.mxu0
        %v2449 = vadd.f32 %v2020, %v2448
        %v2450 = vpop.f32.mrf.mxu0
        %v2451 = vpop.f32.mrf.mxu0
        %v2452 = vadd.f32 %v2020, %v2451
        %v2453 = vpop.f32.mrf.mxu0
        %2454 = vmatprep.mubr.bf16.mxu0 %v1840
        %2455 = vmatmul.mubr.bf16.gmra.mxu0 %v1839
        %v2456 = vpop.f32.mrf.mxu0
        %v2457 = vadd.f32 %v2020, %v2456
        %v2458 = vpop.f32.mrf.mxu0
        %v2459 = vpop.f32.mrf.mxu0
        %v2460 = vadd.f32 %v2020, %v2459
        %v2461 = vpop.f32.mrf.mxu0
        %2462 = vmatprep.mubr.bf16.mxu0 %v1848
        %2463 = vmatmul.mubr.bf16.gmra.mxu0 %v1847
        %v2464 = vpop.f32.mrf.mxu0
        %v2465 = vadd.f32 %v2020, %v2464
        %v2466 = vpop.f32.mrf.mxu0
        %v2467 = vpop.f32.mrf.mxu0
        %v2468 = vadd.f32 %v2020, %v2467
        %v2469 = vpop.f32.mrf.mxu0
        %2470 = vmatprep.mubr.bf16.mxu0 %v1856
        %2471 = vmatmul.mubr.bf16.gmra.mxu0 %v1855
        %v2472 = vpop.f32.mrf.mxu0
        %v2473 = vadd.f32 %v2020, %v2472
        %v2474 = vpop.f32.mrf.mxu0
        %v2475 = vpop.f32.mrf.mxu0
        %v2476 = vadd.f32 %v2020, %v2475
        %v2477 = vpop.f32.mrf.mxu0
        %2478 = vmatprep.mubr.bf16.mxu0 %v1864
        %2479 = vmatmul.mubr.bf16.gmra.mxu0 %v1863
        %v2480 = vpop.f32.mrf.mxu0
        %v2481 = vadd.f32 %v2020, %v2480
        %v2482 = vpop.f32.mrf.mxu0
        %v2483 = vpop.f32.mrf.mxu0
        %v2484 = vadd.f32 %v2020, %v2483
        %v2485 = vpop.f32.mrf.mxu0
        %2486 = vmatprep.mubr.bf16.mxu0 %v1872
        %2487 = vmatmul.mubr.bf16.gmra.mxu0 %v1871
        %v2488 = vpop.f32.mrf.mxu0
        %v2489 = vadd.f32 %v2020, %v2488
        %v2490 = vpop.f32.mrf.mxu0
        %v2491 = vpop.f32.mrf.mxu0
        %v2492 = vadd.f32 %v2020, %v2491
        %v2493 = vpop.f32.mrf.mxu0
        %2494 = vmatprep.mubr.bf16.mxu0 %v1880
        %2495 = vmatmul.mubr.bf16.gmra.mxu0 %v1879
        %v2496 = vpop.f32.mrf.mxu0
        %v2497 = vadd.f32 %v2020, %v2496
        %v2498 = vpop.f32.mrf.mxu0
        %v2499 = vpop.f32.mrf.mxu0
        %v2500 = vadd.f32 %v2020, %v2499
        %v2501 = vpop.f32.mrf.mxu0
        %2502 = vdwg.mxu0
        %2503 = vmatprep.subr.bf16.mxu0 0
        %2504 = vmatpush1.bf16.msra.mxu0 %v2301
        %2505 = vmatprep.subr.bf16.mxu0 0
        %2506 = vmatpush1.bf16.msra.mxu0 %v2300
        %2507 = vmatprep.subr.bf16.mxu0 0
        %2508 = vmatpush1.bf16.msra.mxu0 %v2299
        %2509 = vmatprep.subr.bf16.mxu0 0
        %2510 = vmatpush1.bf16.msra.mxu0 %v2298
        %2511 = vmatprep.subr.bf16.mxu0 0
        %2512 = vmatpush1.bf16.msra.mxu0 %v2297
        %2513 = vmatprep.subr.bf16.mxu0 0
        %2514 = vmatpush1.bf16.msra.mxu0 %v2296
        %2515 = vmatprep.subr.bf16.mxu0 0
        %2516 = vmatpush1.bf16.msra.mxu0 %v2295
        %2517 = vmatprep.subr.bf16.mxu0 0
        %2518 = vmatpush1.bf16.msra.mxu0 %v2294
        %2519 = vmatprep.subr.bf16.mxu0 0
        %2520 = vmatpush2.bf16.msra.mxu0 %v2309
        %2521 = vmatprep.subr.bf16.mxu0 0
        %2522 = vmatpush2.bf16.msra.mxu0 %v2308
        %2523 = vmatprep.subr.bf16.mxu0 0
        %2524 = vmatpush2.bf16.msra.mxu0 %v2307
        %2525 = vmatprep.subr.bf16.mxu0 0
        %2526 = vmatpush2.bf16.msra.mxu0 %v2306
        %2527 = vmatprep.subr.bf16.mxu0 0
        %2528 = vmatpush2.bf16.msra.mxu0 %v2305
        %2529 = vmatprep.subr.bf16.mxu0 0
        %2530 = vmatpush2.bf16.msra.mxu0 %v2304
        %2531 = vmatprep.subr.bf16.mxu0 0
        %2532 = vmatpush2.bf16.msra.mxu0 %v2303
        %2533 = vmatprep.subr.bf16.mxu0 0
        %2534 = vmatpush2.bf16.msra.mxu0 %v2302
        %2535 = vmatprep.mubr.bf16.mxu0 %v1826
        %2536 = vmatmul.mubr.bf16.gmra.mxu0 %v1825
        %v2537 = vpop.f32.mrf.mxu0
        %v2538 = vadd.f32 %v2441, %v2537
        %v2539 = vpop.f32.mrf.mxu0
        %v2540 = vpop.f32.mrf.mxu0
        %v2541 = vadd.f32 %v2444, %v2540
        %v2542 = vpop.f32.mrf.mxu0
        %2543 = vmatprep.mubr.bf16.mxu0 %v1834
        %2544 = vmatmul.mubr.bf16.gmra.mxu0 %v1833
        %v2545 = vpop.f32.mrf.mxu0
        %v2546 = vadd.f32 %v2449, %v2545
        %v2547 = vpop.f32.mrf.mxu0
        %v2548 = vpop.f32.mrf.mxu0
        %v2549 = vadd.f32 %v2452, %v2548
        %v2550 = vpop.f32.mrf.mxu0
        %2551 = vmatprep.mubr.bf16.mxu0 %v1842
        %2552 = vmatmul.mubr.bf16.gmra.mxu0 %v1841
        %v2553 = vpop.f32.mrf.mxu0
        %v2554 = vadd.f32 %v2457, %v2553
        %v2555 = vpop.f32.mrf.mxu0
        %v2556 = vpop.f32.mrf.mxu0
        %v2557 = vadd.f32 %v2460, %v2556
        %v2558 = vpop.f32.mrf.mxu0
        %2559 = vmatprep.mubr.bf16.mxu0 %v1850
        %2560 = vmatmul.mubr.bf16.gmra.mxu0 %v1849
        %v2561 = vpop.f32.mrf.mxu0
        %v2562 = vadd.f32 %v2465, %v2561
        %v2563 = vpop.f32.mrf.mxu0
        %v2564 = vpop.f32.mrf.mxu0
        %v2565 = vadd.f32 %v2468, %v2564
        %v2566 = vpop.f32.mrf.mxu0
        %2567 = vmatprep.mubr.bf16.mxu0 %v1858
        %2568 = vmatmul.mubr.bf16.gmra.mxu0 %v1857
        %v2569 = vpop.f32.mrf.mxu0
        %v2570 = vadd.f32 %v2473, %v2569
        %v2571 = vpop.f32.mrf.mxu0
        %v2572 = vpop.f32.mrf.mxu0
        %v2573 = vadd.f32 %v2476, %v2572
        %v2574 = vpop.f32.mrf.mxu0
        %2575 = vmatprep.mubr.bf16.mxu0 %v1866
        %2576 = vmatmul.mubr.bf16.gmra.mxu0 %v1865
        %v2577 = vpop.f32.mrf.mxu0
        %v2578 = vadd.f32 %v2481, %v2577
        %v2579 = vpop.f32.mrf.mxu0
        %v2580 = vpop.f32.mrf.mxu0
        %v2581 = vadd.f32 %v2484, %v2580
        %v2582 = vpop.f32.mrf.mxu0
        %2583 = vmatprep.mubr.bf16.mxu0 %v1874
        %2584 = vmatmul.mubr.bf16.gmra.mxu0 %v1873
        %v2585 = vpop.f32.mrf.mxu0
        %v2586 = vadd.f32 %v2489, %v2585
        %v2587 = vpop.f32.mrf.mxu0
        %v2588 = vpop.f32.mrf.mxu0
        %v2589 = vadd.f32 %v2492, %v2588
        %v2590 = vpop.f32.mrf.mxu0
        %2591 = vmatprep.mubr.bf16.mxu0 %v1882
        %2592 = vmatmul.mubr.bf16.gmra.mxu0 %v1881
        %v2593 = vpop.f32.mrf.mxu0
        %v2594 = vadd.f32 %v2497, %v2593
        %v2595 = vpop.f32.mrf.mxu0
        %v2596 = vpop.f32.mrf.mxu0
        %v2597 = vadd.f32 %v2500, %v2596
        %v2598 = vpop.f32.mrf.mxu0
        %2599 = vdwg.mxu0
        %2600 = vmatprep.subr.bf16.mxu0 0
        %2601 = vmatpush1.bf16.msra.mxu0 %v2317
        %2602 = vmatprep.subr.bf16.mxu0 0
        %2603 = vmatpush1.bf16.msra.mxu0 %v2316
        %2604 = vmatprep.subr.bf16.mxu0 0
        %2605 = vmatpush1.bf16.msra.mxu0 %v2315
        %2606 = vmatprep.subr.bf16.mxu0 0
        %2607 = vmatpush1.bf16.msra.mxu0 %v2314
        %2608 = vmatprep.subr.bf16.mxu0 0
        %2609 = vmatpush1.bf16.msra.mxu0 %v2313
        %2610 = vmatprep.subr.bf16.mxu0 0
        %2611 = vmatpush1.bf16.msra.mxu0 %v2312
        %2612 = vmatprep.subr.bf16.mxu0 0
        %2613 = vmatpush1.bf16.msra.mxu0 %v2311
        %2614 = vmatprep.subr.bf16.mxu0 0
        %2615 = vmatpush1.bf16.msra.mxu0 %v2310
        %2616 = vmatprep.subr.bf16.mxu0 0
        %2617 = vmatpush2.bf16.msra.mxu0 %v2325
        %2618 = vmatprep.subr.bf16.mxu0 0
        %2619 = vmatpush2.bf16.msra.mxu0 %v2324
        %2620 = vmatprep.subr.bf16.mxu0 0
        %2621 = vmatpush2.bf16.msra.mxu0 %v2323
        %2622 = vmatprep.subr.bf16.mxu0 0
        %2623 = vmatpush2.bf16.msra.mxu0 %v2322
        %2624 = vmatprep.subr.bf16.mxu0 0
        %2625 = vmatpush2.bf16.msra.mxu0 %v2321
        %2626 = vmatprep.subr.bf16.mxu0 0
        %2627 = vmatpush2.bf16.msra.mxu0 %v2320
        %2628 = vmatprep.subr.bf16.mxu0 0
        %2629 = vmatpush2.bf16.msra.mxu0 %v2319
        %2630 = vmatprep.subr.bf16.mxu0 0
        %2631 = vmatpush2.bf16.msra.mxu0 %v2318
        %2632 = vmatprep.mubr.bf16.mxu0 %v1828
        %2633 = vmatmul.mubr.bf16.gmra.mxu0 %v1827
        %v2634 = vpop.f32.mrf.mxu0
        %v2635 = vadd.f32 %v2538, %v2634
        %v2636 = vpop.f32.mrf.mxu0
        %v2637 = vpop.f32.mrf.mxu0
        %v2638 = vadd.f32 %v2541, %v2637
        %v2639 = vpop.f32.mrf.mxu0
        %2640 = vmatprep.mubr.bf16.mxu0 %v1836
        %2641 = vmatmul.mubr.bf16.gmra.mxu0 %v1835
        %v2642 = vpop.f32.mrf.mxu0
        %v2643 = vadd.f32 %v2546, %v2642
        %v2644 = vpop.f32.mrf.mxu0
        %v2645 = vpop.f32.mrf.mxu0
        %v2646 = vadd.f32 %v2549, %v2645
        %v2647 = vpop.f32.mrf.mxu0
        %2648 = vmatprep.mubr.bf16.mxu0 %v1844
        %2649 = vmatmul.mubr.bf16.gmra.mxu0 %v1843
        %v2650 = vpop.f32.mrf.mxu0
        %v2651 = vadd.f32 %v2554, %v2650
        %v2652 = vpop.f32.mrf.mxu0
        %v2653 = vpop.f32.mrf.mxu0
        %v2654 = vadd.f32 %v2557, %v2653
        %v2655 = vpop.f32.mrf.mxu0
        %2656 = vmatprep.mubr.bf16.mxu0 %v1852
        %2657 = vmatmul.mubr.bf16.gmra.mxu0 %v1851
        %v2658 = vpop.f32.mrf.mxu0
        %v2659 = vadd.f32 %v2562, %v2658
        %v2660 = vpop.f32.mrf.mxu0
        %v2661 = vpop.f32.mrf.mxu0
        %v2662 = vadd.f32 %v2565, %v2661
        %v2663 = vpop.f32.mrf.mxu0
        %2664 = vmatprep.mubr.bf16.mxu0 %v1860
        %2665 = vmatmul.mubr.bf16.gmra.mxu0 %v1859
        %v2666 = vpop.f32.mrf.mxu0
        %v2667 = vadd.f32 %v2570, %v2666
        %v2668 = vpop.f32.mrf.mxu0
        %v2669 = vpop.f32.mrf.mxu0
        %v2670 = vadd.f32 %v2573, %v2669
        %v2671 = vpop.f32.mrf.mxu0
        %2672 = vmatprep.mubr.bf16.mxu0 %v1868
        %2673 = vmatmul.mubr.bf16.gmra.mxu0 %v1867
        %v2674 = vpop.f32.mrf.mxu0
        %v2675 = vadd.f32 %v2578, %v2674
        %v2676 = vpop.f32.mrf.mxu0
        %v2677 = vpop.f32.mrf.mxu0
        %v2678 = vadd.f32 %v2581, %v2677
        %v2679 = vpop.f32.mrf.mxu0
        %2680 = vmatprep.mubr.bf16.mxu0 %v1876
        %2681 = vmatmul.mubr.bf16.gmra.mxu0 %v1875
        %v2682 = vpop.f32.mrf.mxu0
        %v2683 = vadd.f32 %v2586, %v2682
        %v2684 = vpop.f32.mrf.mxu0
        %v2685 = vpop.f32.mrf.mxu0
        %v2686 = vadd.f32 %v2589, %v2685
        %v2687 = vpop.f32.mrf.mxu0
        %2688 = vmatprep.mubr.bf16.mxu0 %v1884
        %2689 = vmatmul.mubr.bf16.gmra.mxu0 %v1883
        %v2690 = vpop.f32.mrf.mxu0
        %v2691 = vadd.f32 %v2594, %v2690
        %v2692 = vpop.f32.mrf.mxu0
        %v2693 = vpop.f32.mrf.mxu0
        %v2694 = vadd.f32 %v2597, %v2693
        %v2695 = vpop.f32.mrf.mxu0
        %2696 = vdwg.mxu0
        %2697 = vmatprep.subr.bf16.mxu0 0
        %2698 = vmatpush1.bf16.msra.mxu0 %v2333
        %2699 = vmatprep.subr.bf16.mxu0 0
        %2700 = vmatpush1.bf16.msra.mxu0 %v2332
        %2701 = vmatprep.subr.bf16.mxu0 0
        %2702 = vmatpush1.bf16.msra.mxu0 %v2331
        %2703 = vmatprep.subr.bf16.mxu0 0
        %2704 = vmatpush1.bf16.msra.mxu0 %v2330
        %2705 = vmatprep.subr.bf16.mxu0 0
        %2706 = vmatpush1.bf16.msra.mxu0 %v2329
        %2707 = vmatprep.subr.bf16.mxu0 0
        %2708 = vmatpush1.bf16.msra.mxu0 %v2328
        %2709 = vmatprep.subr.bf16.mxu0 0
        %2710 = vmatpush1.bf16.msra.mxu0 %v2327
        %2711 = vmatprep.subr.bf16.mxu0 0
        %2712 = vmatpush1.bf16.msra.mxu0 %v2326
        %2713 = vmatprep.subr.bf16.mxu0 0
        %2714 = vmatpush2.bf16.msra.mxu0 %v2341
        %2715 = vmatprep.subr.bf16.mxu0 0
        %2716 = vmatpush2.bf16.msra.mxu0 %v2340
        %2717 = vmatprep.subr.bf16.mxu0 0
        %2718 = vmatpush2.bf16.msra.mxu0 %v2339
        %2719 = vmatprep.subr.bf16.mxu0 0
        %2720 = vmatpush2.bf16.msra.mxu0 %v2338
        %2721 = vmatprep.subr.bf16.mxu0 0
        %2722 = vmatpush2.bf16.msra.mxu0 %v2337
        %2723 = vmatprep.subr.bf16.mxu0 0
        %2724 = vmatpush2.bf16.msra.mxu0 %v2336
        %2725 = vmatprep.subr.bf16.mxu0 0
        %2726 = vmatpush2.bf16.msra.mxu0 %v2335
        %2727 = vmatprep.subr.bf16.mxu0 0
        %2728 = vmatpush2.bf16.msra.mxu0 %v2334
        %2729 = vmatprep.mubr.bf16.mxu0 %v1830
        %2730 = vmatmul.mubr.bf16.gmra.mxu0 %v1829
        %v2731 = vpop.f32.mrf.mxu0
        %v2732 = vadd.f32 %v2635, %v2731
        %v2733 = vpop.f32.mrf.mxu0
        %v2734 = vpop.f32.mrf.mxu0
        %v2735 = vadd.f32 %v2638, %v2734
        %v2736 = vpop.f32.mrf.mxu0
        %2737 = vmatprep.mubr.bf16.mxu0 %v1838
        %2738 = vmatmul.mubr.bf16.gmra.mxu0 %v1837
        %v2739 = vpop.f32.mrf.mxu0
        %v2740 = vadd.f32 %v2643, %v2739
        %v2741 = vpop.f32.mrf.mxu0
        %v2742 = vpop.f32.mrf.mxu0
        %v2743 = vadd.f32 %v2646, %v2742
        %v2744 = vpop.f32.mrf.mxu0
        %2745 = vmatprep.mubr.bf16.mxu0 %v1846
        %2746 = vmatmul.mubr.bf16.gmra.mxu0 %v1845
        %v2747 = vpop.f32.mrf.mxu0
        %v2748 = vadd.f32 %v2651, %v2747
        %v2749 = vpop.f32.mrf.mxu0
        %v2750 = vpop.f32.mrf.mxu0
        %v2751 = vadd.f32 %v2654, %v2750
        %v2752 = vpop.f32.mrf.mxu0
        %2753 = vmatprep.mubr.bf16.mxu0 %v1854
        %2754 = vmatmul.mubr.bf16.gmra.mxu0 %v1853
        %v2755 = vpop.f32.mrf.mxu0
        %v2756 = vadd.f32 %v2659, %v2755
        %v2757 = vpop.f32.mrf.mxu0
        %v2758 = vpop.f32.mrf.mxu0
        %v2759 = vadd.f32 %v2662, %v2758
        %v2760 = vpop.f32.mrf.mxu0
        %2761 = vmatprep.mubr.bf16.mxu0 %v1862
        %2762 = vmatmul.mubr.bf16.gmra.mxu0 %v1861
        %v2763 = vpop.f32.mrf.mxu0
        %v2764 = vadd.f32 %v2667, %v2763
        %v2765 = vpop.f32.mrf.mxu0
        %v2766 = vpop.f32.mrf.mxu0
        %v2767 = vadd.f32 %v2670, %v2766
        %v2768 = vpop.f32.mrf.mxu0
        %2769 = vmatprep.mubr.bf16.mxu0 %v1870
        %2770 = vmatmul.mubr.bf16.gmra.mxu0 %v1869
        %v2771 = vpop.f32.mrf.mxu0
        %v2772 = vadd.f32 %v2675, %v2771
        %v2773 = vpop.f32.mrf.mxu0
        %v2774 = vpop.f32.mrf.mxu0
        %v2775 = vadd.f32 %v2678, %v2774
        %v2776 = vpop.f32.mrf.mxu0
        %2777 = vmatprep.mubr.bf16.mxu0 %v1878
        %2778 = vmatmul.mubr.bf16.gmra.mxu0 %v1877
        %v2779 = vpop.f32.mrf.mxu0
        %v2780 = vadd.f32 %v2683, %v2779
        %v2781 = vpop.f32.mrf.mxu0
        %v2782 = vpop.f32.mrf.mxu0
        %v2783 = vadd.f32 %v2686, %v2782
        %v2784 = vpop.f32.mrf.mxu0
        %2785 = vmatprep.mubr.bf16.mxu0 %v1886
        %2786 = vmatmul.mubr.bf16.gmra.mxu0 %v1885
        %v2787 = vpop.f32.mrf.mxu0
        %v2788 = vadd.f32 %v2691, %v2787
        %v2789 = vpop.f32.mrf.mxu0
        %v2790 = vpop.f32.mrf.mxu0
        %v2791 = vadd.f32 %v2694, %v2790
        %v2792 = vpop.f32.mrf.mxu0
        %2793 = vdwg.mxu0
        %v2794 = vmax.f32 %v2732, 0.0
        %v2795 = vmax.f32 %v2735, 0.0
        %v2796 = vmax.f32 %v2740, 0.0
        %v2797 = vmax.f32 %v2743, 0.0
        %v2798 = vmax.f32 %v2748, 0.0
        %v2799 = vmax.f32 %v2751, 0.0
        %v2800 = vmax.f32 %v2756, 0.0
        %v2801 = vmax.f32 %v2759, 0.0
        %v2802 = vmax.f32 %v2764, 0.0
        %v2803 = vmax.f32 %v2767, 0.0
        %v2804 = vmax.f32 %v2772, 0.0
        %v2805 = vmax.f32 %v2775, 0.0
        %v2806 = vmax.f32 %v2780, 0.0
        %v2807 = vmax.f32 %v2783, 0.0
        %v2808 = vmax.f32 %v2788, 0.0
        %v2809 = vmax.f32 %v2791, 0.0
        %v2810 = vpack.c.bf16 %v2795, %v2794
        %v2811 = vpack.c.bf16 %v2797, %v2796
        %v2812 = vpack.c.bf16 %v2799, %v2798
        %v2813 = vpack.c.bf16 %v2801, %v2800
        %v2814 = vpack.c.bf16 %v2803, %v2802
        %v2815 = vpack.c.bf16 %v2805, %v2804
        %v2816 = vpack.c.bf16 %v2807, %v2806
        %v2817 = vpack.c.bf16 %v2809, %v2808
        %2818 = vst [vmem:[#allocation2] sm:$0xf] %v2810
        %v2820 = vunpack.c.h.b16 %v2810
        %v2821 = vpack.c.b16 %v2820, %v2820
        %2823 = vst [vmem:[#allocation2 + $0x4] sm:$0xf] %v2821
        %2824 = vst [vmem:[#allocation2 + $0x8] sm:$0xf] %v2811
        %v2826 = vunpack.c.h.b16 %v2811
        %v2827 = vpack.c.b16 %v2826, %v2826
        %2829 = vst [vmem:[#allocation2 + $0xc] sm:$0xf] %v2827
        %2830 = vst [vmem:[#allocation2 + $0x10] sm:$0xf] %v2812
        %v2832 = vunpack.c.h.b16 %v2812
        %v2833 = vpack.c.b16 %v2832, %v2832
        %2835 = vst [vmem:[#allocation2 + $0x14] sm:$0xf] %v2833
        %2836 = vst [vmem:[#allocation2 + $0x18] sm:$0xf] %v2813
        %v2838 = vunpack.c.h.b16 %v2813
        %v2839 = vpack.c.b16 %v2838, %v2838
        %2841 = vst [vmem:[#allocation2 + $0x1c] sm:$0xf] %v2839
        %2842 = vst [vmem:[#allocation2 + $0x20] sm:$0xf] %v2814
        %v2844 = vunpack.c.h.b16 %v2814
        %v2845 = vpack.c.b16 %v2844, %v2844
        %2847 = vst [vmem:[#allocation2 + $0x24] sm:$0xf] %v2845
        %2848 = vst [vmem:[#allocation2 + $0x28] sm:$0xf] %v2815
        %v2850 = vunpack.c.h.b16 %v2815
        %v2851 = vpack.c.b16 %v2850, %v2850
        %2853 = vst [vmem:[#allocation2 + $0x2c] sm:$0xf] %v2851
        %2854 = vst [vmem:[#allocation2 + $0x30] sm:$0xf] %v2816
        %v2856 = vunpack.c.h.b16 %v2816
        %v2857 = vpack.c.b16 %v2856, %v2856
        %2859 = vst [vmem:[#allocation2 + $0x34] sm:$0xf] %v2857
        %2860 = vst [vmem:[#allocation2 + $0x38] sm:$0xf] %v2817
        %v2862 = vunpack.c.h.b16 %v2817
        %v2863 = vpack.c.b16 %v2862, %v2862
        %2865 = vst [vmem:[#allocation2 + $0x3c] sm:$0xf] %v2863
        %v2866 = vld [vmem:[#allocation2] sm:$0xff]
        %v2867 = vld [vmem:[#allocation2 + $0x8] sm:$0xff]
        %v2868 = vld [vmem:[#allocation2 + $0x10] sm:$0xff]
        %v2869 = vld [vmem:[#allocation2 + $0x18] sm:$0xff]
        %v2870 = vld [vmem:[#allocation2 + $0x20] sm:$0xff]
        %v2871 = vld [vmem:[#allocation2 + $0x28] sm:$0xff]
        %v2872 = vld [vmem:[#allocation2 + $0x30] sm:$0xff]
        %v2873 = vld [vmem:[#allocation2 + $0x38] sm:$0xff]
        %v2874 = vld [vmem:[%s5] sm:$0xff]
        %v2875 = vld [vmem:[%s5 + $0x8] sm:$0xff]
        %v2876 = vld [vmem:[%s5 + $0x10] sm:$0xff]
        %v2877 = vld [vmem:[%s5 + $0x18] sm:$0xff]
        %v2878 = vld [vmem:[%s5 + $0x20] sm:$0xff]
        %v2879 = vld [vmem:[%s5 + $0x28] sm:$0xff]
        %v2880 = vld [vmem:[%s5 + $0x30] sm:$0xff]
        %v2881 = vld [vmem:[%s5 + $0x38] sm:$0xff]
        %v2882 = vld [vmem:[%s5 + $0x40] sm:$0xff]
        %v2883 = vld [vmem:[%s5 + $0x48] sm:$0xff]
        %v2884 = vld [vmem:[%s5 + $0x50] sm:$0xff]
        %v2885 = vld [vmem:[%s5 + $0x58] sm:$0xff]
        %v2886 = vld [vmem:[%s5 + $0x60] sm:$0xff]
        %v2887 = vld [vmem:[%s5 + $0x68] sm:$0xff]
        %v2888 = vld [vmem:[%s5 + $0x70] sm:$0xff]
        %v2889 = vld [vmem:[%s5 + $0x78] sm:$0xff]
        %v2890 = vld [vmem:[%s5 + $0x80] sm:$0xff]
        %v2891 = vld [vmem:[%s5 + $0x88] sm:$0xff]
        %v2892 = vld [vmem:[%s5 + $0x90] sm:$0xff]
        %v2893 = vld [vmem:[%s5 + $0x98] sm:$0xff]
        %v2894 = vld [vmem:[%s5 + $0xa0] sm:$0xff]
        %v2895 = vld [vmem:[%s5 + $0xa8] sm:$0xff]
        %v2896 = vld [vmem:[%s5 + $0xb0] sm:$0xff]
        %v2897 = vld [vmem:[%s5 + $0xb8] sm:$0xff]
        %v2898 = vld [vmem:[%s5 + $0xc0] sm:$0xff]
        %v2899 = vld [vmem:[%s5 + $0xc8] sm:$0xff]
        %v2900 = vld [vmem:[%s5 + $0xd0] sm:$0xff]
        %v2901 = vld [vmem:[%s5 + $0xd8] sm:$0xff]
        %v2902 = vld [vmem:[%s5 + $0xe0] sm:$0xff]
        %v2903 = vld [vmem:[%s5 + $0xe8] sm:$0xff]
        %v2904 = vld [vmem:[%s5 + $0xf0] sm:$0xff]
        %v2905 = vld [vmem:[%s5 + $0xf8] sm:$0xff]
        %v2906 = vld [vmem:[%s5 + $0x100] sm:$0xff]
        %v2907 = vld [vmem:[%s5 + $0x108] sm:$0xff]
        %v2908 = vld [vmem:[%s5 + $0x110] sm:$0xff]
        %v2909 = vld [vmem:[%s5 + $0x118] sm:$0xff]
        %v2910 = vld [vmem:[%s5 + $0x120] sm:$0xff]
        %v2911 = vld [vmem:[%s5 + $0x128] sm:$0xff]
        %v2912 = vld [vmem:[%s5 + $0x130] sm:$0xff]
        %v2913 = vld [vmem:[%s5 + $0x138] sm:$0xff]
        %v2914 = vld [vmem:[%s5 + $0x140] sm:$0xff]
        %v2915 = vld [vmem:[%s5 + $0x148] sm:$0xff]
        %v2916 = vld [vmem:[%s5 + $0x150] sm:$0xff]
        %v2917 = vld [vmem:[%s5 + $0x158] sm:$0xff]
        %v2918 = vld [vmem:[%s5 + $0x160] sm:$0xff]
        %v2919 = vld [vmem:[%s5 + $0x168] sm:$0xff]
        %v2920 = vld [vmem:[%s5 + $0x170] sm:$0xff]
        %v2921 = vld [vmem:[%s5 + $0x178] sm:$0xff]
        %v2922 = vld [vmem:[%s5 + $0x180] sm:$0xff]
        %v2923 = vld [vmem:[%s5 + $0x188] sm:$0xff]
        %v2924 = vld [vmem:[%s5 + $0x190] sm:$0xff]
        %v2925 = vld [vmem:[%s5 + $0x198] sm:$0xff]
        %v2926 = vld [vmem:[%s5 + $0x1a0] sm:$0xff]
        %v2927 = vld [vmem:[%s5 + $0x1a8] sm:$0xff]
        %v2928 = vld [vmem:[%s5 + $0x1b0] sm:$0xff]
        %v2929 = vld [vmem:[%s5 + $0x1b8] sm:$0xff]
        %v2930 = vld [vmem:[%s5 + $0x1c0] sm:$0xff]
        %v2931 = vld [vmem:[%s5 + $0x1c8] sm:$0xff]
        %v2932 = vld [vmem:[%s5 + $0x1d0] sm:$0xff]
        %v2933 = vld [vmem:[%s5 + $0x1d8] sm:$0xff]
        %v2934 = vld [vmem:[%s5 + $0x1e0] sm:$0xff]
        %v2935 = vld [vmem:[%s5 + $0x1e8] sm:$0xff]
        %v2936 = vld [vmem:[%s5 + $0x1f0] sm:$0xff]
        %v2937 = vld [vmem:[%s5 + $0x1f8] sm:$0xff]
        %v2938 = vld [vmem:[%s5 + $0x200] sm:$0xff]
        %v2939 = vld [vmem:[%s5 + $0x208] sm:$0xff]
        %v2940 = vld [vmem:[%s5 + $0x210] sm:$0xff]
        %v2941 = vld [vmem:[%s5 + $0x218] sm:$0xff]
        %v2942 = vld [vmem:[%s5 + $0x220] sm:$0xff]
        %v2943 = vld [vmem:[%s5 + $0x228] sm:$0xff]
        %v2944 = vld [vmem:[%s5 + $0x230] sm:$0xff]
        %v2945 = vld [vmem:[%s5 + $0x238] sm:$0xff]
        %v2946 = vld [vmem:[%s5 + $0x240] sm:$0xff]
        %v2947 = vld [vmem:[%s5 + $0x248] sm:$0xff]
        %v2948 = vld [vmem:[%s5 + $0x250] sm:$0xff]
        %v2949 = vld [vmem:[%s5 + $0x258] sm:$0xff]
        %v2950 = vld [vmem:[%s5 + $0x260] sm:$0xff]
        %v2951 = vld [vmem:[%s5 + $0x268] sm:$0xff]
        %v2952 = vld [vmem:[%s5 + $0x270] sm:$0xff]
        %v2953 = vld [vmem:[%s5 + $0x278] sm:$0xff]
        %v2954 = vld [vmem:[%s5 + $0x280] sm:$0xff]
        %v2955 = vld [vmem:[%s5 + $0x288] sm:$0xff]
        %v2956 = vld [vmem:[%s5 + $0x290] sm:$0xff]
        %v2957 = vld [vmem:[%s5 + $0x298] sm:$0xff]
        %v2958 = vld [vmem:[%s5 + $0x2a0] sm:$0xff]
        %v2959 = vld [vmem:[%s5 + $0x2a8] sm:$0xff]
        %v2960 = vld [vmem:[%s5 + $0x2b0] sm:$0xff]
        %v2961 = vld [vmem:[%s5 + $0x2b8] sm:$0xff]
        %v2962 = vld [vmem:[%s5 + $0x2c0] sm:$0xff]
        %v2963 = vld [vmem:[%s5 + $0x2c8] sm:$0xff]
        %v2964 = vld [vmem:[%s5 + $0x2d0] sm:$0xff]
        %v2965 = vld [vmem:[%s5 + $0x2d8] sm:$0xff]
        %v2966 = vld [vmem:[%s5 + $0x2e0] sm:$0xff]
        %v2967 = vld [vmem:[%s5 + $0x2e8] sm:$0xff]
        %v2968 = vld [vmem:[%s5 + $0x2f0] sm:$0xff]
        %v2969 = vld [vmem:[%s5 + $0x2f8] sm:$0xff]
        %v2970 = vld [vmem:[%s5 + $0x300] sm:$0xff]
        %v2971 = vld [vmem:[%s5 + $0x308] sm:$0xff]
        %v2972 = vld [vmem:[%s5 + $0x310] sm:$0xff]
        %v2973 = vld [vmem:[%s5 + $0x318] sm:$0xff]
        %v2974 = vld [vmem:[%s5 + $0x320] sm:$0xff]
        %v2975 = vld [vmem:[%s5 + $0x328] sm:$0xff]
        %v2976 = vld [vmem:[%s5 + $0x330] sm:$0xff]
        %v2977 = vld [vmem:[%s5 + $0x338] sm:$0xff]
        %v2978 = vld [vmem:[%s5 + $0x340] sm:$0xff]
        %v2979 = vld [vmem:[%s5 + $0x348] sm:$0xff]
        %v2980 = vld [vmem:[%s5 + $0x350] sm:$0xff]
        %v2981 = vld [vmem:[%s5 + $0x358] sm:$0xff]
        %v2982 = vld [vmem:[%s5 + $0x360] sm:$0xff]
        %v2983 = vld [vmem:[%s5 + $0x368] sm:$0xff]
        %v2984 = vld [vmem:[%s5 + $0x370] sm:$0xff]
        %v2985 = vld [vmem:[%s5 + $0x378] sm:$0xff]
        %v2986 = vld [vmem:[%s5 + $0x380] sm:$0xff]
        %v2987 = vld [vmem:[%s5 + $0x388] sm:$0xff]
        %v2988 = vld [vmem:[%s5 + $0x390] sm:$0xff]
        %v2989 = vld [vmem:[%s5 + $0x398] sm:$0xff]
        %v2990 = vld [vmem:[%s5 + $0x3a0] sm:$0xff]
        %v2991 = vld [vmem:[%s5 + $0x3a8] sm:$0xff]
        %v2992 = vld [vmem:[%s5 + $0x3b0] sm:$0xff]
        %v2993 = vld [vmem:[%s5 + $0x3b8] sm:$0xff]
        %v2994 = vld [vmem:[%s5 + $0x3c0] sm:$0xff]
        %v2995 = vld [vmem:[%s5 + $0x3c8] sm:$0xff]
        %v2996 = vld [vmem:[%s5 + $0x3d0] sm:$0xff]
        %v2997 = vld [vmem:[%s5 + $0x3d8] sm:$0xff]
        %v2998 = vld [vmem:[%s5 + $0x3e0] sm:$0xff]
        %v2999 = vld [vmem:[%s5 + $0x3e8] sm:$0xff]
        %v3000 = vld [vmem:[%s5 + $0x3f0] sm:$0xff]
        %v3001 = vld [vmem:[%s5 + $0x3f8] sm:$0xff]
        %v3002 = vld [vmem:[%s5 + $0x400] sm:$0xff]
        %v3003 = vld [vmem:[%s5 + $0x408] sm:$0xff]
        %v3004 = vld [vmem:[%s5 + $0x410] sm:$0xff]
        %v3005 = vld [vmem:[%s5 + $0x418] sm:$0xff]
        %v3006 = vld [vmem:[%s5 + $0x420] sm:$0xff]
        %v3007 = vld [vmem:[%s5 + $0x428] sm:$0xff]
        %v3008 = vld [vmem:[%s5 + $0x430] sm:$0xff]
        %v3009 = vld [vmem:[%s5 + $0x438] sm:$0xff]
        %v3010 = vld [vmem:[%s5 + $0x440] sm:$0xff]
        %v3011 = vld [vmem:[%s5 + $0x448] sm:$0xff]
        %v3012 = vld [vmem:[%s5 + $0x450] sm:$0xff]
        %v3013 = vld [vmem:[%s5 + $0x458] sm:$0xff]
        %v3014 = vld [vmem:[%s5 + $0x460] sm:$0xff]
        %v3015 = vld [vmem:[%s5 + $0x468] sm:$0xff]
        %v3016 = vld [vmem:[%s5 + $0x470] sm:$0xff]
        %v3017 = vld [vmem:[%s5 + $0x478] sm:$0xff]
        %v3018 = vld [vmem:[%s5 + $0x480] sm:$0xff]
        %v3019 = vld [vmem:[%s5 + $0x488] sm:$0xff]
        %v3020 = vld [vmem:[%s5 + $0x490] sm:$0xff]
        %v3021 = vld [vmem:[%s5 + $0x498] sm:$0xff]
        %v3022 = vld [vmem:[%s5 + $0x4a0] sm:$0xff]
        %v3023 = vld [vmem:[%s5 + $0x4a8] sm:$0xff]
        %v3024 = vld [vmem:[%s5 + $0x4b0] sm:$0xff]
        %v3025 = vld [vmem:[%s5 + $0x4b8] sm:$0xff]
        %v3026 = vld [vmem:[%s5 + $0x4c0] sm:$0xff]
        %v3027 = vld [vmem:[%s5 + $0x4c8] sm:$0xff]
        %v3028 = vld [vmem:[%s5 + $0x4d0] sm:$0xff]
        %v3029 = vld [vmem:[%s5 + $0x4d8] sm:$0xff]
        %v3030 = vld [vmem:[%s5 + $0x4e0] sm:$0xff]
        %v3031 = vld [vmem:[%s5 + $0x4e8] sm:$0xff]
        %v3032 = vld [vmem:[%s5 + $0x4f0] sm:$0xff]
        %v3033 = vld [vmem:[%s5 + $0x4f8] sm:$0xff]
        %v3034 = vld [vmem:[%s5 + $0x500] sm:$0xff]
        %v3035 = vld [vmem:[%s5 + $0x508] sm:$0xff]
        %v3036 = vld [vmem:[%s5 + $0x510] sm:$0xff]
        %v3037 = vld [vmem:[%s5 + $0x518] sm:$0xff]
        %v3038 = vld [vmem:[%s5 + $0x520] sm:$0xff]
        %v3039 = vld [vmem:[%s5 + $0x528] sm:$0xff]
        %v3040 = vld [vmem:[%s5 + $0x530] sm:$0xff]
        %v3041 = vld [vmem:[%s5 + $0x538] sm:$0xff]
        %v3042 = vld [vmem:[%s5 + $0x540] sm:$0xff]
        %v3043 = vld [vmem:[%s5 + $0x548] sm:$0xff]
        %v3044 = vld [vmem:[%s5 + $0x550] sm:$0xff]
        %v3045 = vld [vmem:[%s5 + $0x558] sm:$0xff]
        %v3046 = vld [vmem:[%s5 + $0x560] sm:$0xff]
        %v3047 = vld [vmem:[%s5 + $0x568] sm:$0xff]
        %v3048 = vld [vmem:[%s5 + $0x570] sm:$0xff]
        %v3049 = vld [vmem:[%s5 + $0x578] sm:$0xff]
        %v3050 = vld [vmem:[%s5 + $0x580] sm:$0xff]
        %v3051 = vld [vmem:[%s5 + $0x588] sm:$0xff]
        %v3052 = vld [vmem:[%s5 + $0x590] sm:$0xff]
        %v3053 = vld [vmem:[%s5 + $0x598] sm:$0xff]
        %v3054 = vld [vmem:[%s5 + $0x5a0] sm:$0xff]
        %v3055 = vld [vmem:[%s5 + $0x5a8] sm:$0xff]
        %v3056 = vld [vmem:[%s5 + $0x5b0] sm:$0xff]
        %v3057 = vld [vmem:[%s5 + $0x5b8] sm:$0xff]
        %v3058 = vld [vmem:[%s5 + $0x5c0] sm:$0xff]
        %v3059 = vld [vmem:[%s5 + $0x5c8] sm:$0xff]
        %v3060 = vld [vmem:[%s5 + $0x5d0] sm:$0xff]
        %v3061 = vld [vmem:[%s5 + $0x5d8] sm:$0xff]
        %v3062 = vld [vmem:[%s5 + $0x5e0] sm:$0xff]
        %v3063 = vld [vmem:[%s5 + $0x5e8] sm:$0xff]
        %v3064 = vld [vmem:[%s5 + $0x5f0] sm:$0xff]
        %v3065 = vld [vmem:[%s5 + $0x5f8] sm:$0xff]
        %v3066 = vld [vmem:[%s5 + $0x600] sm:$0xff]
        %v3067 = vld [vmem:[%s5 + $0x608] sm:$0xff]
        %v3068 = vld [vmem:[%s5 + $0x610] sm:$0xff]
        %v3069 = vld [vmem:[%s5 + $0x618] sm:$0xff]
        %v3070 = vld [vmem:[%s5 + $0x620] sm:$0xff]
        %v3071 = vld [vmem:[%s5 + $0x628] sm:$0xff]
        %v3072 = vld [vmem:[%s5 + $0x630] sm:$0xff]
        %v3073 = vld [vmem:[%s5 + $0x638] sm:$0xff]
        %v3074 = vld [vmem:[%s5 + $0x640] sm:$0xff]
        %v3075 = vld [vmem:[%s5 + $0x648] sm:$0xff]
        %v3076 = vld [vmem:[%s5 + $0x650] sm:$0xff]
        %v3077 = vld [vmem:[%s5 + $0x658] sm:$0xff]
        %v3078 = vld [vmem:[%s5 + $0x660] sm:$0xff]
        %v3079 = vld [vmem:[%s5 + $0x668] sm:$0xff]
        %v3080 = vld [vmem:[%s5 + $0x670] sm:$0xff]
        %v3081 = vld [vmem:[%s5 + $0x678] sm:$0xff]
        %v3082 = vld [vmem:[%s5 + $0x680] sm:$0xff]
        %v3083 = vld [vmem:[%s5 + $0x688] sm:$0xff]
        %v3084 = vld [vmem:[%s5 + $0x690] sm:$0xff]
        %v3085 = vld [vmem:[%s5 + $0x698] sm:$0xff]
        %v3086 = vld [vmem:[%s5 + $0x6a0] sm:$0xff]
        %v3087 = vld [vmem:[%s5 + $0x6a8] sm:$0xff]
        %v3088 = vld [vmem:[%s5 + $0x6b0] sm:$0xff]
        %v3089 = vld [vmem:[%s5 + $0x6b8] sm:$0xff]
        %v3090 = vld [vmem:[%s5 + $0x6c0] sm:$0xff]
        %v3091 = vld [vmem:[%s5 + $0x6c8] sm:$0xff]
        %v3092 = vld [vmem:[%s5 + $0x6d0] sm:$0xff]
        %v3093 = vld [vmem:[%s5 + $0x6d8] sm:$0xff]
        %v3094 = vld [vmem:[%s5 + $0x6e0] sm:$0xff]
        %v3095 = vld [vmem:[%s5 + $0x6e8] sm:$0xff]
        %v3096 = vld [vmem:[%s5 + $0x6f0] sm:$0xff]
        %v3097 = vld [vmem:[%s5 + $0x6f8] sm:$0xff]
        %v3098 = vld [vmem:[%s5 + $0x700] sm:$0xff]
        %v3099 = vld [vmem:[%s5 + $0x708] sm:$0xff]
        %v3100 = vld [vmem:[%s5 + $0x710] sm:$0xff]
        %v3101 = vld [vmem:[%s5 + $0x718] sm:$0xff]
        %v3102 = vld [vmem:[%s5 + $0x720] sm:$0xff]
        %v3103 = vld [vmem:[%s5 + $0x728] sm:$0xff]
        %v3104 = vld [vmem:[%s5 + $0x730] sm:$0xff]
        %v3105 = vld [vmem:[%s5 + $0x738] sm:$0xff]
        %v3106 = vld [vmem:[%s5 + $0x740] sm:$0xff]
        %v3107 = vld [vmem:[%s5 + $0x748] sm:$0xff]
        %v3108 = vld [vmem:[%s5 + $0x750] sm:$0xff]
        %v3109 = vld [vmem:[%s5 + $0x758] sm:$0xff]
        %v3110 = vld [vmem:[%s5 + $0x760] sm:$0xff]
        %v3111 = vld [vmem:[%s5 + $0x768] sm:$0xff]
        %v3112 = vld [vmem:[%s5 + $0x770] sm:$0xff]
        %v3113 = vld [vmem:[%s5 + $0x778] sm:$0xff]
        %v3114 = vld [vmem:[%s5 + $0x780] sm:$0xff]
        %v3115 = vld [vmem:[%s5 + $0x788] sm:$0xff]
        %v3116 = vld [vmem:[%s5 + $0x790] sm:$0xff]
        %v3117 = vld [vmem:[%s5 + $0x798] sm:$0xff]
        %v3118 = vld [vmem:[%s5 + $0x7a0] sm:$0xff]
        %v3119 = vld [vmem:[%s5 + $0x7a8] sm:$0xff]
        %v3120 = vld [vmem:[%s5 + $0x7b0] sm:$0xff]
        %v3121 = vld [vmem:[%s5 + $0x7b8] sm:$0xff]
        %v3122 = vld [vmem:[%s5 + $0x7c0] sm:$0xff]
        %v3123 = vld [vmem:[%s5 + $0x7c8] sm:$0xff]
        %v3124 = vld [vmem:[%s5 + $0x7d0] sm:$0xff]
        %v3125 = vld [vmem:[%s5 + $0x7d8] sm:$0xff]
        %v3126 = vld [vmem:[%s5 + $0x7e0] sm:$0xff]
        %v3127 = vld [vmem:[%s5 + $0x7e8] sm:$0xff]
        %v3128 = vld [vmem:[%s5 + $0x7f0] sm:$0xff]
        %v3129 = vld [vmem:[%s5 + $0x7f8] sm:$0xff]
        %v3130 = vld [vmem:[%s5 + $0x800] sm:$0xff]
        %v3131 = vld [vmem:[%s5 + $0x808] sm:$0xff]
        %v3132 = vld [vmem:[%s5 + $0x810] sm:$0xff]
        %v3133 = vld [vmem:[%s5 + $0x818] sm:$0xff]
        %v3134 = vld [vmem:[%s5 + $0x820] sm:$0xff]
        %v3135 = vld [vmem:[%s5 + $0x828] sm:$0xff]
        %v3136 = vld [vmem:[%s5 + $0x830] sm:$0xff]
        %v3137 = vld [vmem:[%s5 + $0x838] sm:$0xff]
        %v3138 = vld [vmem:[%s5 + $0x840] sm:$0xff]
        %v3139 = vld [vmem:[%s5 + $0x848] sm:$0xff]
        %v3140 = vld [vmem:[%s5 + $0x850] sm:$0xff]
        %v3141 = vld [vmem:[%s5 + $0x858] sm:$0xff]
        %v3142 = vld [vmem:[%s5 + $0x860] sm:$0xff]
        %v3143 = vld [vmem:[%s5 + $0x868] sm:$0xff]
        %v3144 = vld [vmem:[%s5 + $0x870] sm:$0xff]
        %v3145 = vld [vmem:[%s5 + $0x878] sm:$0xff]
        %v3146 = vld [vmem:[%s5 + $0x880] sm:$0xff]
        %v3147 = vld [vmem:[%s5 + $0x888] sm:$0xff]
        %v3148 = vld [vmem:[%s5 + $0x890] sm:$0xff]
        %v3149 = vld [vmem:[%s5 + $0x898] sm:$0xff]
        %v3150 = vld [vmem:[%s5 + $0x8a0] sm:$0xff]
        %v3151 = vld [vmem:[%s5 + $0x8a8] sm:$0xff]
        %v3152 = vld [vmem:[%s5 + $0x8b0] sm:$0xff]
        %v3153 = vld [vmem:[%s5 + $0x8b8] sm:$0xff]
        %v3154 = vld [vmem:[%s5 + $0x8c0] sm:$0xff]
        %v3155 = vld [vmem:[%s5 + $0x8c8] sm:$0xff]
        %v3156 = vld [vmem:[%s5 + $0x8d0] sm:$0xff]
        %v3157 = vld [vmem:[%s5 + $0x8d8] sm:$0xff]
        %v3158 = vld [vmem:[%s5 + $0x8e0] sm:$0xff]
        %v3159 = vld [vmem:[%s5 + $0x8e8] sm:$0xff]
        %v3160 = vld [vmem:[%s5 + $0x8f0] sm:$0xff]
        %v3161 = vld [vmem:[%s5 + $0x8f8] sm:$0xff]
        %v3162 = vld [vmem:[%s5 + $0x900] sm:$0xff]
        %v3163 = vld [vmem:[%s5 + $0x908] sm:$0xff]
        %v3164 = vld [vmem:[%s5 + $0x910] sm:$0xff]
        %v3165 = vld [vmem:[%s5 + $0x918] sm:$0xff]
        %v3166 = vld [vmem:[%s5 + $0x920] sm:$0xff]
        %v3167 = vld [vmem:[%s5 + $0x928] sm:$0xff]
        %v3168 = vld [vmem:[%s5 + $0x930] sm:$0xff]
        %v3169 = vld [vmem:[%s5 + $0x938] sm:$0xff]
        %v3170 = vld [vmem:[%s5 + $0x940] sm:$0xff]
        %v3171 = vld [vmem:[%s5 + $0x948] sm:$0xff]
        %v3172 = vld [vmem:[%s5 + $0x950] sm:$0xff]
        %v3173 = vld [vmem:[%s5 + $0x958] sm:$0xff]
        %v3174 = vld [vmem:[%s5 + $0x960] sm:$0xff]
        %v3175 = vld [vmem:[%s5 + $0x968] sm:$0xff]
        %v3176 = vld [vmem:[%s5 + $0x970] sm:$0xff]
        %v3177 = vld [vmem:[%s5 + $0x978] sm:$0xff]
        %v3178 = vld [vmem:[%s5 + $0x980] sm:$0xff]
        %v3179 = vld [vmem:[%s5 + $0x988] sm:$0xff]
        %v3180 = vld [vmem:[%s5 + $0x990] sm:$0xff]
        %v3181 = vld [vmem:[%s5 + $0x998] sm:$0xff]
        %v3182 = vld [vmem:[%s5 + $0x9a0] sm:$0xff]
        %v3183 = vld [vmem:[%s5 + $0x9a8] sm:$0xff]
        %v3184 = vld [vmem:[%s5 + $0x9b0] sm:$0xff]
        %v3185 = vld [vmem:[%s5 + $0x9b8] sm:$0xff]
        %v3186 = vld [vmem:[%s5 + $0x9c0] sm:$0xff]
        %v3187 = vld [vmem:[%s5 + $0x9c8] sm:$0xff]
        %v3188 = vld [vmem:[%s5 + $0x9d0] sm:$0xff]
        %v3189 = vld [vmem:[%s5 + $0x9d8] sm:$0xff]
        %v3190 = vld [vmem:[%s5 + $0x9e0] sm:$0xff]
        %v3191 = vld [vmem:[%s5 + $0x9e8] sm:$0xff]
        %v3192 = vld [vmem:[%s5 + $0x9f0] sm:$0xff]
        %v3193 = vld [vmem:[%s5 + $0x9f8] sm:$0xff]
        %v3194 = vld [vmem:[%s5 + $0xa00] sm:$0xff]
        %v3195 = vld [vmem:[%s5 + $0xa08] sm:$0xff]
        %v3196 = vld [vmem:[%s5 + $0xa10] sm:$0xff]
        %v3197 = vld [vmem:[%s5 + $0xa18] sm:$0xff]
        %v3198 = vld [vmem:[%s5 + $0xa20] sm:$0xff]
        %v3199 = vld [vmem:[%s5 + $0xa28] sm:$0xff]
        %v3200 = vld [vmem:[%s5 + $0xa30] sm:$0xff]
        %v3201 = vld [vmem:[%s5 + $0xa38] sm:$0xff]
        %v3202 = vld [vmem:[%s5 + $0xa40] sm:$0xff]
        %v3203 = vld [vmem:[%s5 + $0xa48] sm:$0xff]
        %v3204 = vld [vmem:[%s5 + $0xa50] sm:$0xff]
        %v3205 = vld [vmem:[%s5 + $0xa58] sm:$0xff]
        %v3206 = vld [vmem:[%s5 + $0xa60] sm:$0xff]
        %v3207 = vld [vmem:[%s5 + $0xa68] sm:$0xff]
        %v3208 = vld [vmem:[%s5 + $0xa70] sm:$0xff]
        %v3209 = vld [vmem:[%s5 + $0xa78] sm:$0xff]
        %v3210 = vld [vmem:[%s5 + $0xa80] sm:$0xff]
        %v3211 = vld [vmem:[%s5 + $0xa88] sm:$0xff]
        %v3212 = vld [vmem:[%s5 + $0xa90] sm:$0xff]
        %v3213 = vld [vmem:[%s5 + $0xa98] sm:$0xff]
        %v3214 = vld [vmem:[%s5 + $0xaa0] sm:$0xff]
        %v3215 = vld [vmem:[%s5 + $0xaa8] sm:$0xff]
        %v3216 = vld [vmem:[%s5 + $0xab0] sm:$0xff]
        %v3217 = vld [vmem:[%s5 + $0xab8] sm:$0xff]
        %v3218 = vld [vmem:[%s5 + $0xac0] sm:$0xff]
        %v3219 = vld [vmem:[%s5 + $0xac8] sm:$0xff]
        %v3220 = vld [vmem:[%s5 + $0xad0] sm:$0xff]
        %v3221 = vld [vmem:[%s5 + $0xad8] sm:$0xff]
        %v3222 = vld [vmem:[%s5 + $0xae0] sm:$0xff]
        %v3223 = vld [vmem:[%s5 + $0xae8] sm:$0xff]
        %v3224 = vld [vmem:[%s5 + $0xaf0] sm:$0xff]
        %v3225 = vld [vmem:[%s5 + $0xaf8] sm:$0xff]
        %v3226 = vld [vmem:[%s5 + $0xb00] sm:$0xff]
        %v3227 = vld [vmem:[%s5 + $0xb08] sm:$0xff]
        %v3228 = vld [vmem:[%s5 + $0xb10] sm:$0xff]
        %v3229 = vld [vmem:[%s5 + $0xb18] sm:$0xff]
        %v3230 = vld [vmem:[%s5 + $0xb20] sm:$0xff]
        %v3231 = vld [vmem:[%s5 + $0xb28] sm:$0xff]
        %v3232 = vld [vmem:[%s5 + $0xb30] sm:$0xff]
        %v3233 = vld [vmem:[%s5 + $0xb38] sm:$0xff]
        %v3234 = vld [vmem:[%s5 + $0xb40] sm:$0xff]
        %v3235 = vld [vmem:[%s5 + $0xb48] sm:$0xff]
        %v3236 = vld [vmem:[%s5 + $0xb50] sm:$0xff]
        %v3237 = vld [vmem:[%s5 + $0xb58] sm:$0xff]
        %v3238 = vld [vmem:[%s5 + $0xb60] sm:$0xff]
        %v3239 = vld [vmem:[%s5 + $0xb68] sm:$0xff]
        %v3240 = vld [vmem:[%s5 + $0xb70] sm:$0xff]
        %v3241 = vld [vmem:[%s5 + $0xb78] sm:$0xff]
        %v3242 = vld [vmem:[%s5 + $0xb80] sm:$0xff]
        %v3243 = vld [vmem:[%s5 + $0xb88] sm:$0xff]
        %v3244 = vld [vmem:[%s5 + $0xb90] sm:$0xff]
        %v3245 = vld [vmem:[%s5 + $0xb98] sm:$0xff]
        %v3246 = vld [vmem:[%s5 + $0xba0] sm:$0xff]
        %v3247 = vld [vmem:[%s5 + $0xba8] sm:$0xff]
        %v3248 = vld [vmem:[%s5 + $0xbb0] sm:$0xff]
        %v3249 = vld [vmem:[%s5 + $0xbb8] sm:$0xff]
        %v3250 = vld [vmem:[%s5 + $0xbc0] sm:$0xff]
        %v3251 = vld [vmem:[%s5 + $0xbc8] sm:$0xff]
        %v3252 = vld [vmem:[%s5 + $0xbd0] sm:$0xff]
        %v3253 = vld [vmem:[%s5 + $0xbd8] sm:$0xff]
        %v3254 = vld [vmem:[%s5 + $0xbe0] sm:$0xff]
        %v3255 = vld [vmem:[%s5 + $0xbe8] sm:$0xff]
        %v3256 = vld [vmem:[%s5 + $0xbf0] sm:$0xff]
        %v3257 = vld [vmem:[%s5 + $0xbf8] sm:$0xff]
        %v3258 = vld [vmem:[%s5 + $0xc00] sm:$0xff]
        %v3259 = vld [vmem:[%s5 + $0xc08] sm:$0xff]
        %v3260 = vld [vmem:[%s5 + $0xc10] sm:$0xff]
        %v3261 = vld [vmem:[%s5 + $0xc18] sm:$0xff]
        %v3262 = vld [vmem:[%s5 + $0xc20] sm:$0xff]
        %v3263 = vld [vmem:[%s5 + $0xc28] sm:$0xff]
        %v3264 = vld [vmem:[%s5 + $0xc30] sm:$0xff]
        %v3265 = vld [vmem:[%s5 + $0xc38] sm:$0xff]
        %v3266 = vld [vmem:[%s5 + $0xc40] sm:$0xff]
        %v3267 = vld [vmem:[%s5 + $0xc48] sm:$0xff]
        %v3268 = vld [vmem:[%s5 + $0xc50] sm:$0xff]
        %v3269 = vld [vmem:[%s5 + $0xc58] sm:$0xff]
        %v3270 = vld [vmem:[%s5 + $0xc60] sm:$0xff]
        %v3271 = vld [vmem:[%s5 + $0xc68] sm:$0xff]
        %v3272 = vld [vmem:[%s5 + $0xc70] sm:$0xff]
        %v3273 = vld [vmem:[%s5 + $0xc78] sm:$0xff]
        %v3274 = vld [vmem:[%s5 + $0xc80] sm:$0xff]
        %v3275 = vld [vmem:[%s5 + $0xc88] sm:$0xff]
        %v3276 = vld [vmem:[%s5 + $0xc90] sm:$0xff]
        %v3277 = vld [vmem:[%s5 + $0xc98] sm:$0xff]
        %v3278 = vld [vmem:[%s5 + $0xca0] sm:$0xff]
        %v3279 = vld [vmem:[%s5 + $0xca8] sm:$0xff]
        %v3280 = vld [vmem:[%s5 + $0xcb0] sm:$0xff]
        %v3281 = vld [vmem:[%s5 + $0xcb8] sm:$0xff]
        %v3282 = vld [vmem:[%s5 + $0xcc0] sm:$0xff]
        %v3283 = vld [vmem:[%s5 + $0xcc8] sm:$0xff]
        %v3284 = vld [vmem:[%s5 + $0xcd0] sm:$0xff]
        %v3285 = vld [vmem:[%s5 + $0xcd8] sm:$0xff]
        %v3286 = vld [vmem:[%s5 + $0xce0] sm:$0xff]
        %v3287 = vld [vmem:[%s5 + $0xce8] sm:$0xff]
        %v3288 = vld [vmem:[%s5 + $0xcf0] sm:$0xff]
        %v3289 = vld [vmem:[%s5 + $0xcf8] sm:$0xff]
        %v3290 = vld [vmem:[%s5 + $0xd00] sm:$0xff]
        %v3291 = vld [vmem:[%s5 + $0xd08] sm:$0xff]
        %v3292 = vld [vmem:[%s5 + $0xd10] sm:$0xff]
        %v3293 = vld [vmem:[%s5 + $0xd18] sm:$0xff]
        %v3294 = vld [vmem:[%s5 + $0xd20] sm:$0xff]
        %v3295 = vld [vmem:[%s5 + $0xd28] sm:$0xff]
        %v3296 = vld [vmem:[%s5 + $0xd30] sm:$0xff]
        %v3297 = vld [vmem:[%s5 + $0xd38] sm:$0xff]
        %v3298 = vld [vmem:[%s5 + $0xd40] sm:$0xff]
        %v3299 = vld [vmem:[%s5 + $0xd48] sm:$0xff]
        %v3300 = vld [vmem:[%s5 + $0xd50] sm:$0xff]
        %v3301 = vld [vmem:[%s5 + $0xd58] sm:$0xff]
        %v3302 = vld [vmem:[%s5 + $0xd60] sm:$0xff]
        %v3303 = vld [vmem:[%s5 + $0xd68] sm:$0xff]
        %v3304 = vld [vmem:[%s5 + $0xd70] sm:$0xff]
        %v3305 = vld [vmem:[%s5 + $0xd78] sm:$0xff]
        %v3306 = vld [vmem:[%s5 + $0xd80] sm:$0xff]
        %v3307 = vld [vmem:[%s5 + $0xd88] sm:$0xff]
        %v3308 = vld [vmem:[%s5 + $0xd90] sm:$0xff]
        %v3309 = vld [vmem:[%s5 + $0xd98] sm:$0xff]
        %v3310 = vld [vmem:[%s5 + $0xda0] sm:$0xff]
        %v3311 = vld [vmem:[%s5 + $0xda8] sm:$0xff]
        %v3312 = vld [vmem:[%s5 + $0xdb0] sm:$0xff]
        %v3313 = vld [vmem:[%s5 + $0xdb8] sm:$0xff]
        %v3314 = vld [vmem:[%s5 + $0xdc0] sm:$0xff]
        %v3315 = vld [vmem:[%s5 + $0xdc8] sm:$0xff]
        %v3316 = vld [vmem:[%s5 + $0xdd0] sm:$0xff]
        %v3317 = vld [vmem:[%s5 + $0xdd8] sm:$0xff]
        %v3318 = vld [vmem:[%s5 + $0xde0] sm:$0xff]
        %v3319 = vld [vmem:[%s5 + $0xde8] sm:$0xff]
        %v3320 = vld [vmem:[%s5 + $0xdf0] sm:$0xff]
        %v3321 = vld [vmem:[%s5 + $0xdf8] sm:$0xff]
        %v3322 = vld [vmem:[%s5 + $0xe00] sm:$0xff]
        %v3323 = vld [vmem:[%s5 + $0xe08] sm:$0xff]
        %v3324 = vld [vmem:[%s5 + $0xe10] sm:$0xff]
        %v3325 = vld [vmem:[%s5 + $0xe18] sm:$0xff]
        %v3326 = vld [vmem:[%s5 + $0xe20] sm:$0xff]
        %v3327 = vld [vmem:[%s5 + $0xe28] sm:$0xff]
        %v3328 = vld [vmem:[%s5 + $0xe30] sm:$0xff]
        %v3329 = vld [vmem:[%s5 + $0xe38] sm:$0xff]
        %v3330 = vld [vmem:[%s5 + $0xe40] sm:$0xff]
        %v3331 = vld [vmem:[%s5 + $0xe48] sm:$0xff]
        %v3332 = vld [vmem:[%s5 + $0xe50] sm:$0xff]
        %v3333 = vld [vmem:[%s5 + $0xe58] sm:$0xff]
        %v3334 = vld [vmem:[%s5 + $0xe60] sm:$0xff]
        %v3335 = vld [vmem:[%s5 + $0xe68] sm:$0xff]
        %v3336 = vld [vmem:[%s5 + $0xe70] sm:$0xff]
        %v3337 = vld [vmem:[%s5 + $0xe78] sm:$0xff]
        %v3338 = vld [vmem:[%s5 + $0xe80] sm:$0xff]
        %v3339 = vld [vmem:[%s5 + $0xe88] sm:$0xff]
        %v3340 = vld [vmem:[%s5 + $0xe90] sm:$0xff]
        %v3341 = vld [vmem:[%s5 + $0xe98] sm:$0xff]
        %v3342 = vld [vmem:[%s5 + $0xea0] sm:$0xff]
        %v3343 = vld [vmem:[%s5 + $0xea8] sm:$0xff]
        %v3344 = vld [vmem:[%s5 + $0xeb0] sm:$0xff]
        %v3345 = vld [vmem:[%s5 + $0xeb8] sm:$0xff]
        %v3346 = vld [vmem:[%s5 + $0xec0] sm:$0xff]
        %v3347 = vld [vmem:[%s5 + $0xec8] sm:$0xff]
        %v3348 = vld [vmem:[%s5 + $0xed0] sm:$0xff]
        %v3349 = vld [vmem:[%s5 + $0xed8] sm:$0xff]
        %v3350 = vld [vmem:[%s5 + $0xee0] sm:$0xff]
        %v3351 = vld [vmem:[%s5 + $0xee8] sm:$0xff]
        %v3352 = vld [vmem:[%s5 + $0xef0] sm:$0xff]
        %v3353 = vld [vmem:[%s5 + $0xef8] sm:$0xff]
        %v3354 = vld [vmem:[%s5 + $0xf00] sm:$0xff]
        %v3355 = vld [vmem:[%s5 + $0xf08] sm:$0xff]
        %v3356 = vld [vmem:[%s5 + $0xf10] sm:$0xff]
        %v3357 = vld [vmem:[%s5 + $0xf18] sm:$0xff]
        %v3358 = vld [vmem:[%s5 + $0xf20] sm:$0xff]
        %v3359 = vld [vmem:[%s5 + $0xf28] sm:$0xff]
        %v3360 = vld [vmem:[%s5 + $0xf30] sm:$0xff]
        %v3361 = vld [vmem:[%s5 + $0xf38] sm:$0xff]
        %v3362 = vld [vmem:[%s5 + $0xf40] sm:$0xff]
        %v3363 = vld [vmem:[%s5 + $0xf48] sm:$0xff]
        %v3364 = vld [vmem:[%s5 + $0xf50] sm:$0xff]
        %v3365 = vld [vmem:[%s5 + $0xf58] sm:$0xff]
        %v3366 = vld [vmem:[%s5 + $0xf60] sm:$0xff]
        %v3367 = vld [vmem:[%s5 + $0xf68] sm:$0xff]
        %v3368 = vld [vmem:[%s5 + $0xf70] sm:$0xff]
        %v3369 = vld [vmem:[%s5 + $0xf78] sm:$0xff]
        %v3370 = vld [vmem:[%s5 + $0xf80] sm:$0xff]
        %v3371 = vld [vmem:[%s5 + $0xf88] sm:$0xff]
        %v3372 = vld [vmem:[%s5 + $0xf90] sm:$0xff]
        %v3373 = vld [vmem:[%s5 + $0xf98] sm:$0xff]
        %v3374 = vld [vmem:[%s5 + $0xfa0] sm:$0xff]
        %v3375 = vld [vmem:[%s5 + $0xfa8] sm:$0xff]
        %v3376 = vld [vmem:[%s5 + $0xfb0] sm:$0xff]
        %v3377 = vld [vmem:[%s5 + $0xfb8] sm:$0xff]
        %v3378 = vld [vmem:[%s5 + $0xfc0] sm:$0xff]
        %v3379 = vld [vmem:[%s5 + $0xfc8] sm:$0xff]
        %v3380 = vld [vmem:[%s5 + $0xfd0] sm:$0xff]
        %v3381 = vld [vmem:[%s5 + $0xfd8] sm:$0xff]
        %v3382 = vld [vmem:[%s5 + $0xfe0] sm:$0xff]
        %v3383 = vld [vmem:[%s5 + $0xfe8] sm:$0xff]
        %v3384 = vld [vmem:[%s5 + $0xff0] sm:$0xff]
        %v3385 = vld [vmem:[%s5 + $0xff8] sm:$0xff]
        %v3386 = vld [vmem:[%s6] sm:$0xf]
        %v3388 = vlaneseq
        %v3389 = vshrl.u32 %v3388, 7
        %v3390 = vsub.s32 0, %v3389
        %v3391 = vrot.slane %v3386, %v3390
        %v3392 = vlaneseq
        %v3393 = vshrl.u32 %v3392, 7
        %v3394 = vsub.s32 1, %v3393
        %v3395 = vrot.slane %v3386, %v3394
        %v3396 = vlaneseq
        %v3397 = vshrl.u32 %v3396, 7
        %v3398 = vsub.s32 2, %v3397
        %v3399 = vrot.slane %v3386, %v3398
        %v3400 = vlaneseq
        %v3401 = vshrl.u32 %v3400, 7
        %v3402 = vsub.s32 3, %v3401
        %v3403 = vrot.slane %v3386, %v3402
        %v3416 = vunpack.c.l.b16 %v2866
        %v3417 = vunpack.c.h.b16 %v2866
        %v3418 = vunpack.c.l.b16 %v2867
        %v3419 = vunpack.c.h.b16 %v2867
        %v3420 = vunpack.c.l.b16 %v2868
        %v3421 = vunpack.c.h.b16 %v2868
        %v3422 = vunpack.c.l.b16 %v2869
        %v3423 = vunpack.c.h.b16 %v2869
        %v3424 = vunpack.c.l.b16 %v2870
        %v3425 = vunpack.c.h.b16 %v2870
        %v3426 = vunpack.c.l.b16 %v2871
        %v3427 = vunpack.c.h.b16 %v2871
        %v3428 = vunpack.c.l.b16 %v2872
        %v3429 = vunpack.c.h.b16 %v2872
        %v3430 = vunpack.c.l.b16 %v2873
        %v3431 = vunpack.c.h.b16 %v2873
        %v3432 = vpack.c.b16 %v3416, %v3416
        %v3433 = vpack.c.b16 %v3417, %v3417
        %v3434 = vpack.c.b16 %v3418, %v3418
        %v3435 = vpack.c.b16 %v3419, %v3419
        %v3436 = vpack.c.b16 %v3420, %v3420
        %v3437 = vpack.c.b16 %v3421, %v3421
        %v3438 = vpack.c.b16 %v3422, %v3422
        %v3439 = vpack.c.b16 %v3423, %v3423
        %v3440 = vpack.c.b16 %v3424, %v3424
        %v3441 = vpack.c.b16 %v3425, %v3425
        %v3442 = vpack.c.b16 %v3426, %v3426
        %v3443 = vpack.c.b16 %v3427, %v3427
        %v3444 = vpack.c.b16 %v3428, %v3428
        %v3445 = vpack.c.b16 %v3429, %v3429
        %v3446 = vpack.c.b16 %v3430, %v3430
        %v3447 = vpack.c.b16 %v3431, %v3431
        %v3976 = vunpack.c.l.b16 %v2874
        %v3977 = vunpack.c.h.b16 %v2874
        %v3978 = vunpack.c.l.b16 %v2875
        %v3979 = vunpack.c.h.b16 %v2875
        %v3980 = vunpack.c.l.b16 %v2876
        %v3981 = vunpack.c.h.b16 %v2876
        %v3982 = vunpack.c.l.b16 %v2877
        %v3983 = vunpack.c.h.b16 %v2877
        %v3984 = vunpack.c.l.b16 %v2878
        %v3985 = vunpack.c.h.b16 %v2878
        %v3986 = vunpack.c.l.b16 %v2879
        %v3987 = vunpack.c.h.b16 %v2879
        %v3988 = vunpack.c.l.b16 %v2880
        %v3989 = vunpack.c.h.b16 %v2880
        %v3990 = vunpack.c.l.b16 %v2881
        %v3991 = vunpack.c.h.b16 %v2881
        %v3992 = vunpack.c.l.b16 %v2882
        %v3993 = vunpack.c.h.b16 %v2882
        %v3994 = vunpack.c.l.b16 %v2883
        %v3995 = vunpack.c.h.b16 %v2883
        %v3996 = vunpack.c.l.b16 %v2884
        %v3997 = vunpack.c.h.b16 %v2884
        %v3998 = vunpack.c.l.b16 %v2885
        %v3999 = vunpack.c.h.b16 %v2885
        %v4000 = vunpack.c.l.b16 %v2886
        %v4001 = vunpack.c.h.b16 %v2886
        %v4002 = vunpack.c.l.b16 %v2887
        %v4003 = vunpack.c.h.b16 %v2887
        %v4004 = vunpack.c.l.b16 %v2888
        %v4005 = vunpack.c.h.b16 %v2888
        %v4006 = vunpack.c.l.b16 %v2889
        %v4007 = vunpack.c.h.b16 %v2889
        %v4008 = vunpack.c.l.b16 %v2890
        %v4009 = vunpack.c.h.b16 %v2890
        %v4010 = vunpack.c.l.b16 %v2891
        %v4011 = vunpack.c.h.b16 %v2891
        %v4012 = vunpack.c.l.b16 %v2892
        %v4013 = vunpack.c.h.b16 %v2892
        %v4014 = vunpack.c.l.b16 %v2893
        %v4015 = vunpack.c.h.b16 %v2893
        %v4016 = vunpack.c.l.b16 %v2894
        %v4017 = vunpack.c.h.b16 %v2894
        %v4018 = vunpack.c.l.b16 %v2895
        %v4019 = vunpack.c.h.b16 %v2895
        %v4020 = vunpack.c.l.b16 %v2896
        %v4021 = vunpack.c.h.b16 %v2896
        %v4022 = vunpack.c.l.b16 %v2897
        %v4023 = vunpack.c.h.b16 %v2897
        %v4024 = vunpack.c.l.b16 %v2898
        %v4025 = vunpack.c.h.b16 %v2898
        %v4026 = vunpack.c.l.b16 %v2899
        %v4027 = vunpack.c.h.b16 %v2899
        %v4028 = vunpack.c.l.b16 %v2900
        %v4029 = vunpack.c.h.b16 %v2900
        %v4030 = vunpack.c.l.b16 %v2901
        %v4031 = vunpack.c.h.b16 %v2901
        %v4032 = vunpack.c.l.b16 %v2902
        %v4033 = vunpack.c.h.b16 %v2902
        %v4034 = vunpack.c.l.b16 %v2903
        %v4035 = vunpack.c.h.b16 %v2903
        %v4036 = vunpack.c.l.b16 %v2904
        %v4037 = vunpack.c.h.b16 %v2904
        %v4038 = vunpack.c.l.b16 %v2905
        %v4039 = vunpack.c.h.b16 %v2905
        %v4040 = vunpack.c.l.b16 %v2906
        %v4041 = vunpack.c.h.b16 %v2906
        %v4042 = vunpack.c.l.b16 %v2907
        %v4043 = vunpack.c.h.b16 %v2907
        %v4044 = vunpack.c.l.b16 %v2908
        %v4045 = vunpack.c.h.b16 %v2908
        %v4046 = vunpack.c.l.b16 %v2909
        %v4047 = vunpack.c.h.b16 %v2909
        %v4048 = vunpack.c.l.b16 %v2910
        %v4049 = vunpack.c.h.b16 %v2910
        %v4050 = vunpack.c.l.b16 %v2911
        %v4051 = vunpack.c.h.b16 %v2911
        %v4052 = vunpack.c.l.b16 %v2912
        %v4053 = vunpack.c.h.b16 %v2912
        %v4054 = vunpack.c.l.b16 %v2913
        %v4055 = vunpack.c.h.b16 %v2913
        %v4056 = vunpack.c.l.b16 %v2914
        %v4057 = vunpack.c.h.b16 %v2914
        %v4058 = vunpack.c.l.b16 %v2915
        %v4059 = vunpack.c.h.b16 %v2915
        %v4060 = vunpack.c.l.b16 %v2916
        %v4061 = vunpack.c.h.b16 %v2916
        %v4062 = vunpack.c.l.b16 %v2917
        %v4063 = vunpack.c.h.b16 %v2917
        %v4064 = vunpack.c.l.b16 %v2918
        %v4065 = vunpack.c.h.b16 %v2918
        %v4066 = vunpack.c.l.b16 %v2919
        %v4067 = vunpack.c.h.b16 %v2919
        %v4068 = vunpack.c.l.b16 %v2920
        %v4069 = vunpack.c.h.b16 %v2920
        %v4070 = vunpack.c.l.b16 %v2921
        %v4071 = vunpack.c.h.b16 %v2921
        %v4072 = vunpack.c.l.b16 %v2922
        %v4073 = vunpack.c.h.b16 %v2922
        %v4074 = vunpack.c.l.b16 %v2923
        %v4075 = vunpack.c.h.b16 %v2923
        %v4076 = vunpack.c.l.b16 %v2924
        %v4077 = vunpack.c.h.b16 %v2924
        %v4078 = vunpack.c.l.b16 %v2925
        %v4079 = vunpack.c.h.b16 %v2925
        %v4080 = vunpack.c.l.b16 %v2926
        %v4081 = vunpack.c.h.b16 %v2926
        %v4082 = vunpack.c.l.b16 %v2927
        %v4083 = vunpack.c.h.b16 %v2927
        %v4084 = vunpack.c.l.b16 %v2928
        %v4085 = vunpack.c.h.b16 %v2928
        %v4086 = vunpack.c.l.b16 %v2929
        %v4087 = vunpack.c.h.b16 %v2929
        %v4088 = vunpack.c.l.b16 %v2930
        %v4089 = vunpack.c.h.b16 %v2930
        %v4090 = vunpack.c.l.b16 %v2931
        %v4091 = vunpack.c.h.b16 %v2931
        %v4092 = vunpack.c.l.b16 %v2932
        %v4093 = vunpack.c.h.b16 %v2932
        %v4094 = vunpack.c.l.b16 %v2933
        %v4095 = vunpack.c.h.b16 %v2933
        %v4096 = vunpack.c.l.b16 %v2934
        %v4097 = vunpack.c.h.b16 %v2934
        %v4098 = vunpack.c.l.b16 %v2935
        %v4099 = vunpack.c.h.b16 %v2935
        %v4100 = vunpack.c.l.b16 %v2936
        %v4101 = vunpack.c.h.b16 %v2936
        %v4102 = vunpack.c.l.b16 %v2937
        %v4103 = vunpack.c.h.b16 %v2937
        %v4104 = vunpack.c.l.b16 %v2938
        %v4105 = vunpack.c.h.b16 %v2938
        %v4106 = vunpack.c.l.b16 %v2939
        %v4107 = vunpack.c.h.b16 %v2939
        %v4108 = vunpack.c.l.b16 %v2940
        %v4109 = vunpack.c.h.b16 %v2940
        %v4110 = vunpack.c.l.b16 %v2941
        %v4111 = vunpack.c.h.b16 %v2941
        %v4112 = vunpack.c.l.b16 %v2942
        %v4113 = vunpack.c.h.b16 %v2942
        %v4114 = vunpack.c.l.b16 %v2943
        %v4115 = vunpack.c.h.b16 %v2943
        %v4116 = vunpack.c.l.b16 %v2944
        %v4117 = vunpack.c.h.b16 %v2944
        %v4118 = vunpack.c.l.b16 %v2945
        %v4119 = vunpack.c.h.b16 %v2945
        %v4120 = vunpack.c.l.b16 %v2946
        %v4121 = vunpack.c.h.b16 %v2946
        %v4122 = vunpack.c.l.b16 %v2947
        %v4123 = vunpack.c.h.b16 %v2947
        %v4124 = vunpack.c.l.b16 %v2948
        %v4125 = vunpack.c.h.b16 %v2948
        %v4126 = vunpack.c.l.b16 %v2949
        %v4127 = vunpack.c.h.b16 %v2949
        %v4128 = vunpack.c.l.b16 %v2950
        %v4129 = vunpack.c.h.b16 %v2950
        %v4130 = vunpack.c.l.b16 %v2951
        %v4131 = vunpack.c.h.b16 %v2951
        %v4132 = vunpack.c.l.b16 %v2952
        %v4133 = vunpack.c.h.b16 %v2952
        %v4134 = vunpack.c.l.b16 %v2953
        %v4135 = vunpack.c.h.b16 %v2953
        %v4136 = vunpack.c.l.b16 %v2954
        %v4137 = vunpack.c.h.b16 %v2954
        %v4138 = vunpack.c.l.b16 %v2955
        %v4139 = vunpack.c.h.b16 %v2955
        %v4140 = vunpack.c.l.b16 %v2956
        %v4141 = vunpack.c.h.b16 %v2956
        %v4142 = vunpack.c.l.b16 %v2957
        %v4143 = vunpack.c.h.b16 %v2957
        %v4144 = vunpack.c.l.b16 %v2958
        %v4145 = vunpack.c.h.b16 %v2958
        %v4146 = vunpack.c.l.b16 %v2959
        %v4147 = vunpack.c.h.b16 %v2959
        %v4148 = vunpack.c.l.b16 %v2960
        %v4149 = vunpack.c.h.b16 %v2960
        %v4150 = vunpack.c.l.b16 %v2961
        %v4151 = vunpack.c.h.b16 %v2961
        %v4152 = vunpack.c.l.b16 %v2962
        %v4153 = vunpack.c.h.b16 %v2962
        %v4154 = vunpack.c.l.b16 %v2963
        %v4155 = vunpack.c.h.b16 %v2963
        %v4156 = vunpack.c.l.b16 %v2964
        %v4157 = vunpack.c.h.b16 %v2964
        %v4158 = vunpack.c.l.b16 %v2965
        %v4159 = vunpack.c.h.b16 %v2965
        %v4160 = vunpack.c.l.b16 %v2966
        %v4161 = vunpack.c.h.b16 %v2966
        %v4162 = vunpack.c.l.b16 %v2967
        %v4163 = vunpack.c.h.b16 %v2967
        %v4164 = vunpack.c.l.b16 %v2968
        %v4165 = vunpack.c.h.b16 %v2968
        %v4166 = vunpack.c.l.b16 %v2969
        %v4167 = vunpack.c.h.b16 %v2969
        %v4168 = vunpack.c.l.b16 %v2970
        %v4169 = vunpack.c.h.b16 %v2970
        %v4170 = vunpack.c.l.b16 %v2971
        %v4171 = vunpack.c.h.b16 %v2971
        %v4172 = vunpack.c.l.b16 %v2972
        %v4173 = vunpack.c.h.b16 %v2972
        %v4174 = vunpack.c.l.b16 %v2973
        %v4175 = vunpack.c.h.b16 %v2973
        %v4176 = vunpack.c.l.b16 %v2974
        %v4177 = vunpack.c.h.b16 %v2974
        %v4178 = vunpack.c.l.b16 %v2975
        %v4179 = vunpack.c.h.b16 %v2975
        %v4180 = vunpack.c.l.b16 %v2976
        %v4181 = vunpack.c.h.b16 %v2976
        %v4182 = vunpack.c.l.b16 %v2977
        %v4183 = vunpack.c.h.b16 %v2977
        %v4184 = vunpack.c.l.b16 %v2978
        %v4185 = vunpack.c.h.b16 %v2978
        %v4186 = vunpack.c.l.b16 %v2979
        %v4187 = vunpack.c.h.b16 %v2979
        %v4188 = vunpack.c.l.b16 %v2980
        %v4189 = vunpack.c.h.b16 %v2980
        %v4190 = vunpack.c.l.b16 %v2981
        %v4191 = vunpack.c.h.b16 %v2981
        %v4192 = vunpack.c.l.b16 %v2982
        %v4193 = vunpack.c.h.b16 %v2982
        %v4194 = vunpack.c.l.b16 %v2983
        %v4195 = vunpack.c.h.b16 %v2983
        %v4196 = vunpack.c.l.b16 %v2984
        %v4197 = vunpack.c.h.b16 %v2984
        %v4198 = vunpack.c.l.b16 %v2985
        %v4199 = vunpack.c.h.b16 %v2985
        %v4200 = vunpack.c.l.b16 %v2986
        %v4201 = vunpack.c.h.b16 %v2986
        %v4202 = vunpack.c.l.b16 %v2987
        %v4203 = vunpack.c.h.b16 %v2987
        %v4204 = vunpack.c.l.b16 %v2988
        %v4205 = vunpack.c.h.b16 %v2988
        %v4206 = vunpack.c.l.b16 %v2989
        %v4207 = vunpack.c.h.b16 %v2989
        %v4208 = vunpack.c.l.b16 %v2990
        %v4209 = vunpack.c.h.b16 %v2990
        %v4210 = vunpack.c.l.b16 %v2991
        %v4211 = vunpack.c.h.b16 %v2991
        %v4212 = vunpack.c.l.b16 %v2992
        %v4213 = vunpack.c.h.b16 %v2992
        %v4214 = vunpack.c.l.b16 %v2993
        %v4215 = vunpack.c.h.b16 %v2993
        %v4216 = vunpack.c.l.b16 %v2994
        %v4217 = vunpack.c.h.b16 %v2994
        %v4218 = vunpack.c.l.b16 %v2995
        %v4219 = vunpack.c.h.b16 %v2995
        %v4220 = vunpack.c.l.b16 %v2996
        %v4221 = vunpack.c.h.b16 %v2996
        %v4222 = vunpack.c.l.b16 %v2997
        %v4223 = vunpack.c.h.b16 %v2997
        %v4224 = vunpack.c.l.b16 %v2998
        %v4225 = vunpack.c.h.b16 %v2998
        %v4226 = vunpack.c.l.b16 %v2999
        %v4227 = vunpack.c.h.b16 %v2999
        %v4228 = vunpack.c.l.b16 %v3000
        %v4229 = vunpack.c.h.b16 %v3000
        %v4230 = vunpack.c.l.b16 %v3001
        %v4231 = vunpack.c.h.b16 %v3001
        %v4232 = vunpack.c.l.b16 %v3002
        %v4233 = vunpack.c.h.b16 %v3002
        %v4234 = vunpack.c.l.b16 %v3003
        %v4235 = vunpack.c.h.b16 %v3003
        %v4236 = vunpack.c.l.b16 %v3004
        %v4237 = vunpack.c.h.b16 %v3004
        %v4238 = vunpack.c.l.b16 %v3005
        %v4239 = vunpack.c.h.b16 %v3005
        %v4240 = vunpack.c.l.b16 %v3006
        %v4241 = vunpack.c.h.b16 %v3006
        %v4242 = vunpack.c.l.b16 %v3007
        %v4243 = vunpack.c.h.b16 %v3007
        %v4244 = vunpack.c.l.b16 %v3008
        %v4245 = vunpack.c.h.b16 %v3008
        %v4246 = vunpack.c.l.b16 %v3009
        %v4247 = vunpack.c.h.b16 %v3009
        %v4248 = vunpack.c.l.b16 %v3010
        %v4249 = vunpack.c.h.b16 %v3010
        %v4250 = vunpack.c.l.b16 %v3011
        %v4251 = vunpack.c.h.b16 %v3011
        %v4252 = vunpack.c.l.b16 %v3012
        %v4253 = vunpack.c.h.b16 %v3012
        %v4254 = vunpack.c.l.b16 %v3013
        %v4255 = vunpack.c.h.b16 %v3013
        %v4256 = vunpack.c.l.b16 %v3014
        %v4257 = vunpack.c.h.b16 %v3014
        %v4258 = vunpack.c.l.b16 %v3015
        %v4259 = vunpack.c.h.b16 %v3015
        %v4260 = vunpack.c.l.b16 %v3016
        %v4261 = vunpack.c.h.b16 %v3016
        %v4262 = vunpack.c.l.b16 %v3017
        %v4263 = vunpack.c.h.b16 %v3017
        %v4264 = vunpack.c.l.b16 %v3018
        %v4265 = vunpack.c.h.b16 %v3018
        %v4266 = vunpack.c.l.b16 %v3019
        %v4267 = vunpack.c.h.b16 %v3019
        %v4268 = vunpack.c.l.b16 %v3020
        %v4269 = vunpack.c.h.b16 %v3020
        %v4270 = vunpack.c.l.b16 %v3021
        %v4271 = vunpack.c.h.b16 %v3021
        %v4272 = vunpack.c.l.b16 %v3022
        %v4273 = vunpack.c.h.b16 %v3022
        %v4274 = vunpack.c.l.b16 %v3023
        %v4275 = vunpack.c.h.b16 %v3023
        %v4276 = vunpack.c.l.b16 %v3024
        %v4277 = vunpack.c.h.b16 %v3024
        %v4278 = vunpack.c.l.b16 %v3025
        %v4279 = vunpack.c.h.b16 %v3025
        %v4280 = vunpack.c.l.b16 %v3026
        %v4281 = vunpack.c.h.b16 %v3026
        %v4282 = vunpack.c.l.b16 %v3027
        %v4283 = vunpack.c.h.b16 %v3027
        %v4284 = vunpack.c.l.b16 %v3028
        %v4285 = vunpack.c.h.b16 %v3028
        %v4286 = vunpack.c.l.b16 %v3029
        %v4287 = vunpack.c.h.b16 %v3029
        %v4288 = vunpack.c.l.b16 %v3030
        %v4289 = vunpack.c.h.b16 %v3030
        %v4290 = vunpack.c.l.b16 %v3031
        %v4291 = vunpack.c.h.b16 %v3031
        %v4292 = vunpack.c.l.b16 %v3032
        %v4293 = vunpack.c.h.b16 %v3032
        %v4294 = vunpack.c.l.b16 %v3033
        %v4295 = vunpack.c.h.b16 %v3033
        %v4296 = vunpack.c.l.b16 %v3034
        %v4297 = vunpack.c.h.b16 %v3034
        %v4298 = vunpack.c.l.b16 %v3035
        %v4299 = vunpack.c.h.b16 %v3035
        %v4300 = vunpack.c.l.b16 %v3036
        %v4301 = vunpack.c.h.b16 %v3036
        %v4302 = vunpack.c.l.b16 %v3037
        %v4303 = vunpack.c.h.b16 %v3037
        %v4304 = vunpack.c.l.b16 %v3038
        %v4305 = vunpack.c.h.b16 %v3038
        %v4306 = vunpack.c.l.b16 %v3039
        %v4307 = vunpack.c.h.b16 %v3039
        %v4308 = vunpack.c.l.b16 %v3040
        %v4309 = vunpack.c.h.b16 %v3040
        %v4310 = vunpack.c.l.b16 %v3041
        %v4311 = vunpack.c.h.b16 %v3041
        %v4312 = vunpack.c.l.b16 %v3042
        %v4313 = vunpack.c.h.b16 %v3042
        %v4314 = vunpack.c.l.b16 %v3043
        %v4315 = vunpack.c.h.b16 %v3043
        %v4316 = vunpack.c.l.b16 %v3044
        %v4317 = vunpack.c.h.b16 %v3044
        %v4318 = vunpack.c.l.b16 %v3045
        %v4319 = vunpack.c.h.b16 %v3045
        %v4320 = vunpack.c.l.b16 %v3046
        %v4321 = vunpack.c.h.b16 %v3046
        %v4322 = vunpack.c.l.b16 %v3047
        %v4323 = vunpack.c.h.b16 %v3047
        %v4324 = vunpack.c.l.b16 %v3048
        %v4325 = vunpack.c.h.b16 %v3048
        %v4326 = vunpack.c.l.b16 %v3049
        %v4327 = vunpack.c.h.b16 %v3049
        %v4328 = vunpack.c.l.b16 %v3050
        %v4329 = vunpack.c.h.b16 %v3050
        %v4330 = vunpack.c.l.b16 %v3051
        %v4331 = vunpack.c.h.b16 %v3051
        %v4332 = vunpack.c.l.b16 %v3052
        %v4333 = vunpack.c.h.b16 %v3052
        %v4334 = vunpack.c.l.b16 %v3053
        %v4335 = vunpack.c.h.b16 %v3053
        %v4336 = vunpack.c.l.b16 %v3054
        %v4337 = vunpack.c.h.b16 %v3054
        %v4338 = vunpack.c.l.b16 %v3055
        %v4339 = vunpack.c.h.b16 %v3055
        %v4340 = vunpack.c.l.b16 %v3056
        %v4341 = vunpack.c.h.b16 %v3056
        %v4342 = vunpack.c.l.b16 %v3057
        %v4343 = vunpack.c.h.b16 %v3057
        %v4344 = vunpack.c.l.b16 %v3058
        %v4345 = vunpack.c.h.b16 %v3058
        %v4346 = vunpack.c.l.b16 %v3059
        %v4347 = vunpack.c.h.b16 %v3059
        %v4348 = vunpack.c.l.b16 %v3060
        %v4349 = vunpack.c.h.b16 %v3060
        %v4350 = vunpack.c.l.b16 %v3061
        %v4351 = vunpack.c.h.b16 %v3061
        %v4352 = vunpack.c.l.b16 %v3062
        %v4353 = vunpack.c.h.b16 %v3062
        %v4354 = vunpack.c.l.b16 %v3063
        %v4355 = vunpack.c.h.b16 %v3063
        %v4356 = vunpack.c.l.b16 %v3064
        %v4357 = vunpack.c.h.b16 %v3064
        %v4358 = vunpack.c.l.b16 %v3065
        %v4359 = vunpack.c.h.b16 %v3065
        %v4360 = vunpack.c.l.b16 %v3066
        %v4361 = vunpack.c.h.b16 %v3066
        %v4362 = vunpack.c.l.b16 %v3067
        %v4363 = vunpack.c.h.b16 %v3067
        %v4364 = vunpack.c.l.b16 %v3068
        %v4365 = vunpack.c.h.b16 %v3068
        %v4366 = vunpack.c.l.b16 %v3069
        %v4367 = vunpack.c.h.b16 %v3069
        %v4368 = vunpack.c.l.b16 %v3070
        %v4369 = vunpack.c.h.b16 %v3070
        %v4370 = vunpack.c.l.b16 %v3071
        %v4371 = vunpack.c.h.b16 %v3071
        %v4372 = vunpack.c.l.b16 %v3072
        %v4373 = vunpack.c.h.b16 %v3072
        %v4374 = vunpack.c.l.b16 %v3073
        %v4375 = vunpack.c.h.b16 %v3073
        %v4376 = vunpack.c.l.b16 %v3074
        %v4377 = vunpack.c.h.b16 %v3074
        %v4378 = vunpack.c.l.b16 %v3075
        %v4379 = vunpack.c.h.b16 %v3075
        %v4380 = vunpack.c.l.b16 %v3076
        %v4381 = vunpack.c.h.b16 %v3076
        %v4382 = vunpack.c.l.b16 %v3077
        %v4383 = vunpack.c.h.b16 %v3077
        %v4384 = vunpack.c.l.b16 %v3078
        %v4385 = vunpack.c.h.b16 %v3078
        %v4386 = vunpack.c.l.b16 %v3079
        %v4387 = vunpack.c.h.b16 %v3079
        %v4388 = vunpack.c.l.b16 %v3080
        %v4389 = vunpack.c.h.b16 %v3080
        %v4390 = vunpack.c.l.b16 %v3081
        %v4391 = vunpack.c.h.b16 %v3081
        %v4392 = vunpack.c.l.b16 %v3082
        %v4393 = vunpack.c.h.b16 %v3082
        %v4394 = vunpack.c.l.b16 %v3083
        %v4395 = vunpack.c.h.b16 %v3083
        %v4396 = vunpack.c.l.b16 %v3084
        %v4397 = vunpack.c.h.b16 %v3084
        %v4398 = vunpack.c.l.b16 %v3085
        %v4399 = vunpack.c.h.b16 %v3085
        %v4400 = vunpack.c.l.b16 %v3086
        %v4401 = vunpack.c.h.b16 %v3086
        %v4402 = vunpack.c.l.b16 %v3087
        %v4403 = vunpack.c.h.b16 %v3087
        %v4404 = vunpack.c.l.b16 %v3088
        %v4405 = vunpack.c.h.b16 %v3088
        %v4406 = vunpack.c.l.b16 %v3089
        %v4407 = vunpack.c.h.b16 %v3089
        %v4408 = vunpack.c.l.b16 %v3090
        %v4409 = vunpack.c.h.b16 %v3090
        %v4410 = vunpack.c.l.b16 %v3091
        %v4411 = vunpack.c.h.b16 %v3091
        %v4412 = vunpack.c.l.b16 %v3092
        %v4413 = vunpack.c.h.b16 %v3092
        %v4414 = vunpack.c.l.b16 %v3093
        %v4415 = vunpack.c.h.b16 %v3093
        %v4416 = vunpack.c.l.b16 %v3094
        %v4417 = vunpack.c.h.b16 %v3094
        %v4418 = vunpack.c.l.b16 %v3095
        %v4419 = vunpack.c.h.b16 %v3095
        %v4420 = vunpack.c.l.b16 %v3096
        %v4421 = vunpack.c.h.b16 %v3096
        %v4422 = vunpack.c.l.b16 %v3097
        %v4423 = vunpack.c.h.b16 %v3097
        %v4424 = vunpack.c.l.b16 %v3098
        %v4425 = vunpack.c.h.b16 %v3098
        %v4426 = vunpack.c.l.b16 %v3099
        %v4427 = vunpack.c.h.b16 %v3099
        %v4428 = vunpack.c.l.b16 %v3100
        %v4429 = vunpack.c.h.b16 %v3100
        %v4430 = vunpack.c.l.b16 %v3101
        %v4431 = vunpack.c.h.b16 %v3101
        %v4432 = vunpack.c.l.b16 %v3102
        %v4433 = vunpack.c.h.b16 %v3102
        %v4434 = vunpack.c.l.b16 %v3103
        %v4435 = vunpack.c.h.b16 %v3103
        %v4436 = vunpack.c.l.b16 %v3104
        %v4437 = vunpack.c.h.b16 %v3104
        %v4438 = vunpack.c.l.b16 %v3105
        %v4439 = vunpack.c.h.b16 %v3105
        %v4440 = vunpack.c.l.b16 %v3106
        %v4441 = vunpack.c.h.b16 %v3106
        %v4442 = vunpack.c.l.b16 %v3107
        %v4443 = vunpack.c.h.b16 %v3107
        %v4444 = vunpack.c.l.b16 %v3108
        %v4445 = vunpack.c.h.b16 %v3108
        %v4446 = vunpack.c.l.b16 %v3109
        %v4447 = vunpack.c.h.b16 %v3109
        %v4448 = vunpack.c.l.b16 %v3110
        %v4449 = vunpack.c.h.b16 %v3110
        %v4450 = vunpack.c.l.b16 %v3111
        %v4451 = vunpack.c.h.b16 %v3111
        %v4452 = vunpack.c.l.b16 %v3112
        %v4453 = vunpack.c.h.b16 %v3112
        %v4454 = vunpack.c.l.b16 %v3113
        %v4455 = vunpack.c.h.b16 %v3113
        %v4456 = vunpack.c.l.b16 %v3114
        %v4457 = vunpack.c.h.b16 %v3114
        %v4458 = vunpack.c.l.b16 %v3115
        %v4459 = vunpack.c.h.b16 %v3115
        %v4460 = vunpack.c.l.b16 %v3116
        %v4461 = vunpack.c.h.b16 %v3116
        %v4462 = vunpack.c.l.b16 %v3117
        %v4463 = vunpack.c.h.b16 %v3117
        %v4464 = vunpack.c.l.b16 %v3118
        %v4465 = vunpack.c.h.b16 %v3118
        %v4466 = vunpack.c.l.b16 %v3119
        %v4467 = vunpack.c.h.b16 %v3119
        %v4468 = vunpack.c.l.b16 %v3120
        %v4469 = vunpack.c.h.b16 %v3120
        %v4470 = vunpack.c.l.b16 %v3121
        %v4471 = vunpack.c.h.b16 %v3121
        %v4472 = vunpack.c.l.b16 %v3122
        %v4473 = vunpack.c.h.b16 %v3122
        %v4474 = vunpack.c.l.b16 %v3123
        %v4475 = vunpack.c.h.b16 %v3123
        %v4476 = vunpack.c.l.b16 %v3124
        %v4477 = vunpack.c.h.b16 %v3124
        %v4478 = vunpack.c.l.b16 %v3125
        %v4479 = vunpack.c.h.b16 %v3125
        %v4480 = vunpack.c.l.b16 %v3126
        %v4481 = vunpack.c.h.b16 %v3126
        %v4482 = vunpack.c.l.b16 %v3127
        %v4483 = vunpack.c.h.b16 %v3127
        %v4484 = vunpack.c.l.b16 %v3128
        %v4485 = vunpack.c.h.b16 %v3128
        %v4486 = vunpack.c.l.b16 %v3129
        %v4487 = vunpack.c.h.b16 %v3129
        %v4488 = vunpack.c.l.b16 %v3130
        %v4489 = vunpack.c.h.b16 %v3130
        %v4490 = vunpack.c.l.b16 %v3131
        %v4491 = vunpack.c.h.b16 %v3131
        %v4492 = vunpack.c.l.b16 %v3132
        %v4493 = vunpack.c.h.b16 %v3132
        %v4494 = vunpack.c.l.b16 %v3133
        %v4495 = vunpack.c.h.b16 %v3133
        %v4496 = vunpack.c.l.b16 %v3134
        %v4497 = vunpack.c.h.b16 %v3134
        %v4498 = vunpack.c.l.b16 %v3135
        %v4499 = vunpack.c.h.b16 %v3135
        %v4500 = vunpack.c.l.b16 %v3136
        %v4501 = vunpack.c.h.b16 %v3136
        %v4502 = vunpack.c.l.b16 %v3137
        %v4503 = vunpack.c.h.b16 %v3137
        %v4504 = vunpack.c.l.b16 %v3138
        %v4505 = vunpack.c.h.b16 %v3138
        %v4506 = vunpack.c.l.b16 %v3139
        %v4507 = vunpack.c.h.b16 %v3139
        %v4508 = vunpack.c.l.b16 %v3140
        %v4509 = vunpack.c.h.b16 %v3140
        %v4510 = vunpack.c.l.b16 %v3141
        %v4511 = vunpack.c.h.b16 %v3141
        %v4512 = vunpack.c.l.b16 %v3142
        %v4513 = vunpack.c.h.b16 %v3142
        %v4514 = vunpack.c.l.b16 %v3143
        %v4515 = vunpack.c.h.b16 %v3143
        %v4516 = vunpack.c.l.b16 %v3144
        %v4517 = vunpack.c.h.b16 %v3144
        %v4518 = vunpack.c.l.b16 %v3145
        %v4519 = vunpack.c.h.b16 %v3145
        %v4520 = vunpack.c.l.b16 %v3146
        %v4521 = vunpack.c.h.b16 %v3146
        %v4522 = vunpack.c.l.b16 %v3147
        %v4523 = vunpack.c.h.b16 %v3147
        %v4524 = vunpack.c.l.b16 %v3148
        %v4525 = vunpack.c.h.b16 %v3148
        %v4526 = vunpack.c.l.b16 %v3149
        %v4527 = vunpack.c.h.b16 %v3149
        %v4528 = vunpack.c.l.b16 %v3150
        %v4529 = vunpack.c.h.b16 %v3150
        %v4530 = vunpack.c.l.b16 %v3151
        %v4531 = vunpack.c.h.b16 %v3151
        %v4532 = vunpack.c.l.b16 %v3152
        %v4533 = vunpack.c.h.b16 %v3152
        %v4534 = vunpack.c.l.b16 %v3153
        %v4535 = vunpack.c.h.b16 %v3153
        %v4536 = vunpack.c.l.b16 %v3154
        %v4537 = vunpack.c.h.b16 %v3154
        %v4538 = vunpack.c.l.b16 %v3155
        %v4539 = vunpack.c.h.b16 %v3155
        %v4540 = vunpack.c.l.b16 %v3156
        %v4541 = vunpack.c.h.b16 %v3156
        %v4542 = vunpack.c.l.b16 %v3157
        %v4543 = vunpack.c.h.b16 %v3157
        %v4544 = vunpack.c.l.b16 %v3158
        %v4545 = vunpack.c.h.b16 %v3158
        %v4546 = vunpack.c.l.b16 %v3159
        %v4547 = vunpack.c.h.b16 %v3159
        %v4548 = vunpack.c.l.b16 %v3160
        %v4549 = vunpack.c.h.b16 %v3160
        %v4550 = vunpack.c.l.b16 %v3161
        %v4551 = vunpack.c.h.b16 %v3161
        %v4552 = vunpack.c.l.b16 %v3162
        %v4553 = vunpack.c.h.b16 %v3162
        %v4554 = vunpack.c.l.b16 %v3163
        %v4555 = vunpack.c.h.b16 %v3163
        %v4556 = vunpack.c.l.b16 %v3164
        %v4557 = vunpack.c.h.b16 %v3164
        %v4558 = vunpack.c.l.b16 %v3165
        %v4559 = vunpack.c.h.b16 %v3165
        %v4560 = vunpack.c.l.b16 %v3166
        %v4561 = vunpack.c.h.b16 %v3166
        %v4562 = vunpack.c.l.b16 %v3167
        %v4563 = vunpack.c.h.b16 %v3167
        %v4564 = vunpack.c.l.b16 %v3168
        %v4565 = vunpack.c.h.b16 %v3168
        %v4566 = vunpack.c.l.b16 %v3169
        %v4567 = vunpack.c.h.b16 %v3169
        %v4568 = vunpack.c.l.b16 %v3170
        %v4569 = vunpack.c.h.b16 %v3170
        %v4570 = vunpack.c.l.b16 %v3171
        %v4571 = vunpack.c.h.b16 %v3171
        %v4572 = vunpack.c.l.b16 %v3172
        %v4573 = vunpack.c.h.b16 %v3172
        %v4574 = vunpack.c.l.b16 %v3173
        %v4575 = vunpack.c.h.b16 %v3173
        %v4576 = vunpack.c.l.b16 %v3174
        %v4577 = vunpack.c.h.b16 %v3174
        %v4578 = vunpack.c.l.b16 %v3175
        %v4579 = vunpack.c.h.b16 %v3175
        %v4580 = vunpack.c.l.b16 %v3176
        %v4581 = vunpack.c.h.b16 %v3176
        %v4582 = vunpack.c.l.b16 %v3177
        %v4583 = vunpack.c.h.b16 %v3177
        %v4584 = vunpack.c.l.b16 %v3178
        %v4585 = vunpack.c.h.b16 %v3178
        %v4586 = vunpack.c.l.b16 %v3179
        %v4587 = vunpack.c.h.b16 %v3179
        %v4588 = vunpack.c.l.b16 %v3180
        %v4589 = vunpack.c.h.b16 %v3180
        %v4590 = vunpack.c.l.b16 %v3181
        %v4591 = vunpack.c.h.b16 %v3181
        %v4592 = vunpack.c.l.b16 %v3182
        %v4593 = vunpack.c.h.b16 %v3182
        %v4594 = vunpack.c.l.b16 %v3183
        %v4595 = vunpack.c.h.b16 %v3183
        %v4596 = vunpack.c.l.b16 %v3184
        %v4597 = vunpack.c.h.b16 %v3184
        %v4598 = vunpack.c.l.b16 %v3185
        %v4599 = vunpack.c.h.b16 %v3185
        %v4600 = vunpack.c.l.b16 %v3186
        %v4601 = vunpack.c.h.b16 %v3186
        %v4602 = vunpack.c.l.b16 %v3187
        %v4603 = vunpack.c.h.b16 %v3187
        %v4604 = vunpack.c.l.b16 %v3188
        %v4605 = vunpack.c.h.b16 %v3188
        %v4606 = vunpack.c.l.b16 %v3189
        %v4607 = vunpack.c.h.b16 %v3189
        %v4608 = vunpack.c.l.b16 %v3190
        %v4609 = vunpack.c.h.b16 %v3190
        %v4610 = vunpack.c.l.b16 %v3191
        %v4611 = vunpack.c.h.b16 %v3191
        %v4612 = vunpack.c.l.b16 %v3192
        %v4613 = vunpack.c.h.b16 %v3192
        %v4614 = vunpack.c.l.b16 %v3193
        %v4615 = vunpack.c.h.b16 %v3193
        %v4616 = vunpack.c.l.b16 %v3194
        %v4617 = vunpack.c.h.b16 %v3194
        %v4618 = vunpack.c.l.b16 %v3195
        %v4619 = vunpack.c.h.b16 %v3195
        %v4620 = vunpack.c.l.b16 %v3196
        %v4621 = vunpack.c.h.b16 %v3196
        %v4622 = vunpack.c.l.b16 %v3197
        %v4623 = vunpack.c.h.b16 %v3197
        %v4624 = vunpack.c.l.b16 %v3198
        %v4625 = vunpack.c.h.b16 %v3198
        %v4626 = vunpack.c.l.b16 %v3199
        %v4627 = vunpack.c.h.b16 %v3199
        %v4628 = vunpack.c.l.b16 %v3200
        %v4629 = vunpack.c.h.b16 %v3200
        %v4630 = vunpack.c.l.b16 %v3201
        %v4631 = vunpack.c.h.b16 %v3201
        %v4632 = vunpack.c.l.b16 %v3202
        %v4633 = vunpack.c.h.b16 %v3202
        %v4634 = vunpack.c.l.b16 %v3203
        %v4635 = vunpack.c.h.b16 %v3203
        %v4636 = vunpack.c.l.b16 %v3204
        %v4637 = vunpack.c.h.b16 %v3204
        %v4638 = vunpack.c.l.b16 %v3205
        %v4639 = vunpack.c.h.b16 %v3205
        %v4640 = vunpack.c.l.b16 %v3206
        %v4641 = vunpack.c.h.b16 %v3206
        %v4642 = vunpack.c.l.b16 %v3207
        %v4643 = vunpack.c.h.b16 %v3207
        %v4644 = vunpack.c.l.b16 %v3208
        %v4645 = vunpack.c.h.b16 %v3208
        %v4646 = vunpack.c.l.b16 %v3209
        %v4647 = vunpack.c.h.b16 %v3209
        %v4648 = vunpack.c.l.b16 %v3210
        %v4649 = vunpack.c.h.b16 %v3210
        %v4650 = vunpack.c.l.b16 %v3211
        %v4651 = vunpack.c.h.b16 %v3211
        %v4652 = vunpack.c.l.b16 %v3212
        %v4653 = vunpack.c.h.b16 %v3212
        %v4654 = vunpack.c.l.b16 %v3213
        %v4655 = vunpack.c.h.b16 %v3213
        %v4656 = vunpack.c.l.b16 %v3214
        %v4657 = vunpack.c.h.b16 %v3214
        %v4658 = vunpack.c.l.b16 %v3215
        %v4659 = vunpack.c.h.b16 %v3215
        %v4660 = vunpack.c.l.b16 %v3216
        %v4661 = vunpack.c.h.b16 %v3216
        %v4662 = vunpack.c.l.b16 %v3217
        %v4663 = vunpack.c.h.b16 %v3217
        %v4664 = vunpack.c.l.b16 %v3218
        %v4665 = vunpack.c.h.b16 %v3218
        %v4666 = vunpack.c.l.b16 %v3219
        %v4667 = vunpack.c.h.b16 %v3219
        %v4668 = vunpack.c.l.b16 %v3220
        %v4669 = vunpack.c.h.b16 %v3220
        %v4670 = vunpack.c.l.b16 %v3221
        %v4671 = vunpack.c.h.b16 %v3221
        %v4672 = vunpack.c.l.b16 %v3222
        %v4673 = vunpack.c.h.b16 %v3222
        %v4674 = vunpack.c.l.b16 %v3223
        %v4675 = vunpack.c.h.b16 %v3223
        %v4676 = vunpack.c.l.b16 %v3224
        %v4677 = vunpack.c.h.b16 %v3224
        %v4678 = vunpack.c.l.b16 %v3225
        %v4679 = vunpack.c.h.b16 %v3225
        %v4680 = vunpack.c.l.b16 %v3226
        %v4681 = vunpack.c.h.b16 %v3226
        %v4682 = vunpack.c.l.b16 %v3227
        %v4683 = vunpack.c.h.b16 %v3227
        %v4684 = vunpack.c.l.b16 %v3228
        %v4685 = vunpack.c.h.b16 %v3228
        %v4686 = vunpack.c.l.b16 %v3229
        %v4687 = vunpack.c.h.b16 %v3229
        %v4688 = vunpack.c.l.b16 %v3230
        %v4689 = vunpack.c.h.b16 %v3230
        %v4690 = vunpack.c.l.b16 %v3231
        %v4691 = vunpack.c.h.b16 %v3231
        %v4692 = vunpack.c.l.b16 %v3232
        %v4693 = vunpack.c.h.b16 %v3232
        %v4694 = vunpack.c.l.b16 %v3233
        %v4695 = vunpack.c.h.b16 %v3233
        %v4696 = vunpack.c.l.b16 %v3234
        %v4697 = vunpack.c.h.b16 %v3234
        %v4698 = vunpack.c.l.b16 %v3235
        %v4699 = vunpack.c.h.b16 %v3235
        %v4700 = vunpack.c.l.b16 %v3236
        %v4701 = vunpack.c.h.b16 %v3236
        %v4702 = vunpack.c.l.b16 %v3237
        %v4703 = vunpack.c.h.b16 %v3237
        %v4704 = vunpack.c.l.b16 %v3238
        %v4705 = vunpack.c.h.b16 %v3238
        %v4706 = vunpack.c.l.b16 %v3239
        %v4707 = vunpack.c.h.b16 %v3239
        %v4708 = vunpack.c.l.b16 %v3240
        %v4709 = vunpack.c.h.b16 %v3240
        %v4710 = vunpack.c.l.b16 %v3241
        %v4711 = vunpack.c.h.b16 %v3241
        %v4712 = vunpack.c.l.b16 %v3242
        %v4713 = vunpack.c.h.b16 %v3242
        %v4714 = vunpack.c.l.b16 %v3243
        %v4715 = vunpack.c.h.b16 %v3243
        %v4716 = vunpack.c.l.b16 %v3244
        %v4717 = vunpack.c.h.b16 %v3244
        %v4718 = vunpack.c.l.b16 %v3245
        %v4719 = vunpack.c.h.b16 %v3245
        %v4720 = vunpack.c.l.b16 %v3246
        %v4721 = vunpack.c.h.b16 %v3246
        %v4722 = vunpack.c.l.b16 %v3247
        %v4723 = vunpack.c.h.b16 %v3247
        %v4724 = vunpack.c.l.b16 %v3248
        %v4725 = vunpack.c.h.b16 %v3248
        %v4726 = vunpack.c.l.b16 %v3249
        %v4727 = vunpack.c.h.b16 %v3249
        %v4728 = vunpack.c.l.b16 %v3250
        %v4729 = vunpack.c.h.b16 %v3250
        %v4730 = vunpack.c.l.b16 %v3251
        %v4731 = vunpack.c.h.b16 %v3251
        %v4732 = vunpack.c.l.b16 %v3252
        %v4733 = vunpack.c.h.b16 %v3252
        %v4734 = vunpack.c.l.b16 %v3253
        %v4735 = vunpack.c.h.b16 %v3253
        %v4736 = vunpack.c.l.b16 %v3254
        %v4737 = vunpack.c.h.b16 %v3254
        %v4738 = vunpack.c.l.b16 %v3255
        %v4739 = vunpack.c.h.b16 %v3255
        %v4740 = vunpack.c.l.b16 %v3256
        %v4741 = vunpack.c.h.b16 %v3256
        %v4742 = vunpack.c.l.b16 %v3257
        %v4743 = vunpack.c.h.b16 %v3257
        %v4744 = vunpack.c.l.b16 %v3258
        %v4745 = vunpack.c.h.b16 %v3258
        %v4746 = vunpack.c.l.b16 %v3259
        %v4747 = vunpack.c.h.b16 %v3259
        %v4748 = vunpack.c.l.b16 %v3260
        %v4749 = vunpack.c.h.b16 %v3260
        %v4750 = vunpack.c.l.b16 %v3261
        %v4751 = vunpack.c.h.b16 %v3261
        %v4752 = vunpack.c.l.b16 %v3262
        %v4753 = vunpack.c.h.b16 %v3262
        %v4754 = vunpack.c.l.b16 %v3263
        %v4755 = vunpack.c.h.b16 %v3263
        %v4756 = vunpack.c.l.b16 %v3264
        %v4757 = vunpack.c.h.b16 %v3264
        %v4758 = vunpack.c.l.b16 %v3265
        %v4759 = vunpack.c.h.b16 %v3265
        %v4760 = vunpack.c.l.b16 %v3266
        %v4761 = vunpack.c.h.b16 %v3266
        %v4762 = vunpack.c.l.b16 %v3267
        %v4763 = vunpack.c.h.b16 %v3267
        %v4764 = vunpack.c.l.b16 %v3268
        %v4765 = vunpack.c.h.b16 %v3268
        %v4766 = vunpack.c.l.b16 %v3269
        %v4767 = vunpack.c.h.b16 %v3269
        %v4768 = vunpack.c.l.b16 %v3270
        %v4769 = vunpack.c.h.b16 %v3270
        %v4770 = vunpack.c.l.b16 %v3271
        %v4771 = vunpack.c.h.b16 %v3271
        %v4772 = vunpack.c.l.b16 %v3272
        %v4773 = vunpack.c.h.b16 %v3272
        %v4774 = vunpack.c.l.b16 %v3273
        %v4775 = vunpack.c.h.b16 %v3273
        %v4776 = vunpack.c.l.b16 %v3274
        %v4777 = vunpack.c.h.b16 %v3274
        %v4778 = vunpack.c.l.b16 %v3275
        %v4779 = vunpack.c.h.b16 %v3275
        %v4780 = vunpack.c.l.b16 %v3276
        %v4781 = vunpack.c.h.b16 %v3276
        %v4782 = vunpack.c.l.b16 %v3277
        %v4783 = vunpack.c.h.b16 %v3277
        %v4784 = vunpack.c.l.b16 %v3278
        %v4785 = vunpack.c.h.b16 %v3278
        %v4786 = vunpack.c.l.b16 %v3279
        %v4787 = vunpack.c.h.b16 %v3279
        %v4788 = vunpack.c.l.b16 %v3280
        %v4789 = vunpack.c.h.b16 %v3280
        %v4790 = vunpack.c.l.b16 %v3281
        %v4791 = vunpack.c.h.b16 %v3281
        %v4792 = vunpack.c.l.b16 %v3282
        %v4793 = vunpack.c.h.b16 %v3282
        %v4794 = vunpack.c.l.b16 %v3283
        %v4795 = vunpack.c.h.b16 %v3283
        %v4796 = vunpack.c.l.b16 %v3284
        %v4797 = vunpack.c.h.b16 %v3284
        %v4798 = vunpack.c.l.b16 %v3285
        %v4799 = vunpack.c.h.b16 %v3285
        %v4800 = vunpack.c.l.b16 %v3286
        %v4801 = vunpack.c.h.b16 %v3286
        %v4802 = vunpack.c.l.b16 %v3287
        %v4803 = vunpack.c.h.b16 %v3287
        %v4804 = vunpack.c.l.b16 %v3288
        %v4805 = vunpack.c.h.b16 %v3288
        %v4806 = vunpack.c.l.b16 %v3289
        %v4807 = vunpack.c.h.b16 %v3289
        %v4808 = vunpack.c.l.b16 %v3290
        %v4809 = vunpack.c.h.b16 %v3290
        %v4810 = vunpack.c.l.b16 %v3291
        %v4811 = vunpack.c.h.b16 %v3291
        %v4812 = vunpack.c.l.b16 %v3292
        %v4813 = vunpack.c.h.b16 %v3292
        %v4814 = vunpack.c.l.b16 %v3293
        %v4815 = vunpack.c.h.b16 %v3293
        %v4816 = vunpack.c.l.b16 %v3294
        %v4817 = vunpack.c.h.b16 %v3294
        %v4818 = vunpack.c.l.b16 %v3295
        %v4819 = vunpack.c.h.b16 %v3295
        %v4820 = vunpack.c.l.b16 %v3296
        %v4821 = vunpack.c.h.b16 %v3296
        %v4822 = vunpack.c.l.b16 %v3297
        %v4823 = vunpack.c.h.b16 %v3297
        %v4824 = vunpack.c.l.b16 %v3298
        %v4825 = vunpack.c.h.b16 %v3298
        %v4826 = vunpack.c.l.b16 %v3299
        %v4827 = vunpack.c.h.b16 %v3299
        %v4828 = vunpack.c.l.b16 %v3300
        %v4829 = vunpack.c.h.b16 %v3300
        %v4830 = vunpack.c.l.b16 %v3301
        %v4831 = vunpack.c.h.b16 %v3301
        %v4832 = vunpack.c.l.b16 %v3302
        %v4833 = vunpack.c.h.b16 %v3302
        %v4834 = vunpack.c.l.b16 %v3303
        %v4835 = vunpack.c.h.b16 %v3303
        %v4836 = vunpack.c.l.b16 %v3304
        %v4837 = vunpack.c.h.b16 %v3304
        %v4838 = vunpack.c.l.b16 %v3305
        %v4839 = vunpack.c.h.b16 %v3305
        %v4840 = vunpack.c.l.b16 %v3306
        %v4841 = vunpack.c.h.b16 %v3306
        %v4842 = vunpack.c.l.b16 %v3307
        %v4843 = vunpack.c.h.b16 %v3307
        %v4844 = vunpack.c.l.b16 %v3308
        %v4845 = vunpack.c.h.b16 %v3308
        %v4846 = vunpack.c.l.b16 %v3309
        %v4847 = vunpack.c.h.b16 %v3309
        %v4848 = vunpack.c.l.b16 %v3310
        %v4849 = vunpack.c.h.b16 %v3310
        %v4850 = vunpack.c.l.b16 %v3311
        %v4851 = vunpack.c.h.b16 %v3311
        %v4852 = vunpack.c.l.b16 %v3312
        %v4853 = vunpack.c.h.b16 %v3312
        %v4854 = vunpack.c.l.b16 %v3313
        %v4855 = vunpack.c.h.b16 %v3313
        %v4856 = vunpack.c.l.b16 %v3314
        %v4857 = vunpack.c.h.b16 %v3314
        %v4858 = vunpack.c.l.b16 %v3315
        %v4859 = vunpack.c.h.b16 %v3315
        %v4860 = vunpack.c.l.b16 %v3316
        %v4861 = vunpack.c.h.b16 %v3316
        %v4862 = vunpack.c.l.b16 %v3317
        %v4863 = vunpack.c.h.b16 %v3317
        %v4864 = vunpack.c.l.b16 %v3318
        %v4865 = vunpack.c.h.b16 %v3318
        %v4866 = vunpack.c.l.b16 %v3319
        %v4867 = vunpack.c.h.b16 %v3319
        %v4868 = vunpack.c.l.b16 %v3320
        %v4869 = vunpack.c.h.b16 %v3320
        %v4870 = vunpack.c.l.b16 %v3321
        %v4871 = vunpack.c.h.b16 %v3321
        %v4872 = vunpack.c.l.b16 %v3322
        %v4873 = vunpack.c.h.b16 %v3322
        %v4874 = vunpack.c.l.b16 %v3323
        %v4875 = vunpack.c.h.b16 %v3323
        %v4876 = vunpack.c.l.b16 %v3324
        %v4877 = vunpack.c.h.b16 %v3324
        %v4878 = vunpack.c.l.b16 %v3325
        %v4879 = vunpack.c.h.b16 %v3325
        %v4880 = vunpack.c.l.b16 %v3326
        %v4881 = vunpack.c.h.b16 %v3326
        %v4882 = vunpack.c.l.b16 %v3327
        %v4883 = vunpack.c.h.b16 %v3327
        %v4884 = vunpack.c.l.b16 %v3328
        %v4885 = vunpack.c.h.b16 %v3328
        %v4886 = vunpack.c.l.b16 %v3329
        %v4887 = vunpack.c.h.b16 %v3329
        %v4888 = vunpack.c.l.b16 %v3330
        %v4889 = vunpack.c.h.b16 %v3330
        %v4890 = vunpack.c.l.b16 %v3331
        %v4891 = vunpack.c.h.b16 %v3331
        %v4892 = vunpack.c.l.b16 %v3332
        %v4893 = vunpack.c.h.b16 %v3332
        %v4894 = vunpack.c.l.b16 %v3333
        %v4895 = vunpack.c.h.b16 %v3333
        %v4896 = vunpack.c.l.b16 %v3334
        %v4897 = vunpack.c.h.b16 %v3334
        %v4898 = vunpack.c.l.b16 %v3335
        %v4899 = vunpack.c.h.b16 %v3335
        %v4900 = vunpack.c.l.b16 %v3336
        %v4901 = vunpack.c.h.b16 %v3336
        %v4902 = vunpack.c.l.b16 %v3337
        %v4903 = vunpack.c.h.b16 %v3337
        %v4904 = vunpack.c.l.b16 %v3338
        %v4905 = vunpack.c.h.b16 %v3338
        %v4906 = vunpack.c.l.b16 %v3339
        %v4907 = vunpack.c.h.b16 %v3339
        %v4908 = vunpack.c.l.b16 %v3340
        %v4909 = vunpack.c.h.b16 %v3340
        %v4910 = vunpack.c.l.b16 %v3341
        %v4911 = vunpack.c.h.b16 %v3341
        %v4912 = vunpack.c.l.b16 %v3342
        %v4913 = vunpack.c.h.b16 %v3342
        %v4914 = vunpack.c.l.b16 %v3343
        %v4915 = vunpack.c.h.b16 %v3343
        %v4916 = vunpack.c.l.b16 %v3344
        %v4917 = vunpack.c.h.b16 %v3344
        %v4918 = vunpack.c.l.b16 %v3345
        %v4919 = vunpack.c.h.b16 %v3345
        %v4920 = vunpack.c.l.b16 %v3346
        %v4921 = vunpack.c.h.b16 %v3346
        %v4922 = vunpack.c.l.b16 %v3347
        %v4923 = vunpack.c.h.b16 %v3347
        %v4924 = vunpack.c.l.b16 %v3348
        %v4925 = vunpack.c.h.b16 %v3348
        %v4926 = vunpack.c.l.b16 %v3349
        %v4927 = vunpack.c.h.b16 %v3349
        %v4928 = vunpack.c.l.b16 %v3350
        %v4929 = vunpack.c.h.b16 %v3350
        %v4930 = vunpack.c.l.b16 %v3351
        %v4931 = vunpack.c.h.b16 %v3351
        %v4932 = vunpack.c.l.b16 %v3352
        %v4933 = vunpack.c.h.b16 %v3352
        %v4934 = vunpack.c.l.b16 %v3353
        %v4935 = vunpack.c.h.b16 %v3353
        %v4936 = vunpack.c.l.b16 %v3354
        %v4937 = vunpack.c.h.b16 %v3354
        %v4938 = vunpack.c.l.b16 %v3355
        %v4939 = vunpack.c.h.b16 %v3355
        %v4940 = vunpack.c.l.b16 %v3356
        %v4941 = vunpack.c.h.b16 %v3356
        %v4942 = vunpack.c.l.b16 %v3357
        %v4943 = vunpack.c.h.b16 %v3357
        %v4944 = vunpack.c.l.b16 %v3358
        %v4945 = vunpack.c.h.b16 %v3358
        %v4946 = vunpack.c.l.b16 %v3359
        %v4947 = vunpack.c.h.b16 %v3359
        %v4948 = vunpack.c.l.b16 %v3360
        %v4949 = vunpack.c.h.b16 %v3360
        %v4950 = vunpack.c.l.b16 %v3361
        %v4951 = vunpack.c.h.b16 %v3361
        %v4952 = vunpack.c.l.b16 %v3362
        %v4953 = vunpack.c.h.b16 %v3362
        %v4954 = vunpack.c.l.b16 %v3363
        %v4955 = vunpack.c.h.b16 %v3363
        %v4956 = vunpack.c.l.b16 %v3364
        %v4957 = vunpack.c.h.b16 %v3364
        %v4958 = vunpack.c.l.b16 %v3365
        %v4959 = vunpack.c.h.b16 %v3365
        %v4960 = vunpack.c.l.b16 %v3366
        %v4961 = vunpack.c.h.b16 %v3366
        %v4962 = vunpack.c.l.b16 %v3367
        %v4963 = vunpack.c.h.b16 %v3367
        %v4964 = vunpack.c.l.b16 %v3368
        %v4965 = vunpack.c.h.b16 %v3368
        %v4966 = vunpack.c.l.b16 %v3369
        %v4967 = vunpack.c.h.b16 %v3369
        %v4968 = vunpack.c.l.b16 %v3370
        %v4969 = vunpack.c.h.b16 %v3370
        %v4970 = vunpack.c.l.b16 %v3371
        %v4971 = vunpack.c.h.b16 %v3371
        %v4972 = vunpack.c.l.b16 %v3372
        %v4973 = vunpack.c.h.b16 %v3372
        %v4974 = vunpack.c.l.b16 %v3373
        %v4975 = vunpack.c.h.b16 %v3373
        %v4976 = vunpack.c.l.b16 %v3374
        %v4977 = vunpack.c.h.b16 %v3374
        %v4978 = vunpack.c.l.b16 %v3375
        %v4979 = vunpack.c.h.b16 %v3375
        %v4980 = vunpack.c.l.b16 %v3376
        %v4981 = vunpack.c.h.b16 %v3376
        %v4982 = vunpack.c.l.b16 %v3377
        %v4983 = vunpack.c.h.b16 %v3377
        %v4984 = vunpack.c.l.b16 %v3378
        %v4985 = vunpack.c.h.b16 %v3378
        %v4986 = vunpack.c.l.b16 %v3379
        %v4987 = vunpack.c.h.b16 %v3379
        %v4988 = vunpack.c.l.b16 %v3380
        %v4989 = vunpack.c.h.b16 %v3380
        %v4990 = vunpack.c.l.b16 %v3381
        %v4991 = vunpack.c.h.b16 %v3381
        %v4992 = vunpack.c.l.b16 %v3382
        %v4993 = vunpack.c.h.b16 %v3382
        %v4994 = vunpack.c.l.b16 %v3383
        %v4995 = vunpack.c.h.b16 %v3383
        %v4996 = vunpack.c.l.b16 %v3384
        %v4997 = vunpack.c.h.b16 %v3384
        %v4998 = vunpack.c.l.b16 %v3385
        %v4999 = vunpack.c.h.b16 %v3385
        %v5000 = vpack.c.b16 %v3980, %v3976
        %v5001 = vpack.c.b16 %v3981, %v3977
        %v5002 = vpack.c.b16 %v3982, %v3978
        %v5003 = vpack.c.b16 %v3983, %v3979
        %v5004 = vpack.c.b16 %v3988, %v3984
        %v5005 = vpack.c.b16 %v3989, %v3985
        %v5006 = vpack.c.b16 %v3990, %v3986
        %v5007 = vpack.c.b16 %v3991, %v3987
        %v5008 = vpack.c.b16 %v3996, %v3992
        %v5009 = vpack.c.b16 %v3997, %v3993
        %v5010 = vpack.c.b16 %v3998, %v3994
        %v5011 = vpack.c.b16 %v3999, %v3995
        %v5012 = vpack.c.b16 %v4004, %v4000
        %v5013 = vpack.c.b16 %v4005, %v4001
        %v5014 = vpack.c.b16 %v4006, %v4002
        %v5015 = vpack.c.b16 %v4007, %v4003
        %v5016 = vpack.c.b16 %v4012, %v4008
        %v5017 = vpack.c.b16 %v4013, %v4009
        %v5018 = vpack.c.b16 %v4014, %v4010
        %v5019 = vpack.c.b16 %v4015, %v4011
        %v5020 = vpack.c.b16 %v4020, %v4016
        %v5021 = vpack.c.b16 %v4021, %v4017
        %v5022 = vpack.c.b16 %v4022, %v4018
        %v5023 = vpack.c.b16 %v4023, %v4019
        %v5024 = vpack.c.b16 %v4028, %v4024
        %v5025 = vpack.c.b16 %v4029, %v4025
        %v5026 = vpack.c.b16 %v4030, %v4026
        %v5027 = vpack.c.b16 %v4031, %v4027
        %v5028 = vpack.c.b16 %v4036, %v4032
        %v5029 = vpack.c.b16 %v4037, %v4033
        %v5030 = vpack.c.b16 %v4038, %v4034
        %v5031 = vpack.c.b16 %v4039, %v4035
        %v5032 = vpack.c.b16 %v4044, %v4040
        %v5033 = vpack.c.b16 %v4045, %v4041
        %v5034 = vpack.c.b16 %v4046, %v4042
        %v5035 = vpack.c.b16 %v4047, %v4043
        %v5036 = vpack.c.b16 %v4052, %v4048
        %v5037 = vpack.c.b16 %v4053, %v4049
        %v5038 = vpack.c.b16 %v4054, %v4050
        %v5039 = vpack.c.b16 %v4055, %v4051
        %v5040 = vpack.c.b16 %v4060, %v4056
        %v5041 = vpack.c.b16 %v4061, %v4057
        %v5042 = vpack.c.b16 %v4062, %v4058
        %v5043 = vpack.c.b16 %v4063, %v4059
        %v5044 = vpack.c.b16 %v4068, %v4064
        %v5045 = vpack.c.b16 %v4069, %v4065
        %v5046 = vpack.c.b16 %v4070, %v4066
        %v5047 = vpack.c.b16 %v4071, %v4067
        %v5048 = vpack.c.b16 %v4076, %v4072
        %v5049 = vpack.c.b16 %v4077, %v4073
        %v5050 = vpack.c.b16 %v4078, %v4074
        %v5051 = vpack.c.b16 %v4079, %v4075
        %v5052 = vpack.c.b16 %v4084, %v4080
        %v5053 = vpack.c.b16 %v4085, %v4081
        %v5054 = vpack.c.b16 %v4086, %v4082
        %v5055 = vpack.c.b16 %v4087, %v4083
        %v5056 = vpack.c.b16 %v4092, %v4088
        %v5057 = vpack.c.b16 %v4093, %v4089
        %v5058 = vpack.c.b16 %v4094, %v4090
        %v5059 = vpack.c.b16 %v4095, %v4091
        %v5060 = vpack.c.b16 %v4100, %v4096
        %v5061 = vpack.c.b16 %v4101, %v4097
        %v5062 = vpack.c.b16 %v4102, %v4098
        %v5063 = vpack.c.b16 %v4103, %v4099
        %v5064 = vpack.c.b16 %v4108, %v4104
        %v5065 = vpack.c.b16 %v4109, %v4105
        %v5066 = vpack.c.b16 %v4110, %v4106
        %v5067 = vpack.c.b16 %v4111, %v4107
        %v5068 = vpack.c.b16 %v4116, %v4112
        %v5069 = vpack.c.b16 %v4117, %v4113
        %v5070 = vpack.c.b16 %v4118, %v4114
        %v5071 = vpack.c.b16 %v4119, %v4115
        %v5072 = vpack.c.b16 %v4124, %v4120
        %v5073 = vpack.c.b16 %v4125, %v4121
        %v5074 = vpack.c.b16 %v4126, %v4122
        %v5075 = vpack.c.b16 %v4127, %v4123
        %v5076 = vpack.c.b16 %v4132, %v4128
        %v5077 = vpack.c.b16 %v4133, %v4129
        %v5078 = vpack.c.b16 %v4134, %v4130
        %v5079 = vpack.c.b16 %v4135, %v4131
        %v5080 = vpack.c.b16 %v4140, %v4136
        %v5081 = vpack.c.b16 %v4141, %v4137
        %v5082 = vpack.c.b16 %v4142, %v4138
        %v5083 = vpack.c.b16 %v4143, %v4139
        %v5084 = vpack.c.b16 %v4148, %v4144
        %v5085 = vpack.c.b16 %v4149, %v4145
        %v5086 = vpack.c.b16 %v4150, %v4146
        %v5087 = vpack.c.b16 %v4151, %v4147
        %v5088 = vpack.c.b16 %v4156, %v4152
        %v5089 = vpack.c.b16 %v4157, %v4153
        %v5090 = vpack.c.b16 %v4158, %v4154
        %v5091 = vpack.c.b16 %v4159, %v4155
        %v5092 = vpack.c.b16 %v4164, %v4160
        %v5093 = vpack.c.b16 %v4165, %v4161
        %v5094 = vpack.c.b16 %v4166, %v4162
        %v5095 = vpack.c.b16 %v4167, %v4163
        %v5096 = vpack.c.b16 %v4172, %v4168
        %v5097 = vpack.c.b16 %v4173, %v4169
        %v5098 = vpack.c.b16 %v4174, %v4170
        %v5099 = vpack.c.b16 %v4175, %v4171
        %v5100 = vpack.c.b16 %v4180, %v4176
        %v5101 = vpack.c.b16 %v4181, %v4177
        %v5102 = vpack.c.b16 %v4182, %v4178
        %v5103 = vpack.c.b16 %v4183, %v4179
        %v5104 = vpack.c.b16 %v4188, %v4184
        %v5105 = vpack.c.b16 %v4189, %v4185
        %v5106 = vpack.c.b16 %v4190, %v4186
        %v5107 = vpack.c.b16 %v4191, %v4187
        %v5108 = vpack.c.b16 %v4196, %v4192
        %v5109 = vpack.c.b16 %v4197, %v4193
        %v5110 = vpack.c.b16 %v4198, %v4194
        %v5111 = vpack.c.b16 %v4199, %v4195
        %v5112 = vpack.c.b16 %v4204, %v4200
        %v5113 = vpack.c.b16 %v4205, %v4201
        %v5114 = vpack.c.b16 %v4206, %v4202
        %v5115 = vpack.c.b16 %v4207, %v4203
        %v5116 = vpack.c.b16 %v4212, %v4208
        %v5117 = vpack.c.b16 %v4213, %v4209
        %v5118 = vpack.c.b16 %v4214, %v4210
        %v5119 = vpack.c.b16 %v4215, %v4211
        %v5120 = vpack.c.b16 %v4220, %v4216
        %v5121 = vpack.c.b16 %v4221, %v4217
        %v5122 = vpack.c.b16 %v4222, %v4218
        %v5123 = vpack.c.b16 %v4223, %v4219
        %v5124 = vpack.c.b16 %v4228, %v4224
        %v5125 = vpack.c.b16 %v4229, %v4225
        %v5126 = vpack.c.b16 %v4230, %v4226
        %v5127 = vpack.c.b16 %v4231, %v4227
        %v5128 = vpack.c.b16 %v4236, %v4232
        %v5129 = vpack.c.b16 %v4237, %v4233
        %v5130 = vpack.c.b16 %v4238, %v4234
        %v5131 = vpack.c.b16 %v4239, %v4235
        %v5132 = vpack.c.b16 %v4244, %v4240
        %v5133 = vpack.c.b16 %v4245, %v4241
        %v5134 = vpack.c.b16 %v4246, %v4242
        %v5135 = vpack.c.b16 %v4247, %v4243
        %v5136 = vpack.c.b16 %v4252, %v4248
        %v5137 = vpack.c.b16 %v4253, %v4249
        %v5138 = vpack.c.b16 %v4254, %v4250
        %v5139 = vpack.c.b16 %v4255, %v4251
        %v5140 = vpack.c.b16 %v4260, %v4256
        %v5141 = vpack.c.b16 %v4261, %v4257
        %v5142 = vpack.c.b16 %v4262, %v4258
        %v5143 = vpack.c.b16 %v4263, %v4259
        %v5144 = vpack.c.b16 %v4268, %v4264
        %v5145 = vpack.c.b16 %v4269, %v4265
        %v5146 = vpack.c.b16 %v4270, %v4266
        %v5147 = vpack.c.b16 %v4271, %v4267
        %v5148 = vpack.c.b16 %v4276, %v4272
        %v5149 = vpack.c.b16 %v4277, %v4273
        %v5150 = vpack.c.b16 %v4278, %v4274
        %v5151 = vpack.c.b16 %v4279, %v4275
        %v5152 = vpack.c.b16 %v4284, %v4280
        %v5153 = vpack.c.b16 %v4285, %v4281
        %v5154 = vpack.c.b16 %v4286, %v4282
        %v5155 = vpack.c.b16 %v4287, %v4283
        %v5156 = vpack.c.b16 %v4292, %v4288
        %v5157 = vpack.c.b16 %v4293, %v4289
        %v5158 = vpack.c.b16 %v4294, %v4290
        %v5159 = vpack.c.b16 %v4295, %v4291
        %v5160 = vpack.c.b16 %v4300, %v4296
        %v5161 = vpack.c.b16 %v4301, %v4297
        %v5162 = vpack.c.b16 %v4302, %v4298
        %v5163 = vpack.c.b16 %v4303, %v4299
        %v5164 = vpack.c.b16 %v4308, %v4304
        %v5165 = vpack.c.b16 %v4309, %v4305
        %v5166 = vpack.c.b16 %v4310, %v4306
        %v5167 = vpack.c.b16 %v4311, %v4307
        %v5168 = vpack.c.b16 %v4316, %v4312
        %v5169 = vpack.c.b16 %v4317, %v4313
        %v5170 = vpack.c.b16 %v4318, %v4314
        %v5171 = vpack.c.b16 %v4319, %v4315
        %v5172 = vpack.c.b16 %v4324, %v4320
        %v5173 = vpack.c.b16 %v4325, %v4321
        %v5174 = vpack.c.b16 %v4326, %v4322
        %v5175 = vpack.c.b16 %v4327, %v4323
        %v5176 = vpack.c.b16 %v4332, %v4328
        %v5177 = vpack.c.b16 %v4333, %v4329
        %v5178 = vpack.c.b16 %v4334, %v4330
        %v5179 = vpack.c.b16 %v4335, %v4331
        %v5180 = vpack.c.b16 %v4340, %v4336
        %v5181 = vpack.c.b16 %v4341, %v4337
        %v5182 = vpack.c.b16 %v4342, %v4338
        %v5183 = vpack.c.b16 %v4343, %v4339
        %v5184 = vpack.c.b16 %v4348, %v4344
        %v5185 = vpack.c.b16 %v4349, %v4345
        %v5186 = vpack.c.b16 %v4350, %v4346
        %v5187 = vpack.c.b16 %v4351, %v4347
        %v5188 = vpack.c.b16 %v4356, %v4352
        %v5189 = vpack.c.b16 %v4357, %v4353
        %v5190 = vpack.c.b16 %v4358, %v4354
        %v5191 = vpack.c.b16 %v4359, %v4355
        %v5192 = vpack.c.b16 %v4364, %v4360
        %v5193 = vpack.c.b16 %v4365, %v4361
        %v5194 = vpack.c.b16 %v4366, %v4362
        %v5195 = vpack.c.b16 %v4367, %v4363
        %v5196 = vpack.c.b16 %v4372, %v4368
        %v5197 = vpack.c.b16 %v4373, %v4369
        %v5198 = vpack.c.b16 %v4374, %v4370
        %v5199 = vpack.c.b16 %v4375, %v4371
        %v5200 = vpack.c.b16 %v4380, %v4376
        %v5201 = vpack.c.b16 %v4381, %v4377
        %v5202 = vpack.c.b16 %v4382, %v4378
        %v5203 = vpack.c.b16 %v4383, %v4379
        %v5204 = vpack.c.b16 %v4388, %v4384
        %v5205 = vpack.c.b16 %v4389, %v4385
        %v5206 = vpack.c.b16 %v4390, %v4386
        %v5207 = vpack.c.b16 %v4391, %v4387
        %v5208 = vpack.c.b16 %v4396, %v4392
        %v5209 = vpack.c.b16 %v4397, %v4393
        %v5210 = vpack.c.b16 %v4398, %v4394
        %v5211 = vpack.c.b16 %v4399, %v4395
        %v5212 = vpack.c.b16 %v4404, %v4400
        %v5213 = vpack.c.b16 %v4405, %v4401
        %v5214 = vpack.c.b16 %v4406, %v4402
        %v5215 = vpack.c.b16 %v4407, %v4403
        %v5216 = vpack.c.b16 %v4412, %v4408
        %v5217 = vpack.c.b16 %v4413, %v4409
        %v5218 = vpack.c.b16 %v4414, %v4410
        %v5219 = vpack.c.b16 %v4415, %v4411
        %v5220 = vpack.c.b16 %v4420, %v4416
        %v5221 = vpack.c.b16 %v4421, %v4417
        %v5222 = vpack.c.b16 %v4422, %v4418
        %v5223 = vpack.c.b16 %v4423, %v4419
        %v5224 = vpack.c.b16 %v4428, %v4424
        %v5225 = vpack.c.b16 %v4429, %v4425
        %v5226 = vpack.c.b16 %v4430, %v4426
        %v5227 = vpack.c.b16 %v4431, %v4427
        %v5228 = vpack.c.b16 %v4436, %v4432
        %v5229 = vpack.c.b16 %v4437, %v4433
        %v5230 = vpack.c.b16 %v4438, %v4434
        %v5231 = vpack.c.b16 %v4439, %v4435
        %v5232 = vpack.c.b16 %v4444, %v4440
        %v5233 = vpack.c.b16 %v4445, %v4441
        %v5234 = vpack.c.b16 %v4446, %v4442
        %v5235 = vpack.c.b16 %v4447, %v4443
        %v5236 = vpack.c.b16 %v4452, %v4448
        %v5237 = vpack.c.b16 %v4453, %v4449
        %v5238 = vpack.c.b16 %v4454, %v4450
        %v5239 = vpack.c.b16 %v4455, %v4451
        %v5240 = vpack.c.b16 %v4460, %v4456
        %v5241 = vpack.c.b16 %v4461, %v4457
        %v5242 = vpack.c.b16 %v4462, %v4458
        %v5243 = vpack.c.b16 %v4463, %v4459
        %v5244 = vpack.c.b16 %v4468, %v4464
        %v5245 = vpack.c.b16 %v4469, %v4465
        %v5246 = vpack.c.b16 %v4470, %v4466
        %v5247 = vpack.c.b16 %v4471, %v4467
        %v5248 = vpack.c.b16 %v4476, %v4472
        %v5249 = vpack.c.b16 %v4477, %v4473
        %v5250 = vpack.c.b16 %v4478, %v4474
        %v5251 = vpack.c.b16 %v4479, %v4475
        %v5252 = vpack.c.b16 %v4484, %v4480
        %v5253 = vpack.c.b16 %v4485, %v4481
        %v5254 = vpack.c.b16 %v4486, %v4482
        %v5255 = vpack.c.b16 %v4487, %v4483
        %v5256 = vpack.c.b16 %v4492, %v4488
        %v5257 = vpack.c.b16 %v4493, %v4489
        %v5258 = vpack.c.b16 %v4494, %v4490
        %v5259 = vpack.c.b16 %v4495, %v4491
        %v5260 = vpack.c.b16 %v4500, %v4496
        %v5261 = vpack.c.b16 %v4501, %v4497
        %v5262 = vpack.c.b16 %v4502, %v4498
        %v5263 = vpack.c.b16 %v4503, %v4499
        %v5264 = vpack.c.b16 %v4508, %v4504
        %v5265 = vpack.c.b16 %v4509, %v4505
        %v5266 = vpack.c.b16 %v4510, %v4506
        %v5267 = vpack.c.b16 %v4511, %v4507
        %v5268 = vpack.c.b16 %v4516, %v4512
        %v5269 = vpack.c.b16 %v4517, %v4513
        %v5270 = vpack.c.b16 %v4518, %v4514
        %v5271 = vpack.c.b16 %v4519, %v4515
        %v5272 = vpack.c.b16 %v4524, %v4520
        %v5273 = vpack.c.b16 %v4525, %v4521
        %v5274 = vpack.c.b16 %v4526, %v4522
        %v5275 = vpack.c.b16 %v4527, %v4523
        %v5276 = vpack.c.b16 %v4532, %v4528
        %v5277 = vpack.c.b16 %v4533, %v4529
        %v5278 = vpack.c.b16 %v4534, %v4530
        %v5279 = vpack.c.b16 %v4535, %v4531
        %v5280 = vpack.c.b16 %v4540, %v4536
        %v5281 = vpack.c.b16 %v4541, %v4537
        %v5282 = vpack.c.b16 %v4542, %v4538
        %v5283 = vpack.c.b16 %v4543, %v4539
        %v5284 = vpack.c.b16 %v4548, %v4544
        %v5285 = vpack.c.b16 %v4549, %v4545
        %v5286 = vpack.c.b16 %v4550, %v4546
        %v5287 = vpack.c.b16 %v4551, %v4547
        %v5288 = vpack.c.b16 %v4556, %v4552
        %v5289 = vpack.c.b16 %v4557, %v4553
        %v5290 = vpack.c.b16 %v4558, %v4554
        %v5291 = vpack.c.b16 %v4559, %v4555
        %v5292 = vpack.c.b16 %v4564, %v4560
        %v5293 = vpack.c.b16 %v4565, %v4561
        %v5294 = vpack.c.b16 %v4566, %v4562
        %v5295 = vpack.c.b16 %v4567, %v4563
        %v5296 = vpack.c.b16 %v4572, %v4568
        %v5297 = vpack.c.b16 %v4573, %v4569
        %v5298 = vpack.c.b16 %v4574, %v4570
        %v5299 = vpack.c.b16 %v4575, %v4571
        %v5300 = vpack.c.b16 %v4580, %v4576
        %v5301 = vpack.c.b16 %v4581, %v4577
        %v5302 = vpack.c.b16 %v4582, %v4578
        %v5303 = vpack.c.b16 %v4583, %v4579
        %v5304 = vpack.c.b16 %v4588, %v4584
        %v5305 = vpack.c.b16 %v4589, %v4585
        %v5306 = vpack.c.b16 %v4590, %v4586
        %v5307 = vpack.c.b16 %v4591, %v4587
        %v5308 = vpack.c.b16 %v4596, %v4592
        %v5309 = vpack.c.b16 %v4597, %v4593
        %v5310 = vpack.c.b16 %v4598, %v4594
        %v5311 = vpack.c.b16 %v4599, %v4595
        %v5312 = vpack.c.b16 %v4604, %v4600
        %v5313 = vpack.c.b16 %v4605, %v4601
        %v5314 = vpack.c.b16 %v4606, %v4602
        %v5315 = vpack.c.b16 %v4607, %v4603
        %v5316 = vpack.c.b16 %v4612, %v4608
        %v5317 = vpack.c.b16 %v4613, %v4609
        %v5318 = vpack.c.b16 %v4614, %v4610
        %v5319 = vpack.c.b16 %v4615, %v4611
        %v5320 = vpack.c.b16 %v4620, %v4616
        %v5321 = vpack.c.b16 %v4621, %v4617
        %v5322 = vpack.c.b16 %v4622, %v4618
        %v5323 = vpack.c.b16 %v4623, %v4619
        %v5324 = vpack.c.b16 %v4628, %v4624
        %v5325 = vpack.c.b16 %v4629, %v4625
        %v5326 = vpack.c.b16 %v4630, %v4626
        %v5327 = vpack.c.b16 %v4631, %v4627
        %v5328 = vpack.c.b16 %v4636, %v4632
        %v5329 = vpack.c.b16 %v4637, %v4633
        %v5330 = vpack.c.b16 %v4638, %v4634
        %v5331 = vpack.c.b16 %v4639, %v4635
        %v5332 = vpack.c.b16 %v4644, %v4640
        %v5333 = vpack.c.b16 %v4645, %v4641
        %v5334 = vpack.c.b16 %v4646, %v4642
        %v5335 = vpack.c.b16 %v4647, %v4643
        %v5336 = vpack.c.b16 %v4652, %v4648
        %v5337 = vpack.c.b16 %v4653, %v4649
        %v5338 = vpack.c.b16 %v4654, %v4650
        %v5339 = vpack.c.b16 %v4655, %v4651
        %v5340 = vpack.c.b16 %v4660, %v4656
        %v5341 = vpack.c.b16 %v4661, %v4657
        %v5342 = vpack.c.b16 %v4662, %v4658
        %v5343 = vpack.c.b16 %v4663, %v4659
        %v5344 = vpack.c.b16 %v4668, %v4664
        %v5345 = vpack.c.b16 %v4669, %v4665
        %v5346 = vpack.c.b16 %v4670, %v4666
        %v5347 = vpack.c.b16 %v4671, %v4667
        %v5348 = vpack.c.b16 %v4676, %v4672
        %v5349 = vpack.c.b16 %v4677, %v4673
        %v5350 = vpack.c.b16 %v4678, %v4674
        %v5351 = vpack.c.b16 %v4679, %v4675
        %v5352 = vpack.c.b16 %v4684, %v4680
        %v5353 = vpack.c.b16 %v4685, %v4681
        %v5354 = vpack.c.b16 %v4686, %v4682
        %v5355 = vpack.c.b16 %v4687, %v4683
        %v5356 = vpack.c.b16 %v4692, %v4688
        %v5357 = vpack.c.b16 %v4693, %v4689
        %v5358 = vpack.c.b16 %v4694, %v4690
        %v5359 = vpack.c.b16 %v4695, %v4691
        %v5360 = vpack.c.b16 %v4700, %v4696
        %v5361 = vpack.c.b16 %v4701, %v4697
        %v5362 = vpack.c.b16 %v4702, %v4698
        %v5363 = vpack.c.b16 %v4703, %v4699
        %v5364 = vpack.c.b16 %v4708, %v4704
        %v5365 = vpack.c.b16 %v4709, %v4705
        %v5366 = vpack.c.b16 %v4710, %v4706
        %v5367 = vpack.c.b16 %v4711, %v4707
        %v5368 = vpack.c.b16 %v4716, %v4712
        %v5369 = vpack.c.b16 %v4717, %v4713
        %v5370 = vpack.c.b16 %v4718, %v4714
        %v5371 = vpack.c.b16 %v4719, %v4715
        %v5372 = vpack.c.b16 %v4724, %v4720
        %v5373 = vpack.c.b16 %v4725, %v4721
        %v5374 = vpack.c.b16 %v4726, %v4722
        %v5375 = vpack.c.b16 %v4727, %v4723
        %v5376 = vpack.c.b16 %v4732, %v4728
        %v5377 = vpack.c.b16 %v4733, %v4729
        %v5378 = vpack.c.b16 %v4734, %v4730
        %v5379 = vpack.c.b16 %v4735, %v4731
        %v5380 = vpack.c.b16 %v4740, %v4736
        %v5381 = vpack.c.b16 %v4741, %v4737
        %v5382 = vpack.c.b16 %v4742, %v4738
        %v5383 = vpack.c.b16 %v4743, %v4739
        %v5384 = vpack.c.b16 %v4748, %v4744
        %v5385 = vpack.c.b16 %v4749, %v4745
        %v5386 = vpack.c.b16 %v4750, %v4746
        %v5387 = vpack.c.b16 %v4751, %v4747
        %v5388 = vpack.c.b16 %v4756, %v4752
        %v5389 = vpack.c.b16 %v4757, %v4753
        %v5390 = vpack.c.b16 %v4758, %v4754
        %v5391 = vpack.c.b16 %v4759, %v4755
        %v5392 = vpack.c.b16 %v4764, %v4760
        %v5393 = vpack.c.b16 %v4765, %v4761
        %v5394 = vpack.c.b16 %v4766, %v4762
        %v5395 = vpack.c.b16 %v4767, %v4763
        %v5396 = vpack.c.b16 %v4772, %v4768
        %v5397 = vpack.c.b16 %v4773, %v4769
        %v5398 = vpack.c.b16 %v4774, %v4770
        %v5399 = vpack.c.b16 %v4775, %v4771
        %v5400 = vpack.c.b16 %v4780, %v4776
        %v5401 = vpack.c.b16 %v4781, %v4777
        %v5402 = vpack.c.b16 %v4782, %v4778
        %v5403 = vpack.c.b16 %v4783, %v4779
        %v5404 = vpack.c.b16 %v4788, %v4784
        %v5405 = vpack.c.b16 %v4789, %v4785
        %v5406 = vpack.c.b16 %v4790, %v4786
        %v5407 = vpack.c.b16 %v4791, %v4787
        %v5408 = vpack.c.b16 %v4796, %v4792
        %v5409 = vpack.c.b16 %v4797, %v4793
        %v5410 = vpack.c.b16 %v4798, %v4794
        %v5411 = vpack.c.b16 %v4799, %v4795
        %v5412 = vpack.c.b16 %v4804, %v4800
        %v5413 = vpack.c.b16 %v4805, %v4801
        %v5414 = vpack.c.b16 %v4806, %v4802
        %v5415 = vpack.c.b16 %v4807, %v4803
        %v5416 = vpack.c.b16 %v4812, %v4808
        %v5417 = vpack.c.b16 %v4813, %v4809
        %v5418 = vpack.c.b16 %v4814, %v4810
        %v5419 = vpack.c.b16 %v4815, %v4811
        %v5420 = vpack.c.b16 %v4820, %v4816
        %v5421 = vpack.c.b16 %v4821, %v4817
        %v5422 = vpack.c.b16 %v4822, %v4818
        %v5423 = vpack.c.b16 %v4823, %v4819
        %v5424 = vpack.c.b16 %v4828, %v4824
        %v5425 = vpack.c.b16 %v4829, %v4825
        %v5426 = vpack.c.b16 %v4830, %v4826
        %v5427 = vpack.c.b16 %v4831, %v4827
        %v5428 = vpack.c.b16 %v4836, %v4832
        %v5429 = vpack.c.b16 %v4837, %v4833
        %v5430 = vpack.c.b16 %v4838, %v4834
        %v5431 = vpack.c.b16 %v4839, %v4835
        %v5432 = vpack.c.b16 %v4844, %v4840
        %v5433 = vpack.c.b16 %v4845, %v4841
        %v5434 = vpack.c.b16 %v4846, %v4842
        %v5435 = vpack.c.b16 %v4847, %v4843
        %v5436 = vpack.c.b16 %v4852, %v4848
        %v5437 = vpack.c.b16 %v4853, %v4849
        %v5438 = vpack.c.b16 %v4854, %v4850
        %v5439 = vpack.c.b16 %v4855, %v4851
        %v5440 = vpack.c.b16 %v4860, %v4856
        %v5441 = vpack.c.b16 %v4861, %v4857
        %v5442 = vpack.c.b16 %v4862, %v4858
        %v5443 = vpack.c.b16 %v4863, %v4859
        %v5444 = vpack.c.b16 %v4868, %v4864
        %v5445 = vpack.c.b16 %v4869, %v4865
        %v5446 = vpack.c.b16 %v4870, %v4866
        %v5447 = vpack.c.b16 %v4871, %v4867
        %v5448 = vpack.c.b16 %v4876, %v4872
        %v5449 = vpack.c.b16 %v4877, %v4873
        %v5450 = vpack.c.b16 %v4878, %v4874
        %v5451 = vpack.c.b16 %v4879, %v4875
        %v5452 = vpack.c.b16 %v4884, %v4880
        %v5453 = vpack.c.b16 %v4885, %v4881
        %v5454 = vpack.c.b16 %v4886, %v4882
        %v5455 = vpack.c.b16 %v4887, %v4883
        %v5456 = vpack.c.b16 %v4892, %v4888
        %v5457 = vpack.c.b16 %v4893, %v4889
        %v5458 = vpack.c.b16 %v4894, %v4890
        %v5459 = vpack.c.b16 %v4895, %v4891
        %v5460 = vpack.c.b16 %v4900, %v4896
        %v5461 = vpack.c.b16 %v4901, %v4897
        %v5462 = vpack.c.b16 %v4902, %v4898
        %v5463 = vpack.c.b16 %v4903, %v4899
        %v5464 = vpack.c.b16 %v4908, %v4904
        %v5465 = vpack.c.b16 %v4909, %v4905
        %v5466 = vpack.c.b16 %v4910, %v4906
        %v5467 = vpack.c.b16 %v4911, %v4907
        %v5468 = vpack.c.b16 %v4916, %v4912
        %v5469 = vpack.c.b16 %v4917, %v4913
        %v5470 = vpack.c.b16 %v4918, %v4914
        %v5471 = vpack.c.b16 %v4919, %v4915
        %v5472 = vpack.c.b16 %v4924, %v4920
        %v5473 = vpack.c.b16 %v4925, %v4921
        %v5474 = vpack.c.b16 %v4926, %v4922
        %v5475 = vpack.c.b16 %v4927, %v4923
        %v5476 = vpack.c.b16 %v4932, %v4928
        %v5477 = vpack.c.b16 %v4933, %v4929
        %v5478 = vpack.c.b16 %v4934, %v4930
        %v5479 = vpack.c.b16 %v4935, %v4931
        %v5480 = vpack.c.b16 %v4940, %v4936
        %v5481 = vpack.c.b16 %v4941, %v4937
        %v5482 = vpack.c.b16 %v4942, %v4938
        %v5483 = vpack.c.b16 %v4943, %v4939
        %v5484 = vpack.c.b16 %v4948, %v4944
        %v5485 = vpack.c.b16 %v4949, %v4945
        %v5486 = vpack.c.b16 %v4950, %v4946
        %v5487 = vpack.c.b16 %v4951, %v4947
        %v5488 = vpack.c.b16 %v4956, %v4952
        %v5489 = vpack.c.b16 %v4957, %v4953
        %v5490 = vpack.c.b16 %v4958, %v4954
        %v5491 = vpack.c.b16 %v4959, %v4955
        %v5492 = vpack.c.b16 %v4964, %v4960
        %v5493 = vpack.c.b16 %v4965, %v4961
        %v5494 = vpack.c.b16 %v4966, %v4962
        %v5495 = vpack.c.b16 %v4967, %v4963
        %v5496 = vpack.c.b16 %v4972, %v4968
        %v5497 = vpack.c.b16 %v4973, %v4969
        %v5498 = vpack.c.b16 %v4974, %v4970
        %v5499 = vpack.c.b16 %v4975, %v4971
        %v5500 = vpack.c.b16 %v4980, %v4976
        %v5501 = vpack.c.b16 %v4981, %v4977
        %v5502 = vpack.c.b16 %v4982, %v4978
        %v5503 = vpack.c.b16 %v4983, %v4979
        %v5504 = vpack.c.b16 %v4988, %v4984
        %v5505 = vpack.c.b16 %v4989, %v4985
        %v5506 = vpack.c.b16 %v4990, %v4986
        %v5507 = vpack.c.b16 %v4991, %v4987
        %v5508 = vpack.c.b16 %v4996, %v4992
        %v5509 = vpack.c.b16 %v4997, %v4993
        %v5510 = vpack.c.b16 %v4998, %v4994
        %v5511 = vpack.c.b16 %v4999, %v4995
        %6024 = vmatprep.subr.bf16.mxu0 %v5029
        %6025 = vmatpush1.bf16.msra.mxu0 %v5028
        %6026 = vmatprep.subr.bf16.mxu0 %v5025
        %6027 = vmatpush1.bf16.msra.mxu0 %v5024
        %6028 = vmatprep.subr.bf16.mxu0 %v5021
        %6029 = vmatpush1.bf16.msra.mxu0 %v5020
        %6030 = vmatprep.subr.bf16.mxu0 %v5017
        %6031 = vmatpush1.bf16.msra.mxu0 %v5016
        %6032 = vmatprep.subr.bf16.mxu0 %v5013
        %6033 = vmatpush1.bf16.msra.mxu0 %v5012
        %6034 = vmatprep.subr.bf16.mxu0 %v5009
        %6035 = vmatpush1.bf16.msra.mxu0 %v5008
        %6036 = vmatprep.subr.bf16.mxu0 %v5005
        %6037 = vmatpush1.bf16.msra.mxu0 %v5004
        %6038 = vmatprep.subr.bf16.mxu0 %v5001
        %6039 = vmatpush1.bf16.msra.mxu0 %v5000
        %6040 = vmatprep.subr.bf16.mxu0 %v5061
        %6041 = vmatpush2.bf16.msra.mxu0 %v5060
        %6042 = vmatprep.subr.bf16.mxu0 %v5057
        %6043 = vmatpush2.bf16.msra.mxu0 %v5056
        %6044 = vmatprep.subr.bf16.mxu0 %v5053
        %6045 = vmatpush2.bf16.msra.mxu0 %v5052
        %6046 = vmatprep.subr.bf16.mxu0 %v5049
        %6047 = vmatpush2.bf16.msra.mxu0 %v5048
        %6048 = vmatprep.subr.bf16.mxu0 %v5045
        %6049 = vmatpush2.bf16.msra.mxu0 %v5044
        %6050 = vmatprep.subr.bf16.mxu0 %v5041
        %6051 = vmatpush2.bf16.msra.mxu0 %v5040
        %6052 = vmatprep.subr.bf16.mxu0 %v5037
        %6053 = vmatpush2.bf16.msra.mxu0 %v5036
        %6054 = vmatprep.subr.bf16.mxu0 %v5033
        %6055 = vmatpush2.bf16.msra.mxu0 %v5032
        %6056 = vmatprep.mubr.bf16.mxu0 %v3433
        %6057 = vmatmul.mubr.bf16.gmra.mxu0 %v3432
        %v6058 = vpop.f32.mrf.mxu0
        %v6059 = vadd.f32 %v3391, %v6058
        %v6060 = vpop.f32.mrf.mxu0
        %v6061 = vadd.f32 %v3395, %v6060
        %v6062 = vpop.f32.mrf.mxu0
        %v6063 = vpop.f32.mrf.mxu0
        %6064 = vdwg.mxu0
        %6065 = vmatprep.subr.bf16.mxu0 %v5093
        %6066 = vmatpush1.bf16.msra.mxu0 %v5092
        %6067 = vmatprep.subr.bf16.mxu0 %v5089
        %6068 = vmatpush1.bf16.msra.mxu0 %v5088
        %6069 = vmatprep.subr.bf16.mxu0 %v5085
        %6070 = vmatpush1.bf16.msra.mxu0 %v5084
        %6071 = vmatprep.subr.bf16.mxu0 %v5081
        %6072 = vmatpush1.bf16.msra.mxu0 %v5080
        %6073 = vmatprep.subr.bf16.mxu0 %v5077
        %6074 = vmatpush1.bf16.msra.mxu0 %v5076
        %6075 = vmatprep.subr.bf16.mxu0 %v5073
        %6076 = vmatpush1.bf16.msra.mxu0 %v5072
        %6077 = vmatprep.subr.bf16.mxu0 %v5069
        %6078 = vmatpush1.bf16.msra.mxu0 %v5068
        %6079 = vmatprep.subr.bf16.mxu0 %v5065
        %6080 = vmatpush1.bf16.msra.mxu0 %v5064
        %6081 = vmatprep.subr.bf16.mxu0 %v5125
        %6082 = vmatpush2.bf16.msra.mxu0 %v5124
        %6083 = vmatprep.subr.bf16.mxu0 %v5121
        %6084 = vmatpush2.bf16.msra.mxu0 %v5120
        %6085 = vmatprep.subr.bf16.mxu0 %v5117
        %6086 = vmatpush2.bf16.msra.mxu0 %v5116
        %6087 = vmatprep.subr.bf16.mxu0 %v5113
        %6088 = vmatpush2.bf16.msra.mxu0 %v5112
        %6089 = vmatprep.subr.bf16.mxu0 %v5109
        %6090 = vmatpush2.bf16.msra.mxu0 %v5108
        %6091 = vmatprep.subr.bf16.mxu0 %v5105
        %6092 = vmatpush2.bf16.msra.mxu0 %v5104
        %6093 = vmatprep.subr.bf16.mxu0 %v5101
        %6094 = vmatpush2.bf16.msra.mxu0 %v5100
        %6095 = vmatprep.subr.bf16.mxu0 %v5097
        %6096 = vmatpush2.bf16.msra.mxu0 %v5096
        %6097 = vmatprep.mubr.bf16.mxu0 %v3435
        %6098 = vmatmul.mubr.bf16.gmra.mxu0 %v3434
        %v6099 = vpop.f32.mrf.mxu0
        %v6100 = vadd.f32 %v6059, %v6099
        %v6101 = vpop.f32.mrf.mxu0
        %v6102 = vadd.f32 %v6061, %v6101
        %v6103 = vpop.f32.mrf.mxu0
        %v6104 = vpop.f32.mrf.mxu0
        %6105 = vdwg.mxu0
        %6106 = vmatprep.subr.bf16.mxu0 %v5157
        %6107 = vmatpush1.bf16.msra.mxu0 %v5156
        %6108 = vmatprep.subr.bf16.mxu0 %v5153
        %6109 = vmatpush1.bf16.msra.mxu0 %v5152
        %6110 = vmatprep.subr.bf16.mxu0 %v5149
        %6111 = vmatpush1.bf16.msra.mxu0 %v5148
        %6112 = vmatprep.subr.bf16.mxu0 %v5145
        %6113 = vmatpush1.bf16.msra.mxu0 %v5144
        %6114 = vmatprep.subr.bf16.mxu0 %v5141
        %6115 = vmatpush1.bf16.msra.mxu0 %v5140
        %6116 = vmatprep.subr.bf16.mxu0 %v5137
        %6117 = vmatpush1.bf16.msra.mxu0 %v5136
        %6118 = vmatprep.subr.bf16.mxu0 %v5133
        %6119 = vmatpush1.bf16.msra.mxu0 %v5132
        %6120 = vmatprep.subr.bf16.mxu0 %v5129
        %6121 = vmatpush1.bf16.msra.mxu0 %v5128
        %6122 = vmatprep.subr.bf16.mxu0 %v5189
        %6123 = vmatpush2.bf16.msra.mxu0 %v5188
        %6124 = vmatprep.subr.bf16.mxu0 %v5185
        %6125 = vmatpush2.bf16.msra.mxu0 %v5184
        %6126 = vmatprep.subr.bf16.mxu0 %v5181
        %6127 = vmatpush2.bf16.msra.mxu0 %v5180
        %6128 = vmatprep.subr.bf16.mxu0 %v5177
        %6129 = vmatpush2.bf16.msra.mxu0 %v5176
        %6130 = vmatprep.subr.bf16.mxu0 %v5173
        %6131 = vmatpush2.bf16.msra.mxu0 %v5172
        %6132 = vmatprep.subr.bf16.mxu0 %v5169
        %6133 = vmatpush2.bf16.msra.mxu0 %v5168
        %6134 = vmatprep.subr.bf16.mxu0 %v5165
        %6135 = vmatpush2.bf16.msra.mxu0 %v5164
        %6136 = vmatprep.subr.bf16.mxu0 %v5161
        %6137 = vmatpush2.bf16.msra.mxu0 %v5160
        %6138 = vmatprep.mubr.bf16.mxu0 %v3437
        %6139 = vmatmul.mubr.bf16.gmra.mxu0 %v3436
        %v6140 = vpop.f32.mrf.mxu0
        %v6141 = vadd.f32 %v6100, %v6140
        %v6142 = vpop.f32.mrf.mxu0
        %v6143 = vadd.f32 %v6102, %v6142
        %v6144 = vpop.f32.mrf.mxu0
        %v6145 = vpop.f32.mrf.mxu0
        %6146 = vdwg.mxu0
        %6147 = vmatprep.subr.bf16.mxu0 %v5221
        %6148 = vmatpush1.bf16.msra.mxu0 %v5220
        %6149 = vmatprep.subr.bf16.mxu0 %v5217
        %6150 = vmatpush1.bf16.msra.mxu0 %v5216
        %6151 = vmatprep.subr.bf16.mxu0 %v5213
        %6152 = vmatpush1.bf16.msra.mxu0 %v5212
        %6153 = vmatprep.subr.bf16.mxu0 %v5209
        %6154 = vmatpush1.bf16.msra.mxu0 %v5208
        %6155 = vmatprep.subr.bf16.mxu0 %v5205
        %6156 = vmatpush1.bf16.msra.mxu0 %v5204
        %6157 = vmatprep.subr.bf16.mxu0 %v5201
        %6158 = vmatpush1.bf16.msra.mxu0 %v5200
        %6159 = vmatprep.subr.bf16.mxu0 %v5197
        %6160 = vmatpush1.bf16.msra.mxu0 %v5196
        %6161 = vmatprep.subr.bf16.mxu0 %v5193
        %6162 = vmatpush1.bf16.msra.mxu0 %v5192
        %6163 = vmatprep.subr.bf16.mxu0 %v5253
        %6164 = vmatpush2.bf16.msra.mxu0 %v5252
        %6165 = vmatprep.subr.bf16.mxu0 %v5249
        %6166 = vmatpush2.bf16.msra.mxu0 %v5248
        %6167 = vmatprep.subr.bf16.mxu0 %v5245
        %6168 = vmatpush2.bf16.msra.mxu0 %v5244
        %6169 = vmatprep.subr.bf16.mxu0 %v5241
        %6170 = vmatpush2.bf16.msra.mxu0 %v5240
        %6171 = vmatprep.subr.bf16.mxu0 %v5237
        %6172 = vmatpush2.bf16.msra.mxu0 %v5236
        %6173 = vmatprep.subr.bf16.mxu0 %v5233
        %6174 = vmatpush2.bf16.msra.mxu0 %v5232
        %6175 = vmatprep.subr.bf16.mxu0 %v5229
        %6176 = vmatpush2.bf16.msra.mxu0 %v5228
        %6177 = vmatprep.subr.bf16.mxu0 %v5225
        %6178 = vmatpush2.bf16.msra.mxu0 %v5224
        %6179 = vmatprep.mubr.bf16.mxu0 %v3439
        %6180 = vmatmul.mubr.bf16.gmra.mxu0 %v3438
        %v6181 = vpop.f32.mrf.mxu0
        %v6182 = vadd.f32 %v6141, %v6181
        %v6183 = vpop.f32.mrf.mxu0
        %v6184 = vadd.f32 %v6143, %v6183
        %v6185 = vpop.f32.mrf.mxu0
        %v6186 = vpop.f32.mrf.mxu0
        %6187 = vdwg.mxu0
        %6188 = vmatprep.subr.bf16.mxu0 %v5285
        %6189 = vmatpush1.bf16.msra.mxu0 %v5284
        %6190 = vmatprep.subr.bf16.mxu0 %v5281
        %6191 = vmatpush1.bf16.msra.mxu0 %v5280
        %6192 = vmatprep.subr.bf16.mxu0 %v5277
        %6193 = vmatpush1.bf16.msra.mxu0 %v5276
        %6194 = vmatprep.subr.bf16.mxu0 %v5273
        %6195 = vmatpush1.bf16.msra.mxu0 %v5272
        %6196 = vmatprep.subr.bf16.mxu0 %v5269
        %6197 = vmatpush1.bf16.msra.mxu0 %v5268
        %6198 = vmatprep.subr.bf16.mxu0 %v5265
        %6199 = vmatpush1.bf16.msra.mxu0 %v5264
        %6200 = vmatprep.subr.bf16.mxu0 %v5261
        %6201 = vmatpush1.bf16.msra.mxu0 %v5260
        %6202 = vmatprep.subr.bf16.mxu0 %v5257
        %6203 = vmatpush1.bf16.msra.mxu0 %v5256
        %6204 = vmatprep.subr.bf16.mxu0 %v5317
        %6205 = vmatpush2.bf16.msra.mxu0 %v5316
        %6206 = vmatprep.subr.bf16.mxu0 %v5313
        %6207 = vmatpush2.bf16.msra.mxu0 %v5312
        %6208 = vmatprep.subr.bf16.mxu0 %v5309
        %6209 = vmatpush2.bf16.msra.mxu0 %v5308
        %6210 = vmatprep.subr.bf16.mxu0 %v5305
        %6211 = vmatpush2.bf16.msra.mxu0 %v5304
        %6212 = vmatprep.subr.bf16.mxu0 %v5301
        %6213 = vmatpush2.bf16.msra.mxu0 %v5300
        %6214 = vmatprep.subr.bf16.mxu0 %v5297
        %6215 = vmatpush2.bf16.msra.mxu0 %v5296
        %6216 = vmatprep.subr.bf16.mxu0 %v5293
        %6217 = vmatpush2.bf16.msra.mxu0 %v5292
        %6218 = vmatprep.subr.bf16.mxu0 %v5289
        %6219 = vmatpush2.bf16.msra.mxu0 %v5288
        %6220 = vmatprep.mubr.bf16.mxu0 %v3441
        %6221 = vmatmul.mubr.bf16.gmra.mxu0 %v3440
        %v6222 = vpop.f32.mrf.mxu0
        %v6223 = vadd.f32 %v6182, %v6222
        %v6224 = vpop.f32.mrf.mxu0
        %v6225 = vadd.f32 %v6184, %v6224
        %v6226 = vpop.f32.mrf.mxu0
        %v6227 = vpop.f32.mrf.mxu0
        %6228 = vdwg.mxu0
        %6229 = vmatprep.subr.bf16.mxu0 %v5349
        %6230 = vmatpush1.bf16.msra.mxu0 %v5348
        %6231 = vmatprep.subr.bf16.mxu0 %v5345
        %6232 = vmatpush1.bf16.msra.mxu0 %v5344
        %6233 = vmatprep.subr.bf16.mxu0 %v5341
        %6234 = vmatpush1.bf16.msra.mxu0 %v5340
        %6235 = vmatprep.subr.bf16.mxu0 %v5337
        %6236 = vmatpush1.bf16.msra.mxu0 %v5336
        %6237 = vmatprep.subr.bf16.mxu0 %v5333
        %6238 = vmatpush1.bf16.msra.mxu0 %v5332
        %6239 = vmatprep.subr.bf16.mxu0 %v5329
        %6240 = vmatpush1.bf16.msra.mxu0 %v5328
        %6241 = vmatprep.subr.bf16.mxu0 %v5325
        %6242 = vmatpush1.bf16.msra.mxu0 %v5324
        %6243 = vmatprep.subr.bf16.mxu0 %v5321
        %6244 = vmatpush1.bf16.msra.mxu0 %v5320
        %6245 = vmatprep.subr.bf16.mxu0 %v5381
        %6246 = vmatpush2.bf16.msra.mxu0 %v5380
        %6247 = vmatprep.subr.bf16.mxu0 %v5377
        %6248 = vmatpush2.bf16.msra.mxu0 %v5376
        %6249 = vmatprep.subr.bf16.mxu0 %v5373
        %6250 = vmatpush2.bf16.msra.mxu0 %v5372
        %6251 = vmatprep.subr.bf16.mxu0 %v5369
        %6252 = vmatpush2.bf16.msra.mxu0 %v5368
        %6253 = vmatprep.subr.bf16.mxu0 %v5365
        %6254 = vmatpush2.bf16.msra.mxu0 %v5364
        %6255 = vmatprep.subr.bf16.mxu0 %v5361
        %6256 = vmatpush2.bf16.msra.mxu0 %v5360
        %6257 = vmatprep.subr.bf16.mxu0 %v5357
        %6258 = vmatpush2.bf16.msra.mxu0 %v5356
        %6259 = vmatprep.subr.bf16.mxu0 %v5353
        %6260 = vmatpush2.bf16.msra.mxu0 %v5352
        %6261 = vmatprep.mubr.bf16.mxu0 %v3443
        %6262 = vmatmul.mubr.bf16.gmra.mxu0 %v3442
        %v6263 = vpop.f32.mrf.mxu0
        %v6264 = vadd.f32 %v6223, %v6263
        %v6265 = vpop.f32.mrf.mxu0
        %v6266 = vadd.f32 %v6225, %v6265
        %v6267 = vpop.f32.mrf.mxu0
        %v6268 = vpop.f32.mrf.mxu0
        %6269 = vdwg.mxu0
        %6270 = vmatprep.subr.bf16.mxu0 %v5413
        %6271 = vmatpush1.bf16.msra.mxu0 %v5412
        %6272 = vmatprep.subr.bf16.mxu0 %v5409
        %6273 = vmatpush1.bf16.msra.mxu0 %v5408
        %6274 = vmatprep.subr.bf16.mxu0 %v5405
        %6275 = vmatpush1.bf16.msra.mxu0 %v5404
        %6276 = vmatprep.subr.bf16.mxu0 %v5401
        %6277 = vmatpush1.bf16.msra.mxu0 %v5400
        %6278 = vmatprep.subr.bf16.mxu0 %v5397
        %6279 = vmatpush1.bf16.msra.mxu0 %v5396
        %6280 = vmatprep.subr.bf16.mxu0 %v5393
        %6281 = vmatpush1.bf16.msra.mxu0 %v5392
        %6282 = vmatprep.subr.bf16.mxu0 %v5389
        %6283 = vmatpush1.bf16.msra.mxu0 %v5388
        %6284 = vmatprep.subr.bf16.mxu0 %v5385
        %6285 = vmatpush1.bf16.msra.mxu0 %v5384
        %6286 = vmatprep.subr.bf16.mxu0 %v5445
        %6287 = vmatpush2.bf16.msra.mxu0 %v5444
        %6288 = vmatprep.subr.bf16.mxu0 %v5441
        %6289 = vmatpush2.bf16.msra.mxu0 %v5440
        %6290 = vmatprep.subr.bf16.mxu0 %v5437
        %6291 = vmatpush2.bf16.msra.mxu0 %v5436
        %6292 = vmatprep.subr.bf16.mxu0 %v5433
        %6293 = vmatpush2.bf16.msra.mxu0 %v5432
        %6294 = vmatprep.subr.bf16.mxu0 %v5429
        %6295 = vmatpush2.bf16.msra.mxu0 %v5428
        %6296 = vmatprep.subr.bf16.mxu0 %v5425
        %6297 = vmatpush2.bf16.msra.mxu0 %v5424
        %6298 = vmatprep.subr.bf16.mxu0 %v5421
        %6299 = vmatpush2.bf16.msra.mxu0 %v5420
        %6300 = vmatprep.subr.bf16.mxu0 %v5417
        %6301 = vmatpush2.bf16.msra.mxu0 %v5416
        %6302 = vmatprep.mubr.bf16.mxu0 %v3445
        %6303 = vmatmul.mubr.bf16.gmra.mxu0 %v3444
        %v6304 = vpop.f32.mrf.mxu0
        %v6305 = vadd.f32 %v6264, %v6304
        %v6306 = vpop.f32.mrf.mxu0
        %v6307 = vadd.f32 %v6266, %v6306
        %v6308 = vpop.f32.mrf.mxu0
        %v6309 = vpop.f32.mrf.mxu0
        %6310 = vdwg.mxu0
        %6311 = vmatprep.subr.bf16.mxu0 %v5477
        %6312 = vmatpush1.bf16.msra.mxu0 %v5476
        %6313 = vmatprep.subr.bf16.mxu0 %v5473
        %6314 = vmatpush1.bf16.msra.mxu0 %v5472
        %6315 = vmatprep.subr.bf16.mxu0 %v5469
        %6316 = vmatpush1.bf16.msra.mxu0 %v5468
        %6317 = vmatprep.subr.bf16.mxu0 %v5465
        %6318 = vmatpush1.bf16.msra.mxu0 %v5464
        %6319 = vmatprep.subr.bf16.mxu0 %v5461
        %6320 = vmatpush1.bf16.msra.mxu0 %v5460
        %6321 = vmatprep.subr.bf16.mxu0 %v5457
        %6322 = vmatpush1.bf16.msra.mxu0 %v5456
        %6323 = vmatprep.subr.bf16.mxu0 %v5453
        %6324 = vmatpush1.bf16.msra.mxu0 %v5452
        %6325 = vmatprep.subr.bf16.mxu0 %v5449
        %6326 = vmatpush1.bf16.msra.mxu0 %v5448
        %6327 = vmatprep.subr.bf16.mxu0 %v5509
        %6328 = vmatpush2.bf16.msra.mxu0 %v5508
        %6329 = vmatprep.subr.bf16.mxu0 %v5505
        %6330 = vmatpush2.bf16.msra.mxu0 %v5504
        %6331 = vmatprep.subr.bf16.mxu0 %v5501
        %6332 = vmatpush2.bf16.msra.mxu0 %v5500
        %6333 = vmatprep.subr.bf16.mxu0 %v5497
        %6334 = vmatpush2.bf16.msra.mxu0 %v5496
        %6335 = vmatprep.subr.bf16.mxu0 %v5493
        %6336 = vmatpush2.bf16.msra.mxu0 %v5492
        %6337 = vmatprep.subr.bf16.mxu0 %v5489
        %6338 = vmatpush2.bf16.msra.mxu0 %v5488
        %6339 = vmatprep.subr.bf16.mxu0 %v5485
        %6340 = vmatpush2.bf16.msra.mxu0 %v5484
        %6341 = vmatprep.subr.bf16.mxu0 %v5481
        %6342 = vmatpush2.bf16.msra.mxu0 %v5480
        %6343 = vmatprep.mubr.bf16.mxu0 %v3447
        %6344 = vmatmul.mubr.bf16.gmra.mxu0 %v3446
        %v6345 = vpop.f32.mrf.mxu0
        %v6346 = vadd.f32 %v6305, %v6345
        %v6347 = vpop.f32.mrf.mxu0
        %v6348 = vadd.f32 %v6307, %v6347
        %v6349 = vpop.f32.mrf.mxu0
        %v6350 = vpop.f32.mrf.mxu0
        %6351 = vdwg.mxu0
        %6352 = vmatprep.subr.bf16.mxu0 %v5031
        %6353 = vmatpush1.bf16.msra.mxu0 %v5030
        %6354 = vmatprep.subr.bf16.mxu0 %v5027
        %6355 = vmatpush1.bf16.msra.mxu0 %v5026
        %6356 = vmatprep.subr.bf16.mxu0 %v5023
        %6357 = vmatpush1.bf16.msra.mxu0 %v5022
        %6358 = vmatprep.subr.bf16.mxu0 %v5019
        %6359 = vmatpush1.bf16.msra.mxu0 %v5018
        %6360 = vmatprep.subr.bf16.mxu0 %v5015
        %6361 = vmatpush1.bf16.msra.mxu0 %v5014
        %6362 = vmatprep.subr.bf16.mxu0 %v5011
        %6363 = vmatpush1.bf16.msra.mxu0 %v5010
        %6364 = vmatprep.subr.bf16.mxu0 %v5007
        %6365 = vmatpush1.bf16.msra.mxu0 %v5006
        %6366 = vmatprep.subr.bf16.mxu0 %v5003
        %6367 = vmatpush1.bf16.msra.mxu0 %v5002
        %6368 = vmatprep.subr.bf16.mxu0 %v5063
        %6369 = vmatpush2.bf16.msra.mxu0 %v5062
        %6370 = vmatprep.subr.bf16.mxu0 %v5059
        %6371 = vmatpush2.bf16.msra.mxu0 %v5058
        %6372 = vmatprep.subr.bf16.mxu0 %v5055
        %6373 = vmatpush2.bf16.msra.mxu0 %v5054
        %6374 = vmatprep.subr.bf16.mxu0 %v5051
        %6375 = vmatpush2.bf16.msra.mxu0 %v5050
        %6376 = vmatprep.subr.bf16.mxu0 %v5047
        %6377 = vmatpush2.bf16.msra.mxu0 %v5046
        %6378 = vmatprep.subr.bf16.mxu0 %v5043
        %6379 = vmatpush2.bf16.msra.mxu0 %v5042
        %6380 = vmatprep.subr.bf16.mxu0 %v5039
        %6381 = vmatpush2.bf16.msra.mxu0 %v5038
        %6382 = vmatprep.subr.bf16.mxu0 %v5035
        %6383 = vmatpush2.bf16.msra.mxu0 %v5034
        %6384 = vmatprep.mubr.bf16.mxu0 %v3433
        %6385 = vmatmul.mubr.bf16.gmra.mxu0 %v3432
        %v6386 = vpop.f32.mrf.mxu0
        %v6387 = vadd.f32 %v3399, %v6386
        %v6388 = vpop.f32.mrf.mxu0
        %v6389 = vadd.f32 %v3403, %v6388
        %v6390 = vpop.f32.mrf.mxu0
        %v6391 = vpop.f32.mrf.mxu0
        %6392 = vdwg.mxu0
        %6393 = vmatprep.subr.bf16.mxu0 %v5095
        %6394 = vmatpush1.bf16.msra.mxu0 %v5094
        %6395 = vmatprep.subr.bf16.mxu0 %v5091
        %6396 = vmatpush1.bf16.msra.mxu0 %v5090
        %6397 = vmatprep.subr.bf16.mxu0 %v5087
        %6398 = vmatpush1.bf16.msra.mxu0 %v5086
        %6399 = vmatprep.subr.bf16.mxu0 %v5083
        %6400 = vmatpush1.bf16.msra.mxu0 %v5082
        %6401 = vmatprep.subr.bf16.mxu0 %v5079
        %6402 = vmatpush1.bf16.msra.mxu0 %v5078
        %6403 = vmatprep.subr.bf16.mxu0 %v5075
        %6404 = vmatpush1.bf16.msra.mxu0 %v5074
        %6405 = vmatprep.subr.bf16.mxu0 %v5071
        %6406 = vmatpush1.bf16.msra.mxu0 %v5070
        %6407 = vmatprep.subr.bf16.mxu0 %v5067
        %6408 = vmatpush1.bf16.msra.mxu0 %v5066
        %6409 = vmatprep.subr.bf16.mxu0 %v5127
        %6410 = vmatpush2.bf16.msra.mxu0 %v5126
        %6411 = vmatprep.subr.bf16.mxu0 %v5123
        %6412 = vmatpush2.bf16.msra.mxu0 %v5122
        %6413 = vmatprep.subr.bf16.mxu0 %v5119
        %6414 = vmatpush2.bf16.msra.mxu0 %v5118
        %6415 = vmatprep.subr.bf16.mxu0 %v5115
        %6416 = vmatpush2.bf16.msra.mxu0 %v5114
        %6417 = vmatprep.subr.bf16.mxu0 %v5111
        %6418 = vmatpush2.bf16.msra.mxu0 %v5110
        %6419 = vmatprep.subr.bf16.mxu0 %v5107
        %6420 = vmatpush2.bf16.msra.mxu0 %v5106
        %6421 = vmatprep.subr.bf16.mxu0 %v5103
        %6422 = vmatpush2.bf16.msra.mxu0 %v5102
        %6423 = vmatprep.subr.bf16.mxu0 %v5099
        %6424 = vmatpush2.bf16.msra.mxu0 %v5098
        %6425 = vmatprep.mubr.bf16.mxu0 %v3435
        %6426 = vmatmul.mubr.bf16.gmra.mxu0 %v3434
        %v6427 = vpop.f32.mrf.mxu0
        %v6428 = vadd.f32 %v6387, %v6427
        %v6429 = vpop.f32.mrf.mxu0
        %v6430 = vadd.f32 %v6389, %v6429
        %v6431 = vpop.f32.mrf.mxu0
        %v6432 = vpop.f32.mrf.mxu0
        %6433 = vdwg.mxu0
        %6434 = vmatprep.subr.bf16.mxu0 %v5159
        %6435 = vmatpush1.bf16.msra.mxu0 %v5158
        %6436 = vmatprep.subr.bf16.mxu0 %v5155
        %6437 = vmatpush1.bf16.msra.mxu0 %v5154
        %6438 = vmatprep.subr.bf16.mxu0 %v5151
        %6439 = vmatpush1.bf16.msra.mxu0 %v5150
        %6440 = vmatprep.subr.bf16.mxu0 %v5147
        %6441 = vmatpush1.bf16.msra.mxu0 %v5146
        %6442 = vmatprep.subr.bf16.mxu0 %v5143
        %6443 = vmatpush1.bf16.msra.mxu0 %v5142
        %6444 = vmatprep.subr.bf16.mxu0 %v5139
        %6445 = vmatpush1.bf16.msra.mxu0 %v5138
        %6446 = vmatprep.subr.bf16.mxu0 %v5135
        %6447 = vmatpush1.bf16.msra.mxu0 %v5134
        %6448 = vmatprep.subr.bf16.mxu0 %v5131
        %6449 = vmatpush1.bf16.msra.mxu0 %v5130
        %6450 = vmatprep.subr.bf16.mxu0 %v5191
        %6451 = vmatpush2.bf16.msra.mxu0 %v5190
        %6452 = vmatprep.subr.bf16.mxu0 %v5187
        %6453 = vmatpush2.bf16.msra.mxu0 %v5186
        %6454 = vmatprep.subr.bf16.mxu0 %v5183
        %6455 = vmatpush2.bf16.msra.mxu0 %v5182
        %6456 = vmatprep.subr.bf16.mxu0 %v5179
        %6457 = vmatpush2.bf16.msra.mxu0 %v5178
        %6458 = vmatprep.subr.bf16.mxu0 %v5175
        %6459 = vmatpush2.bf16.msra.mxu0 %v5174
        %6460 = vmatprep.subr.bf16.mxu0 %v5171
        %6461 = vmatpush2.bf16.msra.mxu0 %v5170
        %6462 = vmatprep.subr.bf16.mxu0 %v5167
        %6463 = vmatpush2.bf16.msra.mxu0 %v5166
        %6464 = vmatprep.subr.bf16.mxu0 %v5163
        %6465 = vmatpush2.bf16.msra.mxu0 %v5162
        %6466 = vmatprep.mubr.bf16.mxu0 %v3437
        %6467 = vmatmul.mubr.bf16.gmra.mxu0 %v3436
        %v6468 = vpop.f32.mrf.mxu0
        %v6469 = vadd.f32 %v6428, %v6468
        %v6470 = vpop.f32.mrf.mxu0
        %v6471 = vadd.f32 %v6430, %v6470
        %v6472 = vpop.f32.mrf.mxu0
        %v6473 = vpop.f32.mrf.mxu0
        %6474 = vdwg.mxu0
        %6475 = vmatprep.subr.bf16.mxu0 %v5223
        %6476 = vmatpush1.bf16.msra.mxu0 %v5222
        %6477 = vmatprep.subr.bf16.mxu0 %v5219
        %6478 = vmatpush1.bf16.msra.mxu0 %v5218
        %6479 = vmatprep.subr.bf16.mxu0 %v5215
        %6480 = vmatpush1.bf16.msra.mxu0 %v5214
        %6481 = vmatprep.subr.bf16.mxu0 %v5211
        %6482 = vmatpush1.bf16.msra.mxu0 %v5210
        %6483 = vmatprep.subr.bf16.mxu0 %v5207
        %6484 = vmatpush1.bf16.msra.mxu0 %v5206
        %6485 = vmatprep.subr.bf16.mxu0 %v5203
        %6486 = vmatpush1.bf16.msra.mxu0 %v5202
        %6487 = vmatprep.subr.bf16.mxu0 %v5199
        %6488 = vmatpush1.bf16.msra.mxu0 %v5198
        %6489 = vmatprep.subr.bf16.mxu0 %v5195
        %6490 = vmatpush1.bf16.msra.mxu0 %v5194
        %6491 = vmatprep.subr.bf16.mxu0 %v5255
        %6492 = vmatpush2.bf16.msra.mxu0 %v5254
        %6493 = vmatprep.subr.bf16.mxu0 %v5251
        %6494 = vmatpush2.bf16.msra.mxu0 %v5250
        %6495 = vmatprep.subr.bf16.mxu0 %v5247
        %6496 = vmatpush2.bf16.msra.mxu0 %v5246
        %6497 = vmatprep.subr.bf16.mxu0 %v5243
        %6498 = vmatpush2.bf16.msra.mxu0 %v5242
        %6499 = vmatprep.subr.bf16.mxu0 %v5239
        %6500 = vmatpush2.bf16.msra.mxu0 %v5238
        %6501 = vmatprep.subr.bf16.mxu0 %v5235
        %6502 = vmatpush2.bf16.msra.mxu0 %v5234
        %6503 = vmatprep.subr.bf16.mxu0 %v5231
        %6504 = vmatpush2.bf16.msra.mxu0 %v5230
        %6505 = vmatprep.subr.bf16.mxu0 %v5227
        %6506 = vmatpush2.bf16.msra.mxu0 %v5226
        %6507 = vmatprep.mubr.bf16.mxu0 %v3439
        %6508 = vmatmul.mubr.bf16.gmra.mxu0 %v3438
        %v6509 = vpop.f32.mrf.mxu0
        %v6510 = vadd.f32 %v6469, %v6509
        %v6511 = vpop.f32.mrf.mxu0
        %v6512 = vadd.f32 %v6471, %v6511
        %v6513 = vpop.f32.mrf.mxu0
        %v6514 = vpop.f32.mrf.mxu0
        %6515 = vdwg.mxu0
        %6516 = vmatprep.subr.bf16.mxu0 %v5287
        %6517 = vmatpush1.bf16.msra.mxu0 %v5286
        %6518 = vmatprep.subr.bf16.mxu0 %v5283
        %6519 = vmatpush1.bf16.msra.mxu0 %v5282
        %6520 = vmatprep.subr.bf16.mxu0 %v5279
        %6521 = vmatpush1.bf16.msra.mxu0 %v5278
        %6522 = vmatprep.subr.bf16.mxu0 %v5275
        %6523 = vmatpush1.bf16.msra.mxu0 %v5274
        %6524 = vmatprep.subr.bf16.mxu0 %v5271
        %6525 = vmatpush1.bf16.msra.mxu0 %v5270
        %6526 = vmatprep.subr.bf16.mxu0 %v5267
        %6527 = vmatpush1.bf16.msra.mxu0 %v5266
        %6528 = vmatprep.subr.bf16.mxu0 %v5263
        %6529 = vmatpush1.bf16.msra.mxu0 %v5262
        %6530 = vmatprep.subr.bf16.mxu0 %v5259
        %6531 = vmatpush1.bf16.msra.mxu0 %v5258
        %6532 = vmatprep.subr.bf16.mxu0 %v5319
        %6533 = vmatpush2.bf16.msra.mxu0 %v5318
        %6534 = vmatprep.subr.bf16.mxu0 %v5315
        %6535 = vmatpush2.bf16.msra.mxu0 %v5314
        %6536 = vmatprep.subr.bf16.mxu0 %v5311
        %6537 = vmatpush2.bf16.msra.mxu0 %v5310
        %6538 = vmatprep.subr.bf16.mxu0 %v5307
        %6539 = vmatpush2.bf16.msra.mxu0 %v5306
        %6540 = vmatprep.subr.bf16.mxu0 %v5303
        %6541 = vmatpush2.bf16.msra.mxu0 %v5302
        %6542 = vmatprep.subr.bf16.mxu0 %v5299
        %6543 = vmatpush2.bf16.msra.mxu0 %v5298
        %6544 = vmatprep.subr.bf16.mxu0 %v5295
        %6545 = vmatpush2.bf16.msra.mxu0 %v5294
        %6546 = vmatprep.subr.bf16.mxu0 %v5291
        %6547 = vmatpush2.bf16.msra.mxu0 %v5290
        %6548 = vmatprep.mubr.bf16.mxu0 %v3441
        %6549 = vmatmul.mubr.bf16.gmra.mxu0 %v3440
        %v6550 = vpop.f32.mrf.mxu0
        %v6551 = vadd.f32 %v6510, %v6550
        %v6552 = vpop.f32.mrf.mxu0
        %v6553 = vadd.f32 %v6512, %v6552
        %v6554 = vpop.f32.mrf.mxu0
        %v6555 = vpop.f32.mrf.mxu0
        %6556 = vdwg.mxu0
        %6557 = vmatprep.subr.bf16.mxu0 %v5351
        %6558 = vmatpush1.bf16.msra.mxu0 %v5350
        %6559 = vmatprep.subr.bf16.mxu0 %v5347
        %6560 = vmatpush1.bf16.msra.mxu0 %v5346
        %6561 = vmatprep.subr.bf16.mxu0 %v5343
        %6562 = vmatpush1.bf16.msra.mxu0 %v5342
        %6563 = vmatprep.subr.bf16.mxu0 %v5339
        %6564 = vmatpush1.bf16.msra.mxu0 %v5338
        %6565 = vmatprep.subr.bf16.mxu0 %v5335
        %6566 = vmatpush1.bf16.msra.mxu0 %v5334
        %6567 = vmatprep.subr.bf16.mxu0 %v5331
        %6568 = vmatpush1.bf16.msra.mxu0 %v5330
        %6569 = vmatprep.subr.bf16.mxu0 %v5327
        %6570 = vmatpush1.bf16.msra.mxu0 %v5326
        %6571 = vmatprep.subr.bf16.mxu0 %v5323
        %6572 = vmatpush1.bf16.msra.mxu0 %v5322
        %6573 = vmatprep.subr.bf16.mxu0 %v5383
        %6574 = vmatpush2.bf16.msra.mxu0 %v5382
        %6575 = vmatprep.subr.bf16.mxu0 %v5379
        %6576 = vmatpush2.bf16.msra.mxu0 %v5378
        %6577 = vmatprep.subr.bf16.mxu0 %v5375
        %6578 = vmatpush2.bf16.msra.mxu0 %v5374
        %6579 = vmatprep.subr.bf16.mxu0 %v5371
        %6580 = vmatpush2.bf16.msra.mxu0 %v5370
        %6581 = vmatprep.subr.bf16.mxu0 %v5367
        %6582 = vmatpush2.bf16.msra.mxu0 %v5366
        %6583 = vmatprep.subr.bf16.mxu0 %v5363
        %6584 = vmatpush2.bf16.msra.mxu0 %v5362
        %6585 = vmatprep.subr.bf16.mxu0 %v5359
        %6586 = vmatpush2.bf16.msra.mxu0 %v5358
        %6587 = vmatprep.subr.bf16.mxu0 %v5355
        %6588 = vmatpush2.bf16.msra.mxu0 %v5354
        %6589 = vmatprep.mubr.bf16.mxu0 %v3443
        %6590 = vmatmul.mubr.bf16.gmra.mxu0 %v3442
        %v6591 = vpop.f32.mrf.mxu0
        %v6592 = vadd.f32 %v6551, %v6591
        %v6593 = vpop.f32.mrf.mxu0
        %v6594 = vadd.f32 %v6553, %v6593
        %v6595 = vpop.f32.mrf.mxu0
        %v6596 = vpop.f32.mrf.mxu0
        %6597 = vdwg.mxu0
        %6598 = vmatprep.subr.bf16.mxu0 %v5415
        %6599 = vmatpush1.bf16.msra.mxu0 %v5414
        %6600 = vmatprep.subr.bf16.mxu0 %v5411
        %6601 = vmatpush1.bf16.msra.mxu0 %v5410
        %6602 = vmatprep.subr.bf16.mxu0 %v5407
        %6603 = vmatpush1.bf16.msra.mxu0 %v5406
        %6604 = vmatprep.subr.bf16.mxu0 %v5403
        %6605 = vmatpush1.bf16.msra.mxu0 %v5402
        %6606 = vmatprep.subr.bf16.mxu0 %v5399
        %6607 = vmatpush1.bf16.msra.mxu0 %v5398
        %6608 = vmatprep.subr.bf16.mxu0 %v5395
        %6609 = vmatpush1.bf16.msra.mxu0 %v5394
        %6610 = vmatprep.subr.bf16.mxu0 %v5391
        %6611 = vmatpush1.bf16.msra.mxu0 %v5390
        %6612 = vmatprep.subr.bf16.mxu0 %v5387
        %6613 = vmatpush1.bf16.msra.mxu0 %v5386
        %6614 = vmatprep.subr.bf16.mxu0 %v5447
        %6615 = vmatpush2.bf16.msra.mxu0 %v5446
        %6616 = vmatprep.subr.bf16.mxu0 %v5443
        %6617 = vmatpush2.bf16.msra.mxu0 %v5442
        %6618 = vmatprep.subr.bf16.mxu0 %v5439
        %6619 = vmatpush2.bf16.msra.mxu0 %v5438
        %6620 = vmatprep.subr.bf16.mxu0 %v5435
        %6621 = vmatpush2.bf16.msra.mxu0 %v5434
        %6622 = vmatprep.subr.bf16.mxu0 %v5431
        %6623 = vmatpush2.bf16.msra.mxu0 %v5430
        %6624 = vmatprep.subr.bf16.mxu0 %v5427
        %6625 = vmatpush2.bf16.msra.mxu0 %v5426
        %6626 = vmatprep.subr.bf16.mxu0 %v5423
        %6627 = vmatpush2.bf16.msra.mxu0 %v5422
        %6628 = vmatprep.subr.bf16.mxu0 %v5419
        %6629 = vmatpush2.bf16.msra.mxu0 %v5418
        %6630 = vmatprep.mubr.bf16.mxu0 %v3445
        %6631 = vmatmul.mubr.bf16.gmra.mxu0 %v3444
        %v6632 = vpop.f32.mrf.mxu0
        %v6633 = vadd.f32 %v6592, %v6632
        %v6634 = vpop.f32.mrf.mxu0
        %v6635 = vadd.f32 %v6594, %v6634
        %v6636 = vpop.f32.mrf.mxu0
        %v6637 = vpop.f32.mrf.mxu0
        %6638 = vdwg.mxu0
        %6639 = vmatprep.subr.bf16.mxu0 %v5479
        %6640 = vmatpush1.bf16.msra.mxu0 %v5478
        %6641 = vmatprep.subr.bf16.mxu0 %v5475
        %6642 = vmatpush1.bf16.msra.mxu0 %v5474
        %6643 = vmatprep.subr.bf16.mxu0 %v5471
        %6644 = vmatpush1.bf16.msra.mxu0 %v5470
        %6645 = vmatprep.subr.bf16.mxu0 %v5467
        %6646 = vmatpush1.bf16.msra.mxu0 %v5466
        %6647 = vmatprep.subr.bf16.mxu0 %v5463
        %6648 = vmatpush1.bf16.msra.mxu0 %v5462
        %6649 = vmatprep.subr.bf16.mxu0 %v5459
        %6650 = vmatpush1.bf16.msra.mxu0 %v5458
        %6651 = vmatprep.subr.bf16.mxu0 %v5455
        %6652 = vmatpush1.bf16.msra.mxu0 %v5454
        %6653 = vmatprep.subr.bf16.mxu0 %v5451
        %6654 = vmatpush1.bf16.msra.mxu0 %v5450
        %6655 = vmatprep.subr.bf16.mxu0 %v5511
        %6656 = vmatpush2.bf16.msra.mxu0 %v5510
        %6657 = vmatprep.subr.bf16.mxu0 %v5507
        %6658 = vmatpush2.bf16.msra.mxu0 %v5506
        %6659 = vmatprep.subr.bf16.mxu0 %v5503
        %6660 = vmatpush2.bf16.msra.mxu0 %v5502
        %6661 = vmatprep.subr.bf16.mxu0 %v5499
        %6662 = vmatpush2.bf16.msra.mxu0 %v5498
        %6663 = vmatprep.subr.bf16.mxu0 %v5495
        %6664 = vmatpush2.bf16.msra.mxu0 %v5494
        %6665 = vmatprep.subr.bf16.mxu0 %v5491
        %6666 = vmatpush2.bf16.msra.mxu0 %v5490
        %6667 = vmatprep.subr.bf16.mxu0 %v5487
        %6668 = vmatpush2.bf16.msra.mxu0 %v5486
        %6669 = vmatprep.subr.bf16.mxu0 %v5483
        %6670 = vmatpush2.bf16.msra.mxu0 %v5482
        %6671 = vmatprep.mubr.bf16.mxu0 %v3447
        %6672 = vmatmul.mubr.bf16.gmra.mxu0 %v3446
        %v6673 = vpop.f32.mrf.mxu0
        %v6674 = vadd.f32 %v6633, %v6673
        %v6675 = vpop.f32.mrf.mxu0
        %v6676 = vadd.f32 %v6635, %v6675
        %v6677 = vpop.f32.mrf.mxu0
        %v6678 = vpop.f32.mrf.mxu0
        %6679 = vdwg.mxu0
        %v6680 = vmax.f32 %v6346, 0.0
        %v6681 = vmax.f32 %v6348, 0.0
        %v6682 = vmax.f32 %v6674, 0.0
        %v6683 = vmax.f32 %v6676, 0.0
        %v6684 = vpack.c.bf16 %v6680, %v6680
        %v6685 = vpack.c.bf16 %v6681, %v6681
        %v6686 = vpack.c.bf16 %v6682, %v6682
        %v6687 = vpack.c.bf16 %v6683, %v6683
        %v6688 = vld [vmem:[%s7] sm:$0xf]
        %v6689 = vld [vmem:[%s7 + $0x4] sm:$0xf]
        %v6690 = vld [vmem:[%s7 + $0x8] sm:$0xf]
        %v6691 = vld [vmem:[%s7 + $0xc] sm:$0xf]
        %v6692 = vld [vmem:[%s7 + $0x10] sm:$0xf]
        %v6693 = vld [vmem:[%s7 + $0x14] sm:$0xf]
        %v6694 = vld [vmem:[%s7 + $0x18] sm:$0xf]
        %v6695 = vld [vmem:[%s7 + $0x1c] sm:$0xf]
        %v6696 = vld [vmem:[%s7 + $0x20] sm:$0xf]
        %v6697 = vld [vmem:[%s7 + $0x24] sm:$0xf]
        %v6698 = vld [vmem:[%s7 + $0x28] sm:$0xf]
        %v6699 = vld [vmem:[%s7 + $0x2c] sm:$0xf]
        %v6700 = vld [vmem:[%s7 + $0x30] sm:$0xf]
        %v6701 = vld [vmem:[%s7 + $0x34] sm:$0xf]
        %v6702 = vld [vmem:[%s7 + $0x38] sm:$0xf]
        %v6703 = vld [vmem:[%s7 + $0x3c] sm:$0xf]
        %v6704 = vld [vmem:[%s7 + $0x40] sm:$0xf]
        %v6705 = vld [vmem:[%s7 + $0x44] sm:$0xf]
        %v6706 = vld [vmem:[%s7 + $0x48] sm:$0xf]
        %v6707 = vld [vmem:[%s7 + $0x4c] sm:$0xf]
        %v6708 = vld [vmem:[%s7 + $0x50] sm:$0xf]
        %v6709 = vld [vmem:[%s7 + $0x54] sm:$0xf]
        %v6710 = vld [vmem:[%s7 + $0x58] sm:$0xf]
        %v6711 = vld [vmem:[%s7 + $0x5c] sm:$0xf]
        %v6712 = vld [vmem:[%s7 + $0x60] sm:$0xf]
        %v6713 = vld [vmem:[%s7 + $0x64] sm:$0xf]
        %v6714 = vld [vmem:[%s7 + $0x68] sm:$0xf]
        %v6715 = vld [vmem:[%s7 + $0x6c] sm:$0xf]
        %v6716 = vld [vmem:[%s7 + $0x70] sm:$0xf]
        %v6717 = vld [vmem:[%s7 + $0x74] sm:$0xf]
        %v6718 = vld [vmem:[%s7 + $0x78] sm:$0xf]
        %v6719 = vld [vmem:[%s7 + $0x7c] sm:$0xf]
        %v6720 = vld [vmem:[%s7 + $0x80] sm:$0xf]
        %v6721 = vld [vmem:[%s7 + $0x84] sm:$0xf]
        %v6722 = vld [vmem:[%s7 + $0x88] sm:$0xf]
        %v6723 = vld [vmem:[%s7 + $0x8c] sm:$0xf]
        %v6724 = vld [vmem:[%s7 + $0x90] sm:$0xf]
        %v6725 = vld [vmem:[%s7 + $0x94] sm:$0xf]
        %v6726 = vld [vmem:[%s7 + $0x98] sm:$0xf]
        %v6727 = vld [vmem:[%s7 + $0x9c] sm:$0xf]
        %v6728 = vld [vmem:[%s7 + $0xa0] sm:$0xf]
        %v6729 = vld [vmem:[%s7 + $0xa4] sm:$0xf]
        %v6730 = vld [vmem:[%s7 + $0xa8] sm:$0xf]
        %v6731 = vld [vmem:[%s7 + $0xac] sm:$0xf]
        %v6732 = vld [vmem:[%s7 + $0xb0] sm:$0xf]
        %v6733 = vld [vmem:[%s7 + $0xb4] sm:$0xf]
        %v6734 = vld [vmem:[%s7 + $0xb8] sm:$0xf]
        %v6735 = vld [vmem:[%s7 + $0xbc] sm:$0xf]
        %v6736 = vld [vmem:[%s7 + $0xc0] sm:$0xf]
        %v6737 = vld [vmem:[%s7 + $0xc4] sm:$0xf]
        %v6738 = vld [vmem:[%s7 + $0xc8] sm:$0xf]
        %v6739 = vld [vmem:[%s7 + $0xcc] sm:$0xf]
        %v6740 = vld [vmem:[%s7 + $0xd0] sm:$0xf]
        %v6741 = vld [vmem:[%s7 + $0xd4] sm:$0xf]
        %v6742 = vld [vmem:[%s7 + $0xd8] sm:$0xf]
        %v6743 = vld [vmem:[%s7 + $0xdc] sm:$0xf]
        %v6744 = vld [vmem:[%s7 + $0xe0] sm:$0xf]
        %v6745 = vld [vmem:[%s7 + $0xe4] sm:$0xf]
        %v6746 = vld [vmem:[%s7 + $0xe8] sm:$0xf]
        %v6747 = vld [vmem:[%s7 + $0xec] sm:$0xf]
        %v6748 = vld [vmem:[%s7 + $0xf0] sm:$0xf]
        %v6749 = vld [vmem:[%s7 + $0xf4] sm:$0xf]
        %v6750 = vld [vmem:[%s7 + $0xf8] sm:$0xf]
        %v6751 = vld [vmem:[%s7 + $0xfc] sm:$0xf]
        %v6752 = vld [vmem:[%s8] sm:$0x1]
        %v6754 = vlaneseq
        %v6755 = vshrl.u32 %v6754, 7
        %v6756 = vsub.s32 0, %v6755
        %v6757 = vrot.slane %v6752, %v6756
        %v6823 = vunpack.c.l.b16 %v6688
        %v6824 = vunpack.c.l.b16 %v6689
        %v6825 = vunpack.c.l.b16 %v6690
        %v6826 = vunpack.c.l.b16 %v6691
        %v6827 = vunpack.c.l.b16 %v6692
        %v6828 = vunpack.c.l.b16 %v6693
        %v6829 = vunpack.c.l.b16 %v6694
        %v6830 = vunpack.c.l.b16 %v6695
        %v6831 = vunpack.c.l.b16 %v6696
        %v6832 = vunpack.c.l.b16 %v6697
        %v6833 = vunpack.c.l.b16 %v6698
        %v6834 = vunpack.c.l.b16 %v6699
        %v6835 = vunpack.c.l.b16 %v6700
        %v6836 = vunpack.c.l.b16 %v6701
        %v6837 = vunpack.c.l.b16 %v6702
        %v6838 = vunpack.c.l.b16 %v6703
        %v6839 = vunpack.c.l.b16 %v6704
        %v6840 = vunpack.c.l.b16 %v6705
        %v6841 = vunpack.c.l.b16 %v6706
        %v6842 = vunpack.c.l.b16 %v6707
        %v6843 = vunpack.c.l.b16 %v6708
        %v6844 = vunpack.c.l.b16 %v6709
        %v6845 = vunpack.c.l.b16 %v6710
        %v6846 = vunpack.c.l.b16 %v6711
        %v6847 = vunpack.c.l.b16 %v6712
        %v6848 = vunpack.c.l.b16 %v6713
        %v6849 = vunpack.c.l.b16 %v6714
        %v6850 = vunpack.c.l.b16 %v6715
        %v6851 = vunpack.c.l.b16 %v6716
        %v6852 = vunpack.c.l.b16 %v6717
        %v6853 = vunpack.c.l.b16 %v6718
        %v6854 = vunpack.c.l.b16 %v6719
        %v6855 = vunpack.c.l.b16 %v6720
        %v6856 = vunpack.c.l.b16 %v6721
        %v6857 = vunpack.c.l.b16 %v6722
        %v6858 = vunpack.c.l.b16 %v6723
        %v6859 = vunpack.c.l.b16 %v6724
        %v6860 = vunpack.c.l.b16 %v6725
        %v6861 = vunpack.c.l.b16 %v6726
        %v6862 = vunpack.c.l.b16 %v6727
        %v6863 = vunpack.c.l.b16 %v6728
        %v6864 = vunpack.c.l.b16 %v6729
        %v6865 = vunpack.c.l.b16 %v6730
        %v6866 = vunpack.c.l.b16 %v6731
        %v6867 = vunpack.c.l.b16 %v6732
        %v6868 = vunpack.c.l.b16 %v6733
        %v6869 = vunpack.c.l.b16 %v6734
        %v6870 = vunpack.c.l.b16 %v6735
        %v6871 = vunpack.c.l.b16 %v6736
        %v6872 = vunpack.c.l.b16 %v6737
        %v6873 = vunpack.c.l.b16 %v6738
        %v6874 = vunpack.c.l.b16 %v6739
        %v6875 = vunpack.c.l.b16 %v6740
        %v6876 = vunpack.c.l.b16 %v6741
        %v6877 = vunpack.c.l.b16 %v6742
        %v6878 = vunpack.c.l.b16 %v6743
        %v6879 = vunpack.c.l.b16 %v6744
        %v6880 = vunpack.c.l.b16 %v6745
        %v6881 = vunpack.c.l.b16 %v6746
        %v6882 = vunpack.c.l.b16 %v6747
        %v6883 = vunpack.c.l.b16 %v6748
        %v6884 = vunpack.c.l.b16 %v6749
        %v6885 = vunpack.c.l.b16 %v6750
        %v6886 = vunpack.c.l.b16 %v6751
        %v6887 = vpack.c.b16 %v6824, %v6823
        %v6888 = vpack.c.b16 %v6826, %v6825
        %v6889 = vpack.c.b16 %v6828, %v6827
        %v6890 = vpack.c.b16 %v6830, %v6829
        %v6891 = vpack.c.b16 %v6832, %v6831
        %v6892 = vpack.c.b16 %v6834, %v6833
        %v6893 = vpack.c.b16 %v6836, %v6835
        %v6894 = vpack.c.b16 %v6838, %v6837
        %v6895 = vpack.c.b16 %v6840, %v6839
        %v6896 = vpack.c.b16 %v6842, %v6841
        %v6897 = vpack.c.b16 %v6844, %v6843
        %v6898 = vpack.c.b16 %v6846, %v6845
        %v6899 = vpack.c.b16 %v6848, %v6847
        %v6900 = vpack.c.b16 %v6850, %v6849
        %v6901 = vpack.c.b16 %v6852, %v6851
        %v6902 = vpack.c.b16 %v6854, %v6853
        %v6903 = vpack.c.b16 %v6856, %v6855
        %v6904 = vpack.c.b16 %v6858, %v6857
        %v6905 = vpack.c.b16 %v6860, %v6859
        %v6906 = vpack.c.b16 %v6862, %v6861
        %v6907 = vpack.c.b16 %v6864, %v6863
        %v6908 = vpack.c.b16 %v6866, %v6865
        %v6909 = vpack.c.b16 %v6868, %v6867
        %v6910 = vpack.c.b16 %v6870, %v6869
        %v6911 = vpack.c.b16 %v6872, %v6871
        %v6912 = vpack.c.b16 %v6874, %v6873
        %v6913 = vpack.c.b16 %v6876, %v6875
        %v6914 = vpack.c.b16 %v6878, %v6877
        %v6915 = vpack.c.b16 %v6880, %v6879
        %v6916 = vpack.c.b16 %v6882, %v6881
        %v6917 = vpack.c.b16 %v6884, %v6883
        %v6918 = vpack.c.b16 %v6886, %v6885
        %6951 = vmatprep.subr.bf16.mxu0 0
        %6952 = vmatpush1.bf16.msra.mxu0 %v6894
        %6953 = vmatprep.subr.bf16.mxu0 0
        %6954 = vmatpush1.bf16.msra.mxu0 %v6893
        %6955 = vmatprep.subr.bf16.mxu0 0
        %6956 = vmatpush1.bf16.msra.mxu0 %v6892
        %6957 = vmatprep.subr.bf16.mxu0 0
        %6958 = vmatpush1.bf16.msra.mxu0 %v6891
        %6959 = vmatprep.subr.bf16.mxu0 0
        %6960 = vmatpush1.bf16.msra.mxu0 %v6890
        %6961 = vmatprep.subr.bf16.mxu0 0
        %6962 = vmatpush1.bf16.msra.mxu0 %v6889
        %6963 = vmatprep.subr.bf16.mxu0 0
        %6964 = vmatpush1.bf16.msra.mxu0 %v6888
        %6965 = vmatprep.subr.bf16.mxu0 0
        %6966 = vmatpush1.bf16.msra.mxu0 %v6887
        %6967 = vmatprep.subr.bf16.mxu0 0
        %6968 = vmatpush2.bf16.msra.mxu0 %v6902
        %6969 = vmatprep.subr.bf16.mxu0 0
        %6970 = vmatpush2.bf16.msra.mxu0 %v6901
        %6971 = vmatprep.subr.bf16.mxu0 0
        %6972 = vmatpush2.bf16.msra.mxu0 %v6900
        %6973 = vmatprep.subr.bf16.mxu0 0
        %6974 = vmatpush2.bf16.msra.mxu0 %v6899
        %6975 = vmatprep.subr.bf16.mxu0 0
        %6976 = vmatpush2.bf16.msra.mxu0 %v6898
        %6977 = vmatprep.subr.bf16.mxu0 0
        %6978 = vmatpush2.bf16.msra.mxu0 %v6897
        %6979 = vmatprep.subr.bf16.mxu0 0
        %6980 = vmatpush2.bf16.msra.mxu0 %v6896
        %6981 = vmatprep.subr.bf16.mxu0 0
        %6982 = vmatpush2.bf16.msra.mxu0 %v6895
        %6983 = vmatprep.mubr.bf16.mxu0 %v6685
        %6984 = vmatmul.mubr.bf16.gmra.mxu0 %v6684
        %v6985 = vpop.f32.mrf.mxu0
        %v6986 = vadd.f32 %v6757, %v6985
        %v6987 = vpop.f32.mrf.mxu0
        %v6988 = vpop.f32.mrf.mxu0
        %v6989 = vpop.f32.mrf.mxu0
        %6990 = vdwg.mxu0
        %6991 = vmatprep.subr.bf16.mxu0 0
        %6992 = vmatpush1.bf16.msra.mxu0 %v6910
        %6993 = vmatprep.subr.bf16.mxu0 0
        %6994 = vmatpush1.bf16.msra.mxu0 %v6909
        %6995 = vmatprep.subr.bf16.mxu0 0
        %6996 = vmatpush1.bf16.msra.mxu0 %v6908
        %6997 = vmatprep.subr.bf16.mxu0 0
        %6998 = vmatpush1.bf16.msra.mxu0 %v6907
        %6999 = vmatprep.subr.bf16.mxu0 0
        %7000 = vmatpush1.bf16.msra.mxu0 %v6906
        %7001 = vmatprep.subr.bf16.mxu0 0
        %7002 = vmatpush1.bf16.msra.mxu0 %v6905
        %7003 = vmatprep.subr.bf16.mxu0 0
        %7004 = vmatpush1.bf16.msra.mxu0 %v6904
        %7005 = vmatprep.subr.bf16.mxu0 0
        %7006 = vmatpush1.bf16.msra.mxu0 %v6903
        %7007 = vmatprep.subr.bf16.mxu0 0
        %7008 = vmatpush2.bf16.msra.mxu0 %v6918
        %7009 = vmatprep.subr.bf16.mxu0 0
        %7010 = vmatpush2.bf16.msra.mxu0 %v6917
        %7011 = vmatprep.subr.bf16.mxu0 0
        %7012 = vmatpush2.bf16.msra.mxu0 %v6916
        %7013 = vmatprep.subr.bf16.mxu0 0
        %7014 = vmatpush2.bf16.msra.mxu0 %v6915
        %7015 = vmatprep.subr.bf16.mxu0 0
        %7016 = vmatpush2.bf16.msra.mxu0 %v6914
        %7017 = vmatprep.subr.bf16.mxu0 0
        %7018 = vmatpush2.bf16.msra.mxu0 %v6913
        %7019 = vmatprep.subr.bf16.mxu0 0
        %7020 = vmatpush2.bf16.msra.mxu0 %v6912
        %7021 = vmatprep.subr.bf16.mxu0 0
        %7022 = vmatpush2.bf16.msra.mxu0 %v6911
        %7023 = vmatprep.mubr.bf16.mxu0 %v6687
        %7024 = vmatmul.mubr.bf16.gmra.mxu0 %v6686
        %v7025 = vpop.f32.mrf.mxu0
        %v7026 = vadd.f32 %v6986, %v7025
        %v7027 = vpop.f32.mrf.mxu0
        %v7028 = vpop.f32.mrf.mxu0
        %v7029 = vpop.f32.mrf.mxu0
        %7030 = vdwg.mxu0
        %7031 = vst [vmem:[%s328] sm:$0xff] %v7026
        %s7032 = sand.u32 %s225, 1
        %s7033 = scalar_lea.sflag [#allocation4], %s7032
        %s7034 = sand.u32 %s225, 1
        %s7035 = smul.addr %s7034, 8
        %s7036 = scalar_lea.vmem [#allocation3], %s7035
        // Predicated region
        $region57: #{encoder_forward.1} parent=55 // pred_check
          %p7037 = pneg %p235
        $region58: #{encoder_forward.1} parent=55 // pred_check_branch
          %7039 = sbr.rel (%p7037) target = $region60
        $region59: #{encoder_forward.1} parent=55 // pred_region
          %s7041 = ssub.s32 128, 128
          %7042 = vsyncadd %s7033, %s7041
          %s7043 = smul.addr %s23, 128
          %s7044 = scalar_lea.hbm %s9, %s7043
          %s7046 = sshll.u32 %s7036, 4
          %s7047 = int_to_ptr.vmem [resolvable:$true] %s7046
          %7049 = dma.vmem_to_hbm [thread:$0]  %s7047, 128, %s7044, %s7033
        $region60: #{encoder_forward.1} parent=55 // pred_fallthru
          _
      $region56: #{encoder_forward.1} parent=5 // pred_fallthru
        _
      %p7050 = scmp.le.s32.totalorder 2, %s18
      // Predicated region
      $region61: #{encoder_forward.1} parent=5 // pred_check
        %p7051 = pneg %p7050
      $region62: #{encoder_forward.1} parent=5 // pred_check_branch
        %7053 = sbr.rel (%p7051) target = $region64
      $region63: #{encoder_forward.1} parent=5 // pred_region
        %s7054 = ssub.s32 %s18, 2
        // Predicated region
        $region65: #{encoder_forward.1} parent=63 // pred_check
          %p7055 = pneg %p241
        $region66: #{encoder_forward.1} parent=63 // pred_check_branch
          %7057 = sbr.rel (%p7055) target = $region68
        $region67: #{encoder_forward.1} parent=63 // pred_region
          %s7058 = sand.u32 %s226, 1
          %s7059 = scalar_lea.sflag [#allocation4], %s7058
          %s7060 = sand.u32 %s226, 1
          %s7061 = smul.addr %s7060, 8
          %s7062 = scalar_lea.vmem [#allocation3], %s7061
          %7063 = dma.done %s7059, 128
        $region68: #{encoder_forward.1} parent=63 // pred_fallthru
          _
      $region64: #{encoder_forward.1} parent=5 // pred_fallthru
        _
    $region6: #{encoder_forward.1} parent=1 // loop_footer
      %s22 = sadd.s32 1, %s18
    $region7: #{encoder_forward.1} parent=1 // loop_footer_branch
      %17 = sbr.rel target = $region3
    $region8: #{encoder_forward.1} parent=1 // loop_exit
      _
    %7064 = vsyncpa [#allocation4], 1
    %s7065 = scalar_lea.sflag [#allocation4], 1
    %7066 = vsyncpa %s7065, 1

</llo_original>
